<compile_context>
chip_gen: v7x
topology: tpu7x:2x2x1
jax: 0.10.0
libtpu: 0.0.40
codegen_flags: <defaults>
</compile_context>

<pallas_src>
import functools

import numpy as np
import jax
import jax.numpy as jnp
from jax.experimental import pallas as pl
from jax.experimental.pallas import tpu as pltpu

K = 3          # every deconv kernel in the module is 3x3
PADW = 128     # lane padding for activations / per-ky output blocks

# (stride, pad_in, pad_out, lrelu_slope) per deconv layer, from __init__.
# TODO(synk): the final `deconv(4, 1, ...)` helper omits `lrelu`; assuming no
# activation on the last layer (identity), since the helper source is not given.
DECONV_CFG = (
    (1, 1, 0, 0.2),   # deconv(4, 16, 3, 1, pad_in=1, pad_out=0):  7x7  ->  7x7
    (2, 1, 1, 0.2),   # deconv(16, 8, 3, 2, pad_in=1, pad_out=1):  7x7  -> 14x14
    (1, 1, 0, 0.2),   # deconv(8, 8, 3, 1, pad_in=1, pad_out=0):  14x14 -> 14x14
    (2, 1, 1, 0.2),   # deconv(8, 4, 3, 2, pad_in=1, pad_out=1):  14x14 -> 28x28
    (1, 1, 0, None),  # deconv(4, 1, 3, 1, pad_in=1, pad_out=0):  28x28 -> 28x28
)
DECONV_CHANNELS = ((4, 16), (16, 8), (8, 8), (8, 4), (4, 1))
DENSE_DIMS = ((8, 64), (64, 16), (16, 4 * 7 * 7))
H0 = W0 = 7          # spatial size after the torch.reshape([N, 4, 7, 7])
C0 = 4
D2 = DENSE_DIMS[1][1]        # 16, dense-2 output width
ROWW0 = W0 * C0              # 28, deconv-input row width: cols = (x, c)
H_FINAL = 28


def _leaky(y, slope):
    # slope in (0,1): identical to LeakyReLU, 2 VALU ops.
    return jnp.maximum(y, slope * y)


# ----------------------------------------------------------------------------
# The single fused Pallas kernel
# ----------------------------------------------------------------------------
def _decoder_kernel(meta, z_ref, w_ref, b_ref, o_ref):
    """Fused dense(3) + ConvTranspose2d(5) forward.  All operands VMEM-resident."""
    bf16, f32 = jnp.bfloat16, jnp.float32
    wm, bm = meta["w"], meta["b"]

    def W(name):                       # bf16 weight-slab block (static view)
        o, r, c = wm[name]
        return w_ref[o:o + r, :c]

    def B(name):                       # f32 bias / mask / placement slab block
        o, r, c = bm[name]
        return b_ref[o:o + r, :c]

    # ---- dense chain on the row-expanded layout: rows = n*7 + y -------------
    # One tiny 0/1 dot replaces the old 7-matmul `eb` reshape-boundary block.
    zx = jnp.dot(B("E"), z_ref[...], preferred_element_type=f32)            # (N*7, 8)
    h = _leaky(jnp.dot(zx.astype(bf16), W("w1"),
                       preferred_element_type=f32) + B("b1"), 0.2)          # (N*7, 64)
    # dense-2 against w2 tiled 7x on columns -> 7 lane-copies of h2 per row.
    h = _leaky(jnp.dot(h.astype(bf16), W("w2t"),
                       preferred_element_type=f32) + B("b2t"), 0.2)         # (N*7, 112)
    # Per-row 0/1 block mask keeps copy y (= row % 7); dense-3 weights are
    # block-stacked so this single dot directly yields rows=(n,y), cols=(x,c)
    # (the torch.reshape([N,4,7,7]) boundary), zero-padded to 128 lanes.
    h = h * B("ymask")
    x = _leaky(jnp.dot(h.astype(bf16), W("w3s"),
                       preferred_element_type=f32) + B("b3s"), 0.2)         # (N*7, 128)

    # ---- deconv chain:  acc = bias + sum_ky  Rb_ky @ (X @ M_ky) -------------
    # The three ky matmuls share the same LHS and are fused into one 384-wide
    # dot per layer (each ky block lane-padded to 128 -> aligned slices); the
    # 0/1 row placements are applied afterwards, off the MXU critical path.
    for li, (stride, _, _, slope) in enumerate(DECONV_CFG):
        tcat = jnp.dot(x.astype(bf16), W(f"m{li}"),
                       preferred_element_type=f32)                   # (N*Hin, 3*128)
        t = [tcat[:, ky * PADW:(ky + 1) * PADW] for ky in range(K)]  # aligned views
        acc = B(f"cb{li}")                                           # (1, 128) bias
        if stride == 1:
            # ky=1 placement is the identity; ky=0 / ky=2 are +-1 row shifts.
            # TODO(synk): these two shifts could move to the idle XLU via
            # pltpu.roll + a per-image boundary mask instead of tiny f32 dots.
            acc = acc + t[1]
            acc = acc + jnp.dot(B(f"rb{li}_0"), t[0], preferred_element_type=f32)
            acc = acc + jnp.dot(B(f"rb{li}_2"), t[2], preferred_element_type=f32)
        else:
            for ky in range(K):
                acc = acc + jnp.dot(B(f"rb{li}_{ky}"), t[ky],
                                    preferred_element_type=f32)
        if slope is not None:
            acc = _leaky(acc, slope)
        x = acc                                                      # (N*Hout, 128) f32

    # Columns >= 28 of the last accumulator are exactly zero padding.
    o_ref[...] = x[:, :H_FINAL]


def make_decoder_forward(meta, n_batch):
    """Returns a jitted z, wslab, bslab -> (N, 1, 28, 28) forward."""
    kernel = functools.partial(_decoder_kernel, meta)
    vmem = pl.BlockSpec(memory_space=pltpu.MemorySpace.VMEM)
    call = pl.pallas_call(
        kernel,
        out_shape=jax.ShapeDtypeStruct((n_batch * H_FINAL, H_FINAL), jnp.float32),
        in_specs=[vmem, vmem, vmem],
        out_specs=vmem,
    )
    # TODO(synk): for larger batches add a 'parallel' batch grid axis
    # (dimension_semantics) for v7x's second core, and stage the 28-wide output
    # through a 128-lane scratch for lane-dense stores if it ever shows up.

    def forward(z, wslab, bslab):
        assert z.shape[0] == n_batch, "operands are specialized to this batch size"
        y = call(z.astype(jnp.float32), wslab, bslab)
        # Rows are already (n, y) row-major -> this reshape is free.
        return y.reshape(n_batch, 1, H_FINAL, H_FINAL)

    return jax.jit(forward)


# ----------------------------------------------------------------------------
# Parameter preparation: PyTorch-layout params -> 2 coalesced operand slabs
# (done once, outside the kernel / outside the measured forward).
# ----------------------------------------------------------------------------
def _row_place(h_in, h_out, stride, pad, ky):
    r = np.zeros((h_out, h_in), np.float32)
    for i in range(h_in):
        p = i * stride - pad + ky
        if 0 <= p < h_out:
            r[p, i] = 1.0
    return r


def _col_place(w_in, w_out, stride, pad):
    p = np.zeros((w_in, K, w_out), np.float32)
    for j in range(w_in):
        for kx in range(K):
            q = j * stride - pad + kx
            if 0 <= q < w_out:
                p[j, kx, q] = 1.0
    return p


def _build_slab(blocks, width, dtype):
    """Pack named 2-D blocks into one (rows, width) slab with 8-row alignment."""
    parts, meta, off = [], {}, 0
    for name, arr in blocks:
        arr = np.asarray(arr, np.float32)
        r, c = arr.shape
        assert c <= width, (name, arr.shape, width)
        pr = ((r + 7) // 8) * 8
        buf = np.zeros((pr, width), np.float32)
        buf[:r, :c] = arr
        parts.append(buf)
        meta[name] = (off, r, c)
        off += pr
    return jnp.asarray(np.concatenate(parts, axis=0), dtype=dtype), meta


def prepare_decoder_operands(params, n_batch):
    """Returns ((wslab bf16, bslab f32), static offset metadata)."""
    dense = [(np.asarray(w, np.float32), np.asarray(b, np.float32))
             for w, b in params["dense"]]
    dec = [(np.asarray(w, np.float32), np.asarray(b, np.float32))
           for w, b in params["deconv"]]
    (w1, b1), (w2, b2), (w3, b3) = dense

    # Fold the torch.reshape([N,4,7,7]) NCHW boundary into dense-3: permute its
    # output columns from (c, y, x) order to (y, x, c) order.
    perm = np.empty(C0 * H0 * W0, np.int32)
    for y in range(H0):
        for x in range(W0):
            for c in range(C0):
                perm[y * W0 * C0 + x * C0 + c] = c * H0 * W0 + y * W0 + x
    w3p, b3p = w3[:, perm], b3[perm]

    nrows = n_batch * H0
    rows_y = np.arange(nrows) % H0                     # y index of each (n, y) row

    # Row expansion z[n] -> rows (n, y)  (one tiny in-kernel dot).
    e = np.zeros((nrows, n_batch), np.float32)
    for n in range(n_batch):
        e[n * H0:(n + 1) * H0, n] = 1.0

    # dense-2 weight/bias tiled over the 7 y-blocks + per-row block-select mask.
    w2t = np.tile(w2, (1, H0))
    b2t = np.tile(b2, H0).reshape(1, -1)
    ymask = np.zeros((nrows, H0 * D2), np.float32)
    for r in range(nrows):
        ymask[r, rows_y[r] * D2:(rows_y[r] + 1) * D2] = 1.0

    # dense-3 block-stacked weight / per-row bias, output zero-padded to 128 lanes:
    # X[(n,y), x*C0+c] = sum_k h2[n,k] * w3p[k, y*28 + x*C0+c] + b3p[y*28 + ...].
    w3s = np.zeros((H0 * D2, PADW), np.float32)
    for y in range(H0):
        w3s[y * D2:(y + 1) * D2, :ROWW0] = w3p[:, y * ROWW0:(y + 1) * ROWW0]
    b3s = np.zeros((nrows, PADW), np.float32)
    for r in range(nrows):
        b3s[r, :ROWW0] = b3p[rows_y[r] * ROWW0:(rows_y[r] + 1) * ROWW0]

    wblocks = [("w1", w1), ("w2t", w2t), ("w3s", w3s)]
    bblocks = [("E", e), ("b1", b1.reshape(1, -1)), ("b2t", b2t),
               ("ymask", ymask), ("b3s", b3s)]

    # Deconv layers: M_ky folds conv weights + kx column placement (lane-padded
    # to 128 per ky and concatenated -> one fused dot per layer); Rb_ky is the
    # 0/1 row placement (stride / pad / output_padding on rows), block-diagonal
    # over batch.  ky=1 of stride-1 layers is the identity and is not emitted.
    # TODO(synk): Rb = kron(I_N, R) is O(N^2); use per-sample R + a batch grid
    # axis before scaling N (v7x has half the VMEM of v5e/v6e).
    h_in = w_in = H0
    for li, ((cin, cout), (stride, pad, outpad, _), (wgt, b)) in enumerate(
            zip(DECONV_CHANNELS, DECONV_CFG, dec)):
        h_out = (h_in - 1) * stride - 2 * pad + K + outpad
        w_out = (w_in - 1) * stride - 2 * pad + K + outpad

        pcol = _col_place(w_in, w_out, stride, pad)          # (w_in, K, w_out)
        mcat = np.zeros((PADW, K * PADW), np.float32)
        for ky in range(K):
            # M_ky[j*cin + ci, q*cout + co] = W[ci, co, ky, q - j*stride + pad]
            mk = np.einsum("jkq,iok->jiqo", pcol, wgt[:, :, ky, :]).reshape(
                w_in * cin, w_out * cout)
            mcat[:w_in * cin, ky * PADW:ky * PADW + w_out * cout] = mk
        wblocks.append((f"m{li}", mcat))

        cb = np.zeros((1, PADW), np.float32)
        cb[0, :w_out * cout] = np.tile(b, w_out)             # bias per (q, co) column
        bblocks.append((f"cb{li}", cb))

        for ky in range(K):
            if stride == 1 and ky == 1:
                continue                                     # identity placement
            rbk = np.kron(np.eye(n_batch, dtype=np.float32),
                          _row_place(h_in, h_out, stride, pad, ky))
            bblocks.append((f"rb{li}_{ky}", rbk))
        h_in, w_in = h_out, w_out

    wslab, wmeta = _build_slab(wblocks, K * PADW, jnp.bfloat16)
    bslab, bmeta = _build_slab(bblocks, PADW, jnp.float32)
    return (wslab, bslab), {"w": wmeta, "b": bmeta}


# ----------------------------------------------------------------------------
# Deterministic synthetic parameters (mirror the PyTorch layer shapes).
# ----------------------------------------------------------------------------
def init_params(key):
    keys = jax.random.split(key, len(DENSE_DIMS) + len(DECONV_CHANNELS))

    def lin(k, fin, fout):
        k1, k2 = jax.random.split(k)
        s = 1.0 / np.sqrt(fin)
        return (jax.random.uniform(k1, (fin, fout), jnp.float32, -s, s),
                jax.random.uniform(k2, (fout,), jnp.float32, -s, s))

    def deconv(k, cin, cout):
        k1, k2 = jax.random.split(k)
        s = 1.0 / np.sqrt(cin * K * K)
        # PyTorch ConvTranspose2d weight layout: (Cin, Cout, kH, kW)
        return (jax.random.uniform(k1, (cin, cout, K, K), jnp.float32, -s, s),
                jax.random.uniform(k2, (cout,), jnp.float32, -s, s))

    dense = [lin(keys[i], fi, fo) for i, (fi, fo) in enumerate(DENSE_DIMS)]
    dec = [deconv(keys[len(DENSE_DIMS) + i], ci, co)
           for i, (ci, co) in enumerate(DECONV_CHANNELS)]
    return {"dense": dense, "deconv": dec}


# ----------------------------------------------------------------------------
# Pure-JAX f32 reference (dilate + pad + im2col path) for a numerical check.
# ----------------------------------------------------------------------------
def _reference_forward(z, params):
    h = z
    for w, b in params["dense"]:
        h = _leaky(h @ w + b, 0.2)
    n = z.shape[0]
    x = jnp.transpose(h.reshape(n, C0, H0, W0), (0, 2, 3, 1))      # NCHW -> NHWC
    for (wgt, b), (stride, pad, outpad, slope) in zip(params["deconv"], DECONV_CFG):
        cin, cout = wgt.shape[0], wgt.shape[1]
        wf = jnp.transpose(wgt[:, :, ::-1, ::-1], (2, 3, 0, 1)).reshape(K * K * cin, cout)
        nb, hh, ww, _ = x.shape
        if stride > 1:
            hd, wd = (hh - 1) * stride + 1, (ww - 1) * stride + 1
            xd = jnp.zeros((nb, hd, wd, cin), x.dtype).at[:, ::stride, ::stride, :].set(x)
        else:
            xd = x
        lo, hi = K - 1 - pad, K - 1 - pad + outpad
        xp = jnp.pad(xd, ((0, 0), (lo, hi), (lo, hi), (0, 0)))
        hout, wout = xp.shape[1] - K + 1, xp.shape[2] - K + 1
        cols = jnp.concatenate([xp[:, ky:ky + hout, kx:kx + wout, :]
                                for ky in range(K) for kx in range(K)], axis=-1)
        y = cols.reshape(nb * hout * wout, K * K * cin) @ wf + b
        if slope is not None:
            y = _leaky(y, slope)
        x = y.reshape(nb, hout, wout, cout)
    return jnp.transpose(x, (0, 3, 1, 2))                          # (N, 1, 28, 28)


if __name__ == "__main__":
    key = jax.random.PRNGKey(0)
    pkey, zkey = jax.random.split(key)
    params = init_params(pkey)
    z = jax.random.normal(zkey, (2, 8), jnp.float32)

    (wslab, bslab), meta = prepare_decoder_operands(params, n_batch=z.shape[0])
    forward = make_decoder_forward(meta, n_batch=z.shape[0])
    out = jax.block_until_ready(forward(z, wslab, bslab))

    assert out.shape == (2, 1, 28, 28), out.shape
    assert out.dtype == jnp.float32

    # Numerical sanity check against the f32 XLA reference (kernel uses bf16
    # matmul operands through an 8-layer chain, hence the loose tolerance).
    ref = jax.block_until_ready(jax.jit(_reference_forward)(z, params))
    np.testing.assert_allclose(np.asarray(out), np.asarray(ref), rtol=1e-1, atol=1e-2)

    print("KERNEL_OK")
</pallas_src>

<mosaic_0001>
module attributes {stable_mosaic.version = 11 : i64} {
  func.func @_decoder_kernel(%arg0: memref<2x8xf32, #tpu.memory_space<vmem>>, %arg1: memref<824x384xbf16, #tpu.memory_space<vmem>>, %arg2: memref<576x128xf32, #tpu.memory_space<vmem>>, %arg3: memref<56x28xf32, #tpu.memory_space<vmem>>) attributes {dimension_semantics = [], scalar_prefetch = 0 : i64, scratch_operands = 0 : i64, tpu.core_type = #tpu.core_type<tc>} {
    %c0 = arith.constant 0 : index
    %c0_0 = arith.constant 0 : index
    %0 = vector.load %arg2[%c0, %c0_0] : memref<576x128xf32, #tpu.memory_space<vmem>>, vector<14x2xf32>
    %c0_1 = arith.constant 0 : index
    %c0_2 = arith.constant 0 : index
    %1 = vector.load %arg0[%c0_1, %c0_2] : memref<2x8xf32, #tpu.memory_space<vmem>>, vector<2x8xf32>
    %cst = arith.constant dense<0.000000e+00> : vector<14x8xf32>
    %2 = tpu.matmul %0, %1, %cst {dimension_numbers = #tpu.dot_dimension_numbers<[1], [0], [0], [1], [0, 0, 1, 1], [], []>} : vector<14x2xf32>, vector<2x8xf32>, vector<14x8xf32> -> vector<14x8xf32>
    %3 = arith.truncf %2 : vector<14x8xf32> to vector<14x8xbf16>
    %c0_3 = arith.constant 0 : index
    %c0_4 = arith.constant 0 : index
    %4 = vector.load %arg1[%c0_3, %c0_4] : memref<824x384xbf16, #tpu.memory_space<vmem>>, vector<8x64xbf16>
    %cst_5 = arith.constant dense<0.000000e+00> : vector<14x64xf32>
    %5 = tpu.matmul %3, %4, %cst_5 {dimension_numbers = #tpu.dot_dimension_numbers<[1], [0], [0], [1], [0, 0, 1, 1], [], []>} : vector<14x8xbf16>, vector<8x64xbf16>, vector<14x64xf32> -> vector<14x64xf32>
    %c16 = arith.constant 16 : index
    %c0_6 = arith.constant 0 : index
    %6 = vector.load %arg2[%c16, %c0_6] : memref<576x128xf32, #tpu.memory_space<vmem>>, vector<1x64xf32>
    %7 = vector.broadcast %6 : vector<1x64xf32> to vector<14x64xf32>
    %8 = arith.addf %5, %7 : vector<14x64xf32>
    %cst_7 = arith.constant 2.000000e-01 : f32
    %9 = vector.broadcast %cst_7 : f32 to vector<14x64xf32>
    %10 = arith.mulf %9, %8 : vector<14x64xf32>
    %11 = arith.maximumf %8, %10 : vector<14x64xf32>
    %12 = arith.truncf %11 : vector<14x64xf32> to vector<14x64xbf16>
    %c8 = arith.constant 8 : index
    %c0_8 = arith.constant 0 : index
    %13 = vector.load %arg1[%c8, %c0_8] : memref<824x384xbf16, #tpu.memory_space<vmem>>, vector<64x112xbf16>
    %cst_9 = arith.constant dense<0.000000e+00> : vector<14x112xf32>
    %14 = tpu.matmul %12, %13, %cst_9 {dimension_numbers = #tpu.dot_dimension_numbers<[1], [0], [0], [1], [0, 0, 1, 1], [], []>} : vector<14x64xbf16>, vector<64x112xbf16>, vector<14x112xf32> -> vector<14x112xf32>
    %c24 = arith.constant 24 : index
    %c0_10 = arith.constant 0 : index
    %15 = vector.load %arg2[%c24, %c0_10] : memref<576x128xf32, #tpu.memory_space<vmem>>, vector<1x112xf32>
    %16 = vector.broadcast %15 : vector<1x112xf32> to vector<14x112xf32>
    %17 = arith.addf %14, %16 : vector<14x112xf32>
    %cst_11 = arith.constant 2.000000e-01 : f32
    %18 = vector.broadcast %cst_11 : f32 to vector<14x112xf32>
    %19 = arith.mulf %18, %17 : vector<14x112xf32>
    %20 = arith.maximumf %17, %19 : vector<14x112xf32>
    %c32 = arith.constant 32 : index
    %c0_12 = arith.constant 0 : index
    %21 = vector.load %arg2[%c32, %c0_12] : memref<576x128xf32, #tpu.memory_space<vmem>>, vector<14x112xf32>
    %22 = arith.mulf %20, %21 : vector<14x112xf32>
    %23 = arith.truncf %22 : vector<14x112xf32> to vector<14x112xbf16>
    %c72 = arith.constant 72 : index
    %c0_13 = arith.constant 0 : index
    %24 = vector.load %arg1[%c72, %c0_13] : memref<824x384xbf16, #tpu.memory_space<vmem>>, vector<112x128xbf16>
    %cst_14 = arith.constant dense<0.000000e+00> : vector<14x128xf32>
    %25 = tpu.matmul %23, %24, %cst_14 {dimension_numbers = #tpu.dot_dimension_numbers<[1], [0], [0], [1], [0, 0, 1, 1], [], []>} : vector<14x112xbf16>, vector<112x128xbf16>, vector<14x128xf32> -> vector<14x128xf32>
    %c48 = arith.constant 48 : index
    %c0_15 = arith.constant 0 : index
    %26 = vector.load %arg2[%c48, %c0_15] : memref<576x128xf32, #tpu.memory_space<vmem>>, vector<14x128xf32>
    %27 = arith.addf %25, %26 : vector<14x128xf32>
    %cst_16 = arith.constant 2.000000e-01 : f32
    %28 = vector.broadcast %cst_16 : f32 to vector<14x128xf32>
    %29 = arith.mulf %28, %27 : vector<14x128xf32>
    %30 = arith.maximumf %27, %29 : vector<14x128xf32>
    %31 = arith.truncf %30 : vector<14x128xf32> to vector<14x128xbf16>
    %c184 = arith.constant 184 : index
    %c0_17 = arith.constant 0 : index
    %32 = vector.load %arg1[%c184, %c0_17] : memref<824x384xbf16, #tpu.memory_space<vmem>>, vector<128x384xbf16>
    %cst_18 = arith.constant dense<0.000000e+00> : vector<14x384xf32>
    %33 = tpu.matmul %31, %32, %cst_18 {dimension_numbers = #tpu.dot_dimension_numbers<[1], [0], [0], [1], [0, 0, 1, 1], [], []>} : vector<14x128xbf16>, vector<128x384xbf16>, vector<14x384xf32> -> vector<14x384xf32>
    %34 = vector.extract_strided_slice %33 {offsets = [0, 0], sizes = [14, 128], strides = [1, 1]} : vector<14x384xf32> to vector<14x128xf32>
    %35 = vector.extract_strided_slice %33 {offsets = [0, 128], sizes = [14, 128], strides = [1, 1]} : vector<14x384xf32> to vector<14x128xf32>
    %36 = vector.extract_strided_slice %33 {offsets = [0, 256], sizes = [14, 128], strides = [1, 1]} : vector<14x384xf32> to vector<14x128xf32>
    %c64 = arith.constant 64 : index
    %c0_19 = arith.constant 0 : index
    %37 = vector.load %arg2[%c64, %c0_19] : memref<576x128xf32, #tpu.memory_space<vmem>>, vector<1x128xf32>
    %38 = vector.broadcast %37 : vector<1x128xf32> to vector<14x128xf32>
    %39 = arith.addf %38, %35 : vector<14x128xf32>
    %c72_20 = arith.constant 72 : index
    %c0_21 = arith.constant 0 : index
    %40 = vector.load %arg2[%c72_20, %c0_21] : memref<576x128xf32, #tpu.memory_space<vmem>>, vector<14x14xf32>
    %cst_22 = arith.constant dense<0.000000e+00> : vector<14x128xf32>
    %41 = tpu.matmul %40, %34, %cst_22 {dimension_numbers = #tpu.dot_dimension_numbers<[1], [0], [0], [1], [0, 0, 1, 1], [], []>} : vector<14x14xf32>, vector<14x128xf32>, vector<14x128xf32> -> vector<14x128xf32>
    %42 = arith.addf %39, %41 : vector<14x128xf32>
    %c88 = arith.constant 88 : index
    %c0_23 = arith.constant 0 : index
    %43 = vector.load %arg2[%c88, %c0_23] : memref<576x128xf32, #tpu.memory_space<vmem>>, vector<14x14xf32>
    %cst_24 = arith.constant dense<0.000000e+00> : vector<14x128xf32>
    %44 = tpu.matmul %43, %36, %cst_24 {dimension_numbers = #tpu.dot_dimension_numbers<[1], [0], [0], [1], [0, 0, 1, 1], [], []>} : vector<14x14xf32>, vector<14x128xf32>, vector<14x128xf32> -> vector<14x128xf32>
    %45 = arith.addf %42, %44 : vector<14x128xf32>
    %cst_25 = arith.constant 2.000000e-01 : f32
    %46 = vector.broadcast %cst_25 : f32 to vector<14x128xf32>
    %47 = arith.mulf %46, %45 : vector<14x128xf32>
    %48 = arith.maximumf %45, %47 : vector<14x128xf32>
    %49 = arith.truncf %48 : vector<14x128xf32> to vector<14x128xbf16>
    %c312 = arith.constant 312 : index
    %c0_26 = arith.constant 0 : index
    %50 = vector.load %arg1[%c312, %c0_26] : memref<824x384xbf16, #tpu.memory_space<vmem>>, vector<128x384xbf16>
    %cst_27 = arith.constant dense<0.000000e+00> : vector<14x384xf32>
    %51 = tpu.matmul %49, %50, %cst_27 {dimension_numbers = #tpu.dot_dimension_numbers<[1], [0], [0], [1], [0, 0, 1, 1], [], []>} : vector<14x128xbf16>, vector<128x384xbf16>, vector<14x384xf32> -> vector<14x384xf32>
    %52 = vector.extract_strided_slice %51 {offsets = [0, 0], sizes = [14, 128], strides = [1, 1]} : vector<14x384xf32> to vector<14x128xf32>
    %53 = vector.extract_strided_slice %51 {offsets = [0, 128], sizes = [14, 128], strides = [1, 1]} : vector<14x384xf32> to vector<14x128xf32>
    %54 = vector.extract_strided_slice %51 {offsets = [0, 256], sizes = [14, 128], strides = [1, 1]} : vector<14x384xf32> to vector<14x128xf32>
    %c104 = arith.constant 104 : index
    %c0_28 = arith.constant 0 : index
    %55 = vector.load %arg2[%c104, %c0_28] : memref<576x128xf32, #tpu.memory_space<vmem>>, vector<1x128xf32>
    %c112 = arith.constant 112 : index
    %c0_29 = arith.constant 0 : index
    %56 = vector.load %arg2[%c112, %c0_29] : memref<576x128xf32, #tpu.memory_space<vmem>>, vector<28x14xf32>
    %cst_30 = arith.constant dense<0.000000e+00> : vector<28x128xf32>
    %57 = tpu.matmul %56, %52, %cst_30 {dimension_numbers = #tpu.dot_dimension_numbers<[1], [0], [0], [1], [0, 0, 1, 1], [], []>} : vector<28x14xf32>, vector<14x128xf32>, vector<28x128xf32> -> vector<28x128xf32>
    %58 = vector.broadcast %55 : vector<1x128xf32> to vector<28x128xf32>
    %59 = arith.addf %58, %57 : vector<28x128xf32>
    %c144 = arith.constant 144 : index
    %c0_31 = arith.constant 0 : index
    %60 = vector.load %arg2[%c144, %c0_31] : memref<576x128xf32, #tpu.memory_space<vmem>>, vector<28x14xf32>
    %cst_32 = arith.constant dense<0.000000e+00> : vector<28x128xf32>
    %61 = tpu.matmul %60, %53, %cst_32 {dimension_numbers = #tpu.dot_dimension_numbers<[1], [0], [0], [1], [0, 0, 1, 1], [], []>} : vector<28x14xf32>, vector<14x128xf32>, vector<28x128xf32> -> vector<28x128xf32>
    %62 = arith.addf %59, %61 : vector<28x128xf32>
    %c176 = arith.constant 176 : index
    %c0_33 = arith.constant 0 : index
    %63 = vector.load %arg2[%c176, %c0_33] : memref<576x128xf32, #tpu.memory_space<vmem>>, vector<28x14xf32>
    %cst_34 = arith.constant dense<0.000000e+00> : vector<28x128xf32>
    %64 = tpu.matmul %63, %54, %cst_34 {dimension_numbers = #tpu.dot_dimension_numbers<[1], [0], [0], [1], [0, 0, 1, 1], [], []>} : vector<28x14xf32>, vector<14x128xf32>, vector<28x128xf32> -> vector<28x128xf32>
    %65 = arith.addf %62, %64 : vector<28x128xf32>
    %cst_35 = arith.constant 2.000000e-01 : f32
    %66 = vector.broadcast %cst_35 : f32 to vector<28x128xf32>
    %67 = arith.mulf %66, %65 : vector<28x128xf32>
    %68 = arith.maximumf %65, %67 : vector<28x128xf32>
    %69 = arith.truncf %68 : vector<28x128xf32> to vector<28x128xbf16>
    %c440 = arith.constant 440 : index
    %c0_36 = arith.constant 0 : index
    %70 = vector.load %arg1[%c440, %c0_36] : memref<824x384xbf16, #tpu.memory_space<vmem>>, vector<128x384xbf16>
    %cst_37 = arith.constant dense<0.000000e+00> : vector<28x384xf32>
    %71 = tpu.matmul %69, %70, %cst_37 {dimension_numbers = #tpu.dot_dimension_numbers<[1], [0], [0], [1], [0, 0, 1, 1], [], []>} : vector<28x128xbf16>, vector<128x384xbf16>, vector<28x384xf32> -> vector<28x384xf32>
    %72 = vector.extract_strided_slice %71 {offsets = [0, 0], sizes = [28, 128], strides = [1, 1]} : vector<28x384xf32> to vector<28x128xf32>
    %73 = vector.extract_strided_slice %71 {offsets = [0, 128], sizes = [28, 128], strides = [1, 1]} : vector<28x384xf32> to vector<28x128xf32>
    %74 = vector.extract_strided_slice %71 {offsets = [0, 256], sizes = [28, 128], strides = [1, 1]} : vector<28x384xf32> to vector<28x128xf32>
    %c208 = arith.constant 208 : index
    %c0_38 = arith.constant 0 : index
    %75 = vector.load %arg2[%c208, %c0_38] : memref<576x128xf32, #tpu.memory_space<vmem>>, vector<1x128xf32>
    %76 = vector.broadcast %75 : vector<1x128xf32> to vector<28x128xf32>
    %77 = arith.addf %76, %73 : vector<28x128xf32>
    %c216 = arith.constant 216 : index
    %c0_39 = arith.constant 0 : index
    %78 = vector.load %arg2[%c216, %c0_39] : memref<576x128xf32, #tpu.memory_space<vmem>>, vector<28x28xf32>
    %cst_40 = arith.constant dense<0.000000e+00> : vector<28x128xf32>
    %79 = tpu.matmul %78, %72, %cst_40 {dimension_numbers = #tpu.dot_dimension_numbers<[1], [0], [0], [1], [0, 0, 1, 1], [], []>} : vector<28x28xf32>, vector<28x128xf32>, vector<28x128xf32> -> vector<28x128xf32>
    %80 = arith.addf %77, %79 : vector<28x128xf32>
    %c248 = arith.constant 248 : index
    %c0_41 = arith.constant 0 : index
    %81 = vector.load %arg2[%c248, %c0_41] : memref<576x128xf32, #tpu.memory_space<vmem>>, vector<28x28xf32>
    %cst_42 = arith.constant dense<0.000000e+00> : vector<28x128xf32>
    %82 = tpu.matmul %81, %74, %cst_42 {dimension_numbers = #tpu.dot_dimension_numbers<[1], [0], [0], [1], [0, 0, 1, 1], [], []>} : vector<28x28xf32>, vector<28x128xf32>, vector<28x128xf32> -> vector<28x128xf32>
    %83 = arith.addf %80, %82 : vector<28x128xf32>
    %cst_43 = arith.constant 2.000000e-01 : f32
    %84 = vector.broadcast %cst_43 : f32 to vector<28x128xf32>
    %85 = arith.mulf %84, %83 : vector<28x128xf32>
    %86 = arith.maximumf %83, %85 : vector<28x128xf32>
    %87 = arith.truncf %86 : vector<28x128xf32> to vector<28x128xbf16>
    %c568 = arith.constant 568 : index
    %c0_44 = arith.constant 0 : index
    %88 = vector.load %arg1[%c568, %c0_44] : memref<824x384xbf16, #tpu.memory_space<vmem>>, vector<128x384xbf16>
    %cst_45 = arith.constant dense<0.000000e+00> : vector<28x384xf32>
    %89 = tpu.matmul %87, %88, %cst_45 {dimension_numbers = #tpu.dot_dimension_numbers<[1], [0], [0], [1], [0, 0, 1, 1], [], []>} : vector<28x128xbf16>, vector<128x384xbf16>, vector<28x384xf32> -> vector<28x384xf32>
    %90 = vector.extract_strided_slice %89 {offsets = [0, 0], sizes = [28, 128], strides = [1, 1]} : vector<28x384xf32> to vector<28x128xf32>
    %91 = vector.extract_strided_slice %89 {offsets = [0, 128], sizes = [28, 128], strides = [1, 1]} : vector<28x384xf32> to vector<28x128xf32>
    %92 = vector.extract_strided_slice %89 {offsets = [0, 256], sizes = [28, 128], strides = [1, 1]} : vector<28x384xf32> to vector<28x128xf32>
    %c280 = arith.constant 280 : index
    %c0_46 = arith.constant 0 : index
    %93 = vector.load %arg2[%c280, %c0_46] : memref<576x128xf32, #tpu.memory_space<vmem>>, vector<1x128xf32>
    %c288 = arith.constant 288 : index
    %c0_47 = arith.constant 0 : index
    %94 = vector.load %arg2[%c288, %c0_47] : memref<576x128xf32, #tpu.memory_space<vmem>>, vector<56x28xf32>
    %cst_48 = arith.constant dense<0.000000e+00> : vector<56x128xf32>
    %95 = tpu.matmul %94, %90, %cst_48 {dimension_numbers = #tpu.dot_dimension_numbers<[1], [0], [0], [1], [0, 0, 1, 1], [], []>} : vector<56x28xf32>, vector<28x128xf32>, vector<56x128xf32> -> vector<56x128xf32>
    %96 = vector.broadcast %93 : vector<1x128xf32> to vector<56x128xf32>
    %97 = arith.addf %96, %95 : vector<56x128xf32>
    %c344 = arith.constant 344 : index
    %c0_49 = arith.constant 0 : index
    %98 = vector.load %arg2[%c344, %c0_49] : memref<576x128xf32, #tpu.memory_space<vmem>>, vector<56x28xf32>
    %cst_50 = arith.constant dense<0.000000e+00> : vector<56x128xf32>
    %99 = tpu.matmul %98, %91, %cst_50 {dimension_numbers = #tpu.dot_dimension_numbers<[1], [0], [0], [1], [0, 0, 1, 1], [], []>} : vector<56x28xf32>, vector<28x128xf32>, vector<56x128xf32> -> vector<56x128xf32>
    %100 = arith.addf %97, %99 : vector<56x128xf32>
    %c400 = arith.constant 400 : index
    %c0_51 = arith.constant 0 : index
    %101 = vector.load %arg2[%c400, %c0_51] : memref<576x128xf32, #tpu.memory_space<vmem>>, vector<56x28xf32>
    %cst_52 = arith.constant dense<0.000000e+00> : vector<56x128xf32>
    %102 = tpu.matmul %101, %92, %cst_52 {dimension_numbers = #tpu.dot_dimension_numbers<[1], [0], [0], [1], [0, 0, 1, 1], [], []>} : vector<56x28xf32>, vector<28x128xf32>, vector<56x128xf32> -> vector<56x128xf32>
    %103 = arith.addf %100, %102 : vector<56x128xf32>
    %cst_53 = arith.constant 2.000000e-01 : f32
    %104 = vector.broadcast %cst_53 : f32 to vector<56x128xf32>
    %105 = arith.mulf %104, %103 : vector<56x128xf32>
    %106 = arith.maximumf %103, %105 : vector<56x128xf32>
    %107 = arith.truncf %106 : vector<56x128xf32> to vector<56x128xbf16>
    %c696 = arith.constant 696 : index
    %c0_54 = arith.constant 0 : index
    %108 = vector.load %arg1[%c696, %c0_54] : memref<824x384xbf16, #tpu.memory_space<vmem>>, vector<128x384xbf16>
    %cst_55 = arith.constant dense<0.000000e+00> : vector<56x384xf32>
    %109 = tpu.matmul %107, %108, %cst_55 {dimension_numbers = #tpu.dot_dimension_numbers<[1], [0], [0], [1], [0, 0, 1, 1], [], []>} : vector<56x128xbf16>, vector<128x384xbf16>, vector<56x384xf32> -> vector<56x384xf32>
    %110 = vector.extract_strided_slice %109 {offsets = [0, 0], sizes = [56, 128], strides = [1, 1]} : vector<56x384xf32> to vector<56x128xf32>
    %111 = vector.extract_strided_slice %109 {offsets = [0, 128], sizes = [56, 128], strides = [1, 1]} : vector<56x384xf32> to vector<56x128xf32>
    %112 = vector.extract_strided_slice %109 {offsets = [0, 256], sizes = [56, 128], strides = [1, 1]} : vector<56x384xf32> to vector<56x128xf32>
    %c456 = arith.constant 456 : index
    %c0_56 = arith.constant 0 : index
    %113 = vector.load %arg2[%c456, %c0_56] : memref<576x128xf32, #tpu.memory_space<vmem>>, vector<1x128xf32>
    %114 = vector.broadcast %113 : vector<1x128xf32> to vector<56x128xf32>
    %115 = arith.addf %114, %111 : vector<56x128xf32>
    %c464 = arith.constant 464 : index
    %c0_57 = arith.constant 0 : index
    %116 = vector.load %arg2[%c464, %c0_57] : memref<576x128xf32, #tpu.memory_space<vmem>>, vector<56x56xf32>
    %cst_58 = arith.constant dense<0.000000e+00> : vector<56x128xf32>
    %117 = tpu.matmul %116, %110, %cst_58 {dimension_numbers = #tpu.dot_dimension_numbers<[1], [0], [0], [1], [0, 0, 1, 1], [], []>} : vector<56x56xf32>, vector<56x128xf32>, vector<56x128xf32> -> vector<56x128xf32>
    %118 = arith.addf %115, %117 : vector<56x128xf32>
    %c520 = arith.constant 520 : index
    %c0_59 = arith.constant 0 : index
    %119 = vector.load %arg2[%c520, %c0_59] : memref<576x128xf32, #tpu.memory_space<vmem>>, vector<56x56xf32>
    %cst_60 = arith.constant dense<0.000000e+00> : vector<56x128xf32>
    %120 = tpu.matmul %119, %112, %cst_60 {dimension_numbers = #tpu.dot_dimension_numbers<[1], [0], [0], [1], [0, 0, 1, 1], [], []>} : vector<56x56xf32>, vector<56x128xf32>, vector<56x128xf32> -> vector<56x128xf32>
    %121 = arith.addf %118, %120 : vector<56x128xf32>
    %122 = vector.extract_strided_slice %121 {offsets = [0, 0], sizes = [56, 28], strides = [1, 1]} : vector<56x128xf32> to vector<56x28xf32>
    %c0_61 = arith.constant 0 : index
    %c0_62 = arith.constant 0 : index
    %123 = vector.load %arg3[%c0_61, %c0_62] : memref<56x28xf32, #tpu.memory_space<vmem>>, vector<56x28xf32>
    tpu.vector_store %arg3[%c0_61, %c0_62], %122 {strides = array<i32>} : memref<56x28xf32, #tpu.memory_space<vmem>>, vector<56x28xf32>,
    return
  }
}

</mosaic_0001>

<llo_original>
// kernel: forward.1
$region0: #{forward.1}
  #allocation0 [shape = 'u32[]', space=smem, size = 0x4, offset = 0x4, fixed_abs, tag = 'smem constant byte address 0x4 - core index']
  #allocation1 [shape = 'u32[144,128]{1,0:T(1,128)}', space=vmem, size = 0x12000, scoped, tag = 'internal scratch']
  %s0 = inlined_call_operand.hbm [shape: f32[2,8], index: 0, kind: input, shape index: {}]
  %s1 = inlined_call_operand.hbm [shape: bf16[824,384], index: 1, kind: input, shape index: {}]
  %s2 = inlined_call_operand.hbm [shape: f32[576,128], index: 2, kind: input, shape index: {}]
  %s3 = inlined_call_operand.hbm [shape: f32[56,28], index: 3, kind: output, shape index: {}]
  %s4 = sld [smem:[#allocation0]]
  $region34: #{forward.1} parent=0
    _
  %s6 = ssub.s32 1, %s4
  %s7 = scalar_select 0, %s6, %s4
  $region1: #{forward.1} parent=0
    #allocation2 [shape = 'u8[1024]{0}', space=vmem, size = 0x400, scoped, tag = 'input window, operand 0, single buffered']
    #allocation3 [shape = 's32[1]{0}', space=sflag, size = 0x4, scoped, tag = 'scoped memory for forward.1']
    #allocation4 [shape = 's32[1]{0}', space=sflag, size = 0x4, scoped, tag = 'scoped memory for forward.1']
    #allocation5 [shape = 'u8[632832]{0}', space=vmem, size = 0x9a800, scoped, tag = 'input window, operand 1, single buffered']
    #allocation6 [shape = 's32[1]{0}', space=sflag, size = 0x4, scoped, tag = 'scoped memory for forward.1']
    #allocation7 [shape = 'u8[294912]{0}', space=vmem, size = 0x48000, scoped, tag = 'input window, operand 2, single buffered']
    #allocation8 [shape = 'u8[28672]{0}', space=vmem, size = 0x7000, scoped, tag = 'output window, operand 0, single buffered']
    %8 = vsyncpa [#allocation3], 0
    %9 = vsyncpa [#allocation6], 0
    %10 = vsyncpa [#allocation4], 0
    // Predicated region
    $region2: #{forward.1} parent=1 // pred_check
      _
    $region3: #{forward.1} parent=1 // pred_check_branch
      %12 = sbr.rel (0) target = $region5
    $region4: #{forward.1} parent=1 // pred_region
      %s14 = ssub.s32 32, 32
      %15 = vsyncadd [#allocation3], %s14
      %s17 = sshll.u32 [#allocation2], 4
      %s18 = int_to_ptr.vmem [resolvable:$true] %s17
      %20 = dma.hbm_to_vmem [thread:$0]  %s0, 32, %s18, [#allocation3]
    $region5: #{forward.1} parent=1 // pred_fallthru
      _
    // Predicated region
    $region6: #{forward.1} parent=1 // pred_check
      _
    $region7: #{forward.1} parent=1 // pred_check_branch
      %22 = sbr.rel (0) target = $region9
    $region8: #{forward.1} parent=1 // pred_region
      %s24 = ssub.s32 19776, 19776
      %25 = vsyncadd [#allocation6], %s24
      %s26 = sshll.u32 [#allocation5], 4
      %s27 = int_to_ptr.vmem [resolvable:$true] %s26
      %32 = dma.hbm_to_vmem [thread:$0]  %s1, 19776, %s27, [#allocation6], 192, 192, 12
    $region9: #{forward.1} parent=1 // pred_fallthru
      _
    // Predicated region
    $region10: #{forward.1} parent=1 // pred_check
      _
    $region11: #{forward.1} parent=1 // pred_check_branch
      %34 = sbr.rel (0) target = $region13
    $region12: #{forward.1} parent=1 // pred_region
      %s36 = ssub.s32 9216, 9216
      %37 = vsyncadd [#allocation6], %s36
      %s38 = sshll.u32 [#allocation7], 4
      %s39 = int_to_ptr.vmem [resolvable:$true] %s38
      %44 = dma.hbm_to_vmem [thread:$0]  %s2, 9216, %s39, [#allocation6], 128, 128, 8
    $region13: #{forward.1} parent=1 // pred_fallthru
      _
    // Predicated region
    $region14: #{forward.1} parent=1 // pred_check
      _
    $region15: #{forward.1} parent=1 // pred_check_branch
      %46 = sbr.rel (0) target = $region17
    $region16: #{forward.1} parent=1 // pred_region
      %47 = dma.done [#allocation3], 32
    $region17: #{forward.1} parent=1 // pred_fallthru
      _
    // Predicated region
    $region18: #{forward.1} parent=1 // pred_check
      _
    $region19: #{forward.1} parent=1 // pred_check_branch
      %49 = sbr.rel (0) target = $region21
    $region20: #{forward.1} parent=1 // pred_region
      %50 = dma.done [#allocation6], 19776
    $region21: #{forward.1} parent=1 // pred_fallthru
      _
    // Predicated region
    $region22: #{forward.1} parent=1 // pred_check
      _
    $region23: #{forward.1} parent=1 // pred_check_branch
      %52 = sbr.rel (0) target = $region25
    $region24: #{forward.1} parent=1 // pred_region
      %53 = dma.done [#allocation6], 9216
    $region25: #{forward.1} parent=1 // pred_fallthru
      _
    %v55 = vld [vmem:[#allocation7] sm:$0xff]
    %v56 = vld [vmem:[#allocation7 + $0x8] sm:$0x3f]
    %v57 = vld [vmem:[#allocation2] sm:$0x3]
    %vm58 = vcmask 15360
    %v60 = vsel %vm58, %v55, 0
    %v63 = vsel %vm58, %v56, 0
    %vm65 = vcmask 1041408
    %v67 = vsel %vm65, %v57, 0
    %69 = vmatprep.subr.mxu0 0.0
    %70 = vmatpush1.msra.mxu0 %v67
    %71 = vmatprep.subr.mxu0 0.0
    %72 = vmatpush1.msra.mxu0 0.0
    %73 = vmatprep.subr.mxu0 0.0
    %74 = vmatpush1.msra.mxu0 0.0
    %75 = vmatprep.subr.mxu0 0.0
    %76 = vmatpush1.msra.mxu0 0.0
    %77 = vmatprep.subr.mxu0 0.0
    %78 = vmatpush1.msra.mxu0 0.0
    %79 = vmatprep.subr.mxu0 0.0
    %80 = vmatpush1.msra.mxu0 0.0
    %81 = vmatprep.subr.mxu0 0.0
    %82 = vmatpush1.msra.mxu0 0.0
    %83 = vmatprep.subr.mxu0 0.0
    %84 = vmatpush1.msra.mxu0 0.0
    %85 = vmatprep.subr.mxu0 0.0
    %86 = vmatpush1.msra.mxu0 0.0
    %87 = vmatprep.subr.mxu0 0.0
    %88 = vmatpush1.msra.mxu0 0.0
    %89 = vmatprep.subr.mxu0 0.0
    %90 = vmatpush1.msra.mxu0 0.0
    %91 = vmatprep.subr.mxu0 0.0
    %92 = vmatpush1.msra.mxu0 0.0
    %93 = vmatprep.subr.mxu0 0.0
    %94 = vmatpush1.msra.mxu0 0.0
    %95 = vmatprep.subr.mxu0 0.0
    %96 = vmatpush1.msra.mxu0 0.0
    %97 = vmatprep.subr.mxu0 0.0
    %98 = vmatpush1.msra.mxu0 0.0
    %99 = vmatprep.subr.mxu0 0.0
    %100 = vmatpush1.msra.mxu0 0.0
    %101 = vmatprep.subr.mxu0 0.0
    %102 = vmatpush1.msra.mxu0 0.0
    %103 = vmatprep.subr.mxu0 0.0
    %104 = vmatpush1.msra.mxu0 0.0
    %105 = vmatprep.subr.mxu0 0.0
    %106 = vmatpush1.msra.mxu0 0.0
    %107 = vmatprep.subr.mxu0 0.0
    %108 = vmatpush1.msra.mxu0 0.0
    %109 = vmatprep.subr.mxu0 0.0
    %110 = vmatpush1.msra.mxu0 0.0
    %111 = vmatprep.subr.mxu0 0.0
    %112 = vmatpush1.msra.mxu0 0.0
    %113 = vmatprep.subr.mxu0 0.0
    %114 = vmatpush1.msra.mxu0 0.0
    %115 = vmatprep.subr.mxu0 0.0
    %116 = vmatpush1.msra.mxu0 0.0
    %117 = vmatprep.subr.mxu0 0.0
    %118 = vmatpush1.msra.mxu0 0.0
    %119 = vmatprep.subr.mxu0 0.0
    %120 = vmatpush1.msra.mxu0 0.0
    %121 = vmatprep.subr.mxu0 0.0
    %122 = vmatpush1.msra.mxu0 0.0
    %123 = vmatprep.subr.mxu0 0.0
    %124 = vmatpush1.msra.mxu0 0.0
    %125 = vmatprep.subr.mxu0 0.0
    %126 = vmatpush1.msra.mxu0 0.0
    %127 = vmatprep.subr.mxu0 0.0
    %128 = vmatpush1.msra.mxu0 0.0
    %129 = vmatprep.subr.mxu0 0.0
    %130 = vmatpush1.msra.mxu0 0.0
    %131 = vmatprep.subr.mxu0 0.0
    %132 = vmatpush1.msra.mxu0 0.0
    %133 = vmatprep.mubr.f32.mxu0 0.0
    %134 = vmatmul.mubr.f32.gmra.mrb[0].mxu0 %v60
    %v135 = vpop.f32.mrb[0].mxu0
    %v136 = vadd.f32 0.0, %v135
    %v137 = vpop.f32.mrb[0].mxu0
    %138 = vmatprep.mubr.f32.mxu0 0.0
    %139 = vmatmul.mubr.f32.gmra.mrb[0].mxu0 %v63
    %v140 = vpop.f32.mrb[0].mxu0
    %v141 = vadd.f32 0.0, %v140
    %v142 = vpop.f32.mrb[0].mxu0
    %143 = vdwg.mxu0
    %v144 = vpack.c.bf16 %v141, %v136
    %v145 = vld [vmem:[#allocation5] sm:$0xf]
    %v146 = vld [vmem:[#allocation7 + $0x10] sm:$0x1]
    %v147 = vlaneseq
    %v148 = vshrl.u32 %v147, 7
    %v149 = vsub.s32 0, %v148
    %v150 = vrot.slane %v146, %v149
    %vm151 = vcmask 64512
    %v153 = vsel %vm151, %v144, 0
    %vm155 = vcmask 1043456
    %v157 = vsel %vm155, %v145, 0
    %159 = vmatprep.subr.bf16.mxu0 0
    %160 = vmatpush1.bf16.msra.mxu0 %v157
    %161 = vmatprep.subr.bf16.mxu0 0
    %162 = vmatpush1.bf16.msra.mxu0 0
    %163 = vmatprep.subr.bf16.mxu0 0
    %164 = vmatpush1.bf16.msra.mxu0 0
    %165 = vmatprep.subr.bf16.mxu0 0
    %166 = vmatpush1.bf16.msra.mxu0 0
    %167 = vmatprep.subr.bf16.mxu0 0
    %168 = vmatpush1.bf16.msra.mxu0 0
    %169 = vmatprep.subr.bf16.mxu0 0
    %170 = vmatpush1.bf16.msra.mxu0 0
    %171 = vmatprep.subr.bf16.mxu0 0
    %172 = vmatpush1.bf16.msra.mxu0 0
    %173 = vmatprep.subr.bf16.mxu0 0
    %174 = vmatpush1.bf16.msra.mxu0 0
    %175 = vmatprep.subr.bf16.mxu0 0
    %176 = vmatpush1.bf16.msra.mxu0 0
    %177 = vmatprep.subr.bf16.mxu0 0
    %178 = vmatpush1.bf16.msra.mxu0 0
    %179 = vmatprep.subr.bf16.mxu0 0
    %180 = vmatpush1.bf16.msra.mxu0 0
    %181 = vmatprep.subr.bf16.mxu0 0
    %182 = vmatpush1.bf16.msra.mxu0 0
    %183 = vmatprep.subr.bf16.mxu0 0
    %184 = vmatpush1.bf16.msra.mxu0 0
    %185 = vmatprep.subr.bf16.mxu0 0
    %186 = vmatpush1.bf16.msra.mxu0 0
    %187 = vmatprep.subr.bf16.mxu0 0
    %188 = vmatpush1.bf16.msra.mxu0 0
    %189 = vmatprep.subr.bf16.mxu0 0
    %190 = vmatpush1.bf16.msra.mxu0 0
    %191 = vmatprep.mubr.bf16.mxu0 0
    %192 = vmatmul.mubr.bf16.gmra.mrb[0].mxu0 %v153
    %v193 = vpop.f32.mrb[0].mxu0
    %v194 = vadd.f32 %v150, %v193
    %v195 = vpop.f32.mrb[0].mxu0
    %v196 = vpop.f32.mrb[0].mxu0
    %v197 = vadd.f32 %v150, %v196
    %v198 = vpop.f32.mrb[0].mxu0
    %199 = vdwg.mxu0
    %v200 = vmul.f32 %v194, 0.2
    %v201 = vmul.f32 %v197, 0.2
    %v202 = vmax.f32 %v194, %v200
    %v203 = vmax.f32 %v197, %v201
    %v204 = vpack.c.bf16 %v203, %v202
    %v205 = vld [vmem:[#allocation5 + $0xc] sm:$0xf]
    %v206 = vld [vmem:[#allocation5 + $0x18] sm:$0xf]
    %v207 = vld [vmem:[#allocation5 + $0x24] sm:$0xf]
    %v208 = vld [vmem:[#allocation5 + $0x30] sm:$0xf]
    %v209 = vld [vmem:[#allocation5 + $0x3c] sm:$0xf]
    %v210 = vld [vmem:[#allocation5 + $0x48] sm:$0xf]
    %v211 = vld [vmem:[#allocation5 + $0x54] sm:$0xf]
    %v212 = vld [vmem:[#allocation5 + $0x60] sm:$0xf]
    %v213 = vld [vmem:[#allocation7 + $0x18] sm:$0x1]
    %v214 = vlaneseq
    %v215 = vshrl.u32 %v214, 7
    %v216 = vsub.s32 0, %v215
    %v217 = vrot.slane %v213, %v216
    %v226 = vunpack.c.l.b16 %v205
    %v227 = vunpack.c.l.b16 %v206
    %v228 = vunpack.c.l.b16 %v207
    %v229 = vunpack.c.l.b16 %v208
    %v230 = vunpack.c.l.b16 %v209
    %v231 = vunpack.c.l.b16 %v210
    %v232 = vunpack.c.l.b16 %v211
    %v233 = vunpack.c.l.b16 %v212
    %v234 = vpack.c.b16 %v227, %v226
    %v235 = vpack.c.b16 %v229, %v228
    %v236 = vpack.c.b16 %v231, %v230
    %v237 = vpack.c.b16 %v233, %v232
    %vm242 = vcmask 523264
    %v244 = vsel %vm242, %v204, 0
    %246 = vmatprep.subr.bf16.mxu0 0
    %247 = vmatpush1.bf16.msra.mxu0 %v234
    %248 = vmatprep.subr.bf16.mxu0 0
    %249 = vmatpush1.bf16.msra.mxu0 %v235
    %250 = vmatprep.subr.bf16.mxu0 0
    %251 = vmatpush1.bf16.msra.mxu0 %v236
    %252 = vmatprep.subr.bf16.mxu0 0
    %253 = vmatpush1.bf16.msra.mxu0 %v237
    %254 = vmatprep.subr.bf16.mxu0 0
    %255 = vmatpush1.bf16.msra.mxu0 0
    %256 = vmatprep.subr.bf16.mxu0 0
    %257 = vmatpush1.bf16.msra.mxu0 0
    %258 = vmatprep.subr.bf16.mxu0 0
    %259 = vmatpush1.bf16.msra.mxu0 0
    %260 = vmatprep.subr.bf16.mxu0 0
    %261 = vmatpush1.bf16.msra.mxu0 0
    %262 = vmatprep.subr.bf16.mxu0 0
    %263 = vmatpush1.bf16.msra.mxu0 0
    %264 = vmatprep.subr.bf16.mxu0 0
    %265 = vmatpush1.bf16.msra.mxu0 0
    %266 = vmatprep.subr.bf16.mxu0 0
    %267 = vmatpush1.bf16.msra.mxu0 0
    %268 = vmatprep.subr.bf16.mxu0 0
    %269 = vmatpush1.bf16.msra.mxu0 0
    %270 = vmatprep.subr.bf16.mxu0 0
    %271 = vmatpush1.bf16.msra.mxu0 0
    %272 = vmatprep.subr.bf16.mxu0 0
    %273 = vmatpush1.bf16.msra.mxu0 0
    %274 = vmatprep.subr.bf16.mxu0 0
    %275 = vmatpush1.bf16.msra.mxu0 0
    %276 = vmatprep.subr.bf16.mxu0 0
    %277 = vmatpush1.bf16.msra.mxu0 0
    %278 = vmatprep.mubr.bf16.mxu0 0
    %279 = vmatmul.mubr.bf16.gmra.mrb[0].mxu0 %v244
    %v280 = vpop.f32.mrb[0].mxu0
    %v281 = vadd.f32 %v217, %v280
    %v282 = vpop.f32.mrb[0].mxu0
    %v283 = vpop.f32.mrb[0].mxu0
    %v284 = vadd.f32 %v217, %v283
    %v285 = vpop.f32.mrb[0].mxu0
    %286 = vdwg.mxu0
    %v287 = vmul.f32 %v281, 0.2
    %v288 = vmul.f32 %v284, 0.2
    %v289 = vmax.f32 %v281, %v287
    %v290 = vmax.f32 %v284, %v288
    %v291 = vld [vmem:[#allocation7 + $0x20] sm:$0xff]
    %v292 = vld [vmem:[#allocation7 + $0x28] sm:$0x3f]
    %v293 = vmul.f32 %v289, %v291
    %v294 = vmul.f32 %v290, %v292
    %v295 = vpack.c.bf16 %v294, %v293
    %v296 = vld [vmem:[#allocation5 + $0x6c] sm:$0xf]
    %v297 = vld [vmem:[#allocation5 + $0x78] sm:$0xf]
    %v298 = vld [vmem:[#allocation5 + $0x84] sm:$0xf]
    %v299 = vld [vmem:[#allocation5 + $0x90] sm:$0xf]
    %v300 = vld [vmem:[#allocation5 + $0x9c] sm:$0xf]
    %v301 = vld [vmem:[#allocation5 + $0xa8] sm:$0xf]
    %v302 = vld [vmem:[#allocation5 + $0xb4] sm:$0xf]
    %v303 = vld [vmem:[#allocation5 + $0xc0] sm:$0xf]
    %v304 = vld [vmem:[#allocation5 + $0xcc] sm:$0xf]
    %v305 = vld [vmem:[#allocation5 + $0xd8] sm:$0xf]
    %v306 = vld [vmem:[#allocation5 + $0xe4] sm:$0xf]
    %v307 = vld [vmem:[#allocation5 + $0xf0] sm:$0xf]
    %v308 = vld [vmem:[#allocation5 + $0xfc] sm:$0xf]
    %v309 = vld [vmem:[#allocation5 + $0x108] sm:$0xf]
    %v310 = vld [vmem:[#allocation7 + $0x30] sm:$0xff]
    %v311 = vld [vmem:[#allocation7 + $0x38] sm:$0x3f]
    %v326 = vunpack.c.l.b16 %v296
    %v327 = vunpack.c.l.b16 %v297
    %v328 = vunpack.c.l.b16 %v298
    %v329 = vunpack.c.l.b16 %v299
    %v330 = vunpack.c.l.b16 %v300
    %v331 = vunpack.c.l.b16 %v301
    %v332 = vunpack.c.l.b16 %v302
    %v333 = vunpack.c.l.b16 %v303
    %v334 = vunpack.c.l.b16 %v304
    %v335 = vunpack.c.l.b16 %v305
    %v336 = vunpack.c.l.b16 %v306
    %v337 = vunpack.c.l.b16 %v307
    %v338 = vunpack.c.l.b16 %v308
    %v339 = vunpack.c.l.b16 %v309
    %v340 = vpack.c.b16 %v327, %v326
    %v341 = vpack.c.b16 %v329, %v328
    %v342 = vpack.c.b16 %v331, %v330
    %v343 = vpack.c.b16 %v333, %v332
    %v344 = vpack.c.b16 %v335, %v334
    %v345 = vpack.c.b16 %v337, %v336
    %v346 = vpack.c.b16 %v339, %v338
    %vm354 = vcmask 916480
    %v356 = vsel %vm354, %v295, 0
    %358 = vmatprep.subr.bf16.mxu0 0
    %359 = vmatpush1.bf16.msra.mxu0 %v340
    %360 = vmatprep.subr.bf16.mxu0 0
    %361 = vmatpush1.bf16.msra.mxu0 %v341
    %362 = vmatprep.subr.bf16.mxu0 0
    %363 = vmatpush1.bf16.msra.mxu0 %v342
    %364 = vmatprep.subr.bf16.mxu0 0
    %365 = vmatpush1.bf16.msra.mxu0 %v343
    %366 = vmatprep.subr.bf16.mxu0 0
    %367 = vmatpush1.bf16.msra.mxu0 %v344
    %368 = vmatprep.subr.bf16.mxu0 0
    %369 = vmatpush1.bf16.msra.mxu0 %v345
    %370 = vmatprep.subr.bf16.mxu0 0
    %371 = vmatpush1.bf16.msra.mxu0 %v346
    %372 = vmatprep.subr.bf16.mxu0 0
    %373 = vmatpush1.bf16.msra.mxu0 0
    %374 = vmatprep.subr.bf16.mxu0 0
    %375 = vmatpush1.bf16.msra.mxu0 0
    %376 = vmatprep.subr.bf16.mxu0 0
    %377 = vmatpush1.bf16.msra.mxu0 0
    %378 = vmatprep.subr.bf16.mxu0 0
    %379 = vmatpush1.bf16.msra.mxu0 0
    %380 = vmatprep.subr.bf16.mxu0 0
    %381 = vmatpush1.bf16.msra.mxu0 0
    %382 = vmatprep.subr.bf16.mxu0 0
    %383 = vmatpush1.bf16.msra.mxu0 0
    %384 = vmatprep.subr.bf16.mxu0 0
    %385 = vmatpush1.bf16.msra.mxu0 0
    %386 = vmatprep.subr.bf16.mxu0 0
    %387 = vmatpush1.bf16.msra.mxu0 0
    %388 = vmatprep.subr.bf16.mxu0 0
    %389 = vmatpush1.bf16.msra.mxu0 0
    %390 = vmatprep.mubr.bf16.mxu0 0
    %391 = vmatmul.mubr.bf16.gmra.mrb[0].mxu0 %v356
    %v392 = vpop.f32.mrb[0].mxu0
    %v393 = vadd.f32 %v310, %v392
    %v394 = vpop.f32.mrb[0].mxu0
    %v395 = vpop.f32.mrb[0].mxu0
    %v396 = vadd.f32 %v311, %v395
    %v397 = vpop.f32.mrb[0].mxu0
    %398 = vdwg.mxu0
    %v399 = vmul.f32 %v393, 0.2
    %v400 = vmul.f32 %v396, 0.2
    %v401 = vmax.f32 %v393, %v399
    %v402 = vmax.f32 %v396, %v400
    %v403 = vpack.c.bf16 %v402, %v401
    %v404 = vld [vmem:[#allocation5 + $0x114] sm:$0xff]
    %v405 = vld [vmem:[#allocation5 + $0x11c] sm:$0xf]
    %v406 = vld [vmem:[#allocation5 + $0x120] sm:$0xff]
    %v407 = vld [vmem:[#allocation5 + $0x128] sm:$0xf]
    %v408 = vld [vmem:[#allocation5 + $0x12c] sm:$0xff]
    %v409 = vld [vmem:[#allocation5 + $0x134] sm:$0xf]
    %v410 = vld [vmem:[#allocation5 + $0x138] sm:$0xff]
    %v411 = vld [vmem:[#allocation5 + $0x140] sm:$0xf]
    %v412 = vld [vmem:[#allocation5 + $0x144] sm:$0xff]
    %v413 = vld [vmem:[#allocation5 + $0x14c] sm:$0xf]
    %v414 = vld [vmem:[#allocation5 + $0x150] sm:$0xff]
    %v415 = vld [vmem:[#allocation5 + $0x158] sm:$0xf]
    %v416 = vld [vmem:[#allocation5 + $0x15c] sm:$0xff]
    %v417 = vld [vmem:[#allocation5 + $0x164] sm:$0xf]
    %v418 = vld [vmem:[#allocation5 + $0x168] sm:$0xff]
    %v419 = vld [vmem:[#allocation5 + $0x170] sm:$0xf]
    %v420 = vld [vmem:[#allocation5 + $0x174] sm:$0xff]
    %v421 = vld [vmem:[#allocation5 + $0x17c] sm:$0xf]
    %v422 = vld [vmem:[#allocation5 + $0x180] sm:$0xff]
    %v423 = vld [vmem:[#allocation5 + $0x188] sm:$0xf]
    %v424 = vld [vmem:[#allocation5 + $0x18c] sm:$0xff]
    %v425 = vld [vmem:[#allocation5 + $0x194] sm:$0xf]
    %v426 = vld [vmem:[#allocation5 + $0x198] sm:$0xff]
    %v427 = vld [vmem:[#allocation5 + $0x1a0] sm:$0xf]
    %v428 = vld [vmem:[#allocation5 + $0x1a4] sm:$0xff]
    %v429 = vld [vmem:[#allocation5 + $0x1ac] sm:$0xf]
    %v430 = vld [vmem:[#allocation5 + $0x1b0] sm:$0xff]
    %v431 = vld [vmem:[#allocation5 + $0x1b8] sm:$0xf]
    %v432 = vld [vmem:[#allocation5 + $0x1bc] sm:$0xff]
    %v433 = vld [vmem:[#allocation5 + $0x1c4] sm:$0xf]
    %v434 = vld [vmem:[#allocation5 + $0x1c8] sm:$0xff]
    %v435 = vld [vmem:[#allocation5 + $0x1d0] sm:$0xf]
    %v468 = vunpack.c.l.b16 %v404
    %v469 = vunpack.c.h.b16 %v404
    %v470 = vunpack.c.l.b16 %v405
    %v471 = vunpack.c.l.b16 %v406
    %v472 = vunpack.c.h.b16 %v406
    %v473 = vunpack.c.l.b16 %v407
    %v474 = vunpack.c.l.b16 %v408
    %v475 = vunpack.c.h.b16 %v408
    %v476 = vunpack.c.l.b16 %v409
    %v477 = vunpack.c.l.b16 %v410
    %v478 = vunpack.c.h.b16 %v410
    %v479 = vunpack.c.l.b16 %v411
    %v480 = vunpack.c.l.b16 %v412
    %v481 = vunpack.c.h.b16 %v412
    %v482 = vunpack.c.l.b16 %v413
    %v483 = vunpack.c.l.b16 %v414
    %v484 = vunpack.c.h.b16 %v414
    %v485 = vunpack.c.l.b16 %v415
    %v486 = vunpack.c.l.b16 %v416
    %v487 = vunpack.c.h.b16 %v416
    %v488 = vunpack.c.l.b16 %v417
    %v489 = vunpack.c.l.b16 %v418
    %v490 = vunpack.c.h.b16 %v418
    %v491 = vunpack.c.l.b16 %v419
    %v492 = vunpack.c.l.b16 %v420
    %v493 = vunpack.c.h.b16 %v420
    %v494 = vunpack.c.l.b16 %v421
    %v495 = vunpack.c.l.b16 %v422
    %v496 = vunpack.c.h.b16 %v422
    %v497 = vunpack.c.l.b16 %v423
    %v498 = vunpack.c.l.b16 %v424
    %v499 = vunpack.c.h.b16 %v424
    %v500 = vunpack.c.l.b16 %v425
    %v501 = vunpack.c.l.b16 %v426
    %v502 = vunpack.c.h.b16 %v426
    %v503 = vunpack.c.l.b16 %v427
    %v504 = vunpack.c.l.b16 %v428
    %v505 = vunpack.c.h.b16 %v428
    %v506 = vunpack.c.l.b16 %v429
    %v507 = vunpack.c.l.b16 %v430
    %v508 = vunpack.c.h.b16 %v430
    %v509 = vunpack.c.l.b16 %v431
    %v510 = vunpack.c.l.b16 %v432
    %v511 = vunpack.c.h.b16 %v432
    %v512 = vunpack.c.l.b16 %v433
    %v513 = vunpack.c.l.b16 %v434
    %v514 = vunpack.c.h.b16 %v434
    %v515 = vunpack.c.l.b16 %v435
    %v516 = vpack.c.b16 %v471, %v468
    %v517 = vpack.c.b16 %v472, %v469
    %v518 = vpack.c.b16 %v473, %v470
    %v519 = vpack.c.b16 %v477, %v474
    %v520 = vpack.c.b16 %v478, %v475
    %v521 = vpack.c.b16 %v479, %v476
    %v522 = vpack.c.b16 %v483, %v480
    %v523 = vpack.c.b16 %v484, %v481
    %v524 = vpack.c.b16 %v485, %v482
    %v525 = vpack.c.b16 %v489, %v486
    %v526 = vpack.c.b16 %v490, %v487
    %v527 = vpack.c.b16 %v491, %v488
    %v528 = vpack.c.b16 %v495, %v492
    %v529 = vpack.c.b16 %v496, %v493
    %v530 = vpack.c.b16 %v497, %v494
    %v531 = vpack.c.b16 %v501, %v498
    %v532 = vpack.c.b16 %v502, %v499
    %v533 = vpack.c.b16 %v503, %v500
    %v534 = vpack.c.b16 %v507, %v504
    %v535 = vpack.c.b16 %v508, %v505
    %v536 = vpack.c.b16 %v509, %v506
    %v537 = vpack.c.b16 %v513, %v510
    %v538 = vpack.c.b16 %v514, %v511
    %v539 = vpack.c.b16 %v515, %v512
    %564 = vmatprep.subr.bf16.mxu0 %v517
    %565 = vmatpush1.bf16.msra.mxu0 %v516
    %566 = vmatprep.subr.bf16.mxu0 %v520
    %567 = vmatpush1.bf16.msra.mxu0 %v519
    %568 = vmatprep.subr.bf16.mxu0 %v523
    %569 = vmatpush1.bf16.msra.mxu0 %v522
    %570 = vmatprep.subr.bf16.mxu0 %v526
    %571 = vmatpush1.bf16.msra.mxu0 %v525
    %572 = vmatprep.subr.bf16.mxu0 %v529
    %573 = vmatpush1.bf16.msra.mxu0 %v528
    %574 = vmatprep.subr.bf16.mxu0 %v532
    %575 = vmatpush1.bf16.msra.mxu0 %v531
    %576 = vmatprep.subr.bf16.mxu0 %v535
    %577 = vmatpush1.bf16.msra.mxu0 %v534
    %578 = vmatprep.subr.bf16.mxu0 %v538
    %579 = vmatpush1.bf16.msra.mxu0 %v537
    %580 = vmatprep.subr.bf16.mxu0 0
    %581 = vmatpush1.bf16.msra.mxu0 0
    %582 = vmatprep.subr.bf16.mxu0 0
    %583 = vmatpush1.bf16.msra.mxu0 0
    %584 = vmatprep.subr.bf16.mxu0 0
    %585 = vmatpush1.bf16.msra.mxu0 0
    %586 = vmatprep.subr.bf16.mxu0 0
    %587 = vmatpush1.bf16.msra.mxu0 0
    %588 = vmatprep.subr.bf16.mxu0 0
    %589 = vmatpush1.bf16.msra.mxu0 0
    %590 = vmatprep.subr.bf16.mxu0 0
    %591 = vmatpush1.bf16.msra.mxu0 0
    %592 = vmatprep.subr.bf16.mxu0 0
    %593 = vmatpush1.bf16.msra.mxu0 0
    %594 = vmatprep.subr.bf16.mxu0 0
    %595 = vmatpush1.bf16.msra.mxu0 0
    %596 = vmatprep.mubr.bf16.mxu0 0
    %597 = vmatmul.mubr.bf16.gmra.mrb[0].mxu0 %v403
    %v598 = vpop.f32.mrb[0].mxu0
    %v599 = vadd.f32 0.0, %v598
    %v600 = vpop.f32.mrb[0].mxu0
    %v601 = vadd.f32 0.0, %v600
    %v602 = vpop.f32.mrb[0].mxu0
    %v603 = vadd.f32 0.0, %v602
    %v604 = vpop.f32.mrb[0].mxu0
    %v605 = vadd.f32 0.0, %v604
    %606 = vdwg.mxu0
    %607 = vmatprep.subr.bf16.mxu0 0
    %608 = vmatpush1.bf16.msra.mxu0 %v518
    %609 = vmatprep.subr.bf16.mxu0 0
    %610 = vmatpush1.bf16.msra.mxu0 %v521
    %611 = vmatprep.subr.bf16.mxu0 0
    %612 = vmatpush1.bf16.msra.mxu0 %v524
    %613 = vmatprep.subr.bf16.mxu0 0
    %614 = vmatpush1.bf16.msra.mxu0 %v527
    %615 = vmatprep.subr.bf16.mxu0 0
    %616 = vmatpush1.bf16.msra.mxu0 %v530
    %617 = vmatprep.subr.bf16.mxu0 0
    %618 = vmatpush1.bf16.msra.mxu0 %v533
    %619 = vmatprep.subr.bf16.mxu0 0
    %620 = vmatpush1.bf16.msra.mxu0 %v536
    %621 = vmatprep.subr.bf16.mxu0 0
    %622 = vmatpush1.bf16.msra.mxu0 %v539
    %623 = vmatprep.subr.bf16.mxu0 0
    %624 = vmatpush1.bf16.msra.mxu0 0
    %625 = vmatprep.subr.bf16.mxu0 0
    %626 = vmatpush1.bf16.msra.mxu0 0
    %627 = vmatprep.subr.bf16.mxu0 0
    %628 = vmatpush1.bf16.msra.mxu0 0
    %629 = vmatprep.subr.bf16.mxu0 0
    %630 = vmatpush1.bf16.msra.mxu0 0
    %631 = vmatprep.subr.bf16.mxu0 0
    %632 = vmatpush1.bf16.msra.mxu0 0
    %633 = vmatprep.subr.bf16.mxu0 0
    %634 = vmatpush1.bf16.msra.mxu0 0
    %635 = vmatprep.subr.bf16.mxu0 0
    %636 = vmatpush1.bf16.msra.mxu0 0
    %637 = vmatprep.subr.bf16.mxu0 0
    %638 = vmatpush1.bf16.msra.mxu0 0
    %639 = vmatprep.mubr.bf16.mxu0 0
    %640 = vmatmul.mubr.bf16.gmra.mrb[0].mxu0 %v403
    %v641 = vpop.f32.mrb[0].mxu0
    %v642 = vadd.f32 0.0, %v641
    %v643 = vpop.f32.mrb[0].mxu0
    %v644 = vpop.f32.mrb[0].mxu0
    %v645 = vadd.f32 0.0, %v644
    %v646 = vpop.f32.mrb[0].mxu0
    %647 = vdwg.mxu0
    %v648 = vld [vmem:[#allocation7 + $0x40] sm:$0x1]
    %v649 = vlaneseq
    %v650 = vshrl.u32 %v649, 7
    %v651 = vsub.s32 0, %v650
    %v652 = vrot.slane %v648, %v651
    %v653 = vadd.f32 %v652, %v601
    %v654 = vadd.f32 %v652, %v605
    %v655 = vld [vmem:[#allocation7 + $0x48] sm:$0xff]
    %v656 = vld [vmem:[#allocation7 + $0x50] sm:$0x3f]
    %vm657 = vcmask 113664
    %v659 = vsel %vm657, %v655, 0
    %v662 = vsel %vm657, %v656, 0
    %vm664 = vcmask 1045504
    %v666 = vsel %vm664, %v603, 0
    %668 = vmatprep.subr.mxu0 0.0
    %669 = vmatpush1.msra.mxu0 %v599
    %670 = vmatprep.subr.mxu0 0.0
    %671 = vmatpush1.msra.mxu0 %v666
    %672 = vmatprep.subr.mxu0 0.0
    %673 = vmatpush1.msra.mxu0 0.0
    %674 = vmatprep.subr.mxu0 0.0
    %675 = vmatpush1.msra.mxu0 0.0
    %676 = vmatprep.subr.mxu0 0.0
    %677 = vmatpush1.msra.mxu0 0.0
    %678 = vmatprep.subr.mxu0 0.0
    %679 = vmatpush1.msra.mxu0 0.0
    %680 = vmatprep.subr.mxu0 0.0
    %681 = vmatpush1.msra.mxu0 0.0
    %682 = vmatprep.subr.mxu0 0.0
    %683 = vmatpush1.msra.mxu0 0.0
    %684 = vmatprep.subr.mxu0 0.0
    %685 = vmatpush1.msra.mxu0 0.0
    %686 = vmatprep.subr.mxu0 0.0
    %687 = vmatpush1.msra.mxu0 0.0
    %688 = vmatprep.subr.mxu0 0.0
    %689 = vmatpush1.msra.mxu0 0.0
    %690 = vmatprep.subr.mxu0 0.0
    %691 = vmatpush1.msra.mxu0 0.0
    %692 = vmatprep.subr.mxu0 0.0
    %693 = vmatpush1.msra.mxu0 0.0
    %694 = vmatprep.subr.mxu0 0.0
    %695 = vmatpush1.msra.mxu0 0.0
    %696 = vmatprep.subr.mxu0 0.0
    %697 = vmatpush1.msra.mxu0 0.0
    %698 = vmatprep.subr.mxu0 0.0
    %699 = vmatpush1.msra.mxu0 0.0
    %700 = vmatprep.subr.mxu0 0.0
    %701 = vmatpush1.msra.mxu0 0.0
    %702 = vmatprep.subr.mxu0 0.0
    %703 = vmatpush1.msra.mxu0 0.0
    %704 = vmatprep.subr.mxu0 0.0
    %705 = vmatpush1.msra.mxu0 0.0
    %706 = vmatprep.subr.mxu0 0.0
    %707 = vmatpush1.msra.mxu0 0.0
    %708 = vmatprep.subr.mxu0 0.0
    %709 = vmatpush1.msra.mxu0 0.0
    %710 = vmatprep.subr.mxu0 0.0
    %711 = vmatpush1.msra.mxu0 0.0
    %712 = vmatprep.subr.mxu0 0.0
    %713 = vmatpush1.msra.mxu0 0.0
    %714 = vmatprep.subr.mxu0 0.0
    %715 = vmatpush1.msra.mxu0 0.0
    %716 = vmatprep.subr.mxu0 0.0
    %717 = vmatpush1.msra.mxu0 0.0
    %718 = vmatprep.subr.mxu0 0.0
    %719 = vmatpush1.msra.mxu0 0.0
    %720 = vmatprep.subr.mxu0 0.0
    %721 = vmatpush1.msra.mxu0 0.0
    %722 = vmatprep.subr.mxu0 0.0
    %723 = vmatpush1.msra.mxu0 0.0
    %724 = vmatprep.subr.mxu0 0.0
    %725 = vmatpush1.msra.mxu0 0.0
    %726 = vmatprep.subr.mxu0 0.0
    %727 = vmatpush1.msra.mxu0 0.0
    %728 = vmatprep.subr.mxu0 0.0
    %729 = vmatpush1.msra.mxu0 0.0
    %730 = vmatprep.subr.mxu0 0.0
    %731 = vmatpush1.msra.mxu0 0.0
    %732 = vmatprep.mubr.f32.mxu0 0.0
    %733 = vmatmul.mubr.f32.gmra.mrb[0].mxu0 %v659
    %v734 = vpop.f32.mrb[0].mxu0
    %v735 = vadd.f32 0.0, %v734
    %v736 = vpop.f32.mrb[0].mxu0
    %737 = vmatprep.mubr.f32.mxu0 0.0
    %738 = vmatmul.mubr.f32.gmra.mrb[0].mxu0 %v662
    %v739 = vpop.f32.mrb[0].mxu0
    %v740 = vadd.f32 0.0, %v739
    %v741 = vpop.f32.mrb[0].mxu0
    %742 = vdwg.mxu0
    %v743 = vadd.f32 %v653, %v735
    %v744 = vadd.f32 %v654, %v740
    %v745 = vld [vmem:[#allocation7 + $0x58] sm:$0xff]
    %v746 = vld [vmem:[#allocation7 + $0x60] sm:$0x3f]
    %v748 = vsel %vm657, %v745, 0
    %v751 = vsel %vm657, %v746, 0
    %v754 = vsel %vm664, %v645, 0
    %756 = vmatprep.subr.mxu0 0.0
    %757 = vmatpush1.msra.mxu0 %v642
    %758 = vmatprep.subr.mxu0 0.0
    %759 = vmatpush1.msra.mxu0 %v754
    %760 = vmatprep.subr.mxu0 0.0
    %761 = vmatpush1.msra.mxu0 0.0
    %762 = vmatprep.subr.mxu0 0.0
    %763 = vmatpush1.msra.mxu0 0.0
    %764 = vmatprep.subr.mxu0 0.0
    %765 = vmatpush1.msra.mxu0 0.0
    %766 = vmatprep.subr.mxu0 0.0
    %767 = vmatpush1.msra.mxu0 0.0
    %768 = vmatprep.subr.mxu0 0.0
    %769 = vmatpush1.msra.mxu0 0.0
    %770 = vmatprep.subr.mxu0 0.0
    %771 = vmatpush1.msra.mxu0 0.0
    %772 = vmatprep.subr.mxu0 0.0
    %773 = vmatpush1.msra.mxu0 0.0
    %774 = vmatprep.subr.mxu0 0.0
    %775 = vmatpush1.msra.mxu0 0.0
    %776 = vmatprep.subr.mxu0 0.0
    %777 = vmatpush1.msra.mxu0 0.0
    %778 = vmatprep.subr.mxu0 0.0
    %779 = vmatpush1.msra.mxu0 0.0
    %780 = vmatprep.subr.mxu0 0.0
    %781 = vmatpush1.msra.mxu0 0.0
    %782 = vmatprep.subr.mxu0 0.0
    %783 = vmatpush1.msra.mxu0 0.0
    %784 = vmatprep.subr.mxu0 0.0
    %785 = vmatpush1.msra.mxu0 0.0
    %786 = vmatprep.subr.mxu0 0.0
    %787 = vmatpush1.msra.mxu0 0.0
    %788 = vmatprep.subr.mxu0 0.0
    %789 = vmatpush1.msra.mxu0 0.0
    %790 = vmatprep.subr.mxu0 0.0
    %791 = vmatpush1.msra.mxu0 0.0
    %792 = vmatprep.subr.mxu0 0.0
    %793 = vmatpush1.msra.mxu0 0.0
    %794 = vmatprep.subr.mxu0 0.0
    %795 = vmatpush1.msra.mxu0 0.0
    %796 = vmatprep.subr.mxu0 0.0
    %797 = vmatpush1.msra.mxu0 0.0
    %798 = vmatprep.subr.mxu0 0.0
    %799 = vmatpush1.msra.mxu0 0.0
    %800 = vmatprep.subr.mxu0 0.0
    %801 = vmatpush1.msra.mxu0 0.0
    %802 = vmatprep.subr.mxu0 0.0
    %803 = vmatpush1.msra.mxu0 0.0
    %804 = vmatprep.subr.mxu0 0.0
    %805 = vmatpush1.msra.mxu0 0.0
    %806 = vmatprep.subr.mxu0 0.0
    %807 = vmatpush1.msra.mxu0 0.0
    %808 = vmatprep.subr.mxu0 0.0
    %809 = vmatpush1.msra.mxu0 0.0
    %810 = vmatprep.subr.mxu0 0.0
    %811 = vmatpush1.msra.mxu0 0.0
    %812 = vmatprep.subr.mxu0 0.0
    %813 = vmatpush1.msra.mxu0 0.0
    %814 = vmatprep.subr.mxu0 0.0
    %815 = vmatpush1.msra.mxu0 0.0
    %816 = vmatprep.subr.mxu0 0.0
    %817 = vmatpush1.msra.mxu0 0.0
    %818 = vmatprep.subr.mxu0 0.0
    %819 = vmatpush1.msra.mxu0 0.0
    %820 = vmatprep.mubr.f32.mxu0 0.0
    %821 = vmatmul.mubr.f32.gmra.mrb[0].mxu0 %v748
    %v822 = vpop.f32.mrb[0].mxu0
    %v823 = vadd.f32 0.0, %v822
    %v824 = vpop.f32.mrb[0].mxu0
    %825 = vmatprep.mubr.f32.mxu0 0.0
    %826 = vmatmul.mubr.f32.gmra.mrb[0].mxu0 %v751
    %v827 = vpop.f32.mrb[0].mxu0
    %v828 = vadd.f32 0.0, %v827
    %v829 = vpop.f32.mrb[0].mxu0
    %830 = vdwg.mxu0
    %v831 = vadd.f32 %v743, %v823
    %v832 = vadd.f32 %v744, %v828
    %v833 = vmul.f32 %v831, 0.2
    %v834 = vmul.f32 %v832, 0.2
    %v835 = vmax.f32 %v831, %v833
    %v836 = vmax.f32 %v832, %v834
    %v837 = vpack.c.bf16 %v836, %v835
    %v838 = vld [vmem:[#allocation5 + $0x1d4] sm:$0xff]
    %v839 = vld [vmem:[#allocation5 + $0x1dc] sm:$0xf]
    %v840 = vld [vmem:[#allocation5 + $0x1e0] sm:$0xff]
    %v841 = vld [vmem:[#allocation5 + $0x1e8] sm:$0xf]
    %v842 = vld [vmem:[#allocation5 + $0x1ec] sm:$0xff]
    %v843 = vld [vmem:[#allocation5 + $0x1f4] sm:$0xf]
    %v844 = vld [vmem:[#allocation5 + $0x1f8] sm:$0xff]
    %v845 = vld [vmem:[#allocation5 + $0x200] sm:$0xf]
    %v846 = vld [vmem:[#allocation5 + $0x204] sm:$0xff]
    %v847 = vld [vmem:[#allocation5 + $0x20c] sm:$0xf]
    %v848 = vld [vmem:[#allocation5 + $0x210] sm:$0xff]
    %v849 = vld [vmem:[#allocation5 + $0x218] sm:$0xf]
    %v850 = vld [vmem:[#allocation5 + $0x21c] sm:$0xff]
    %v851 = vld [vmem:[#allocation5 + $0x224] sm:$0xf]
    %v852 = vld [vmem:[#allocation5 + $0x228] sm:$0xff]
    %v853 = vld [vmem:[#allocation5 + $0x230] sm:$0xf]
    %v854 = vld [vmem:[#allocation5 + $0x234] sm:$0xff]
    %v855 = vld [vmem:[#allocation5 + $0x23c] sm:$0xf]
    %v856 = vld [vmem:[#allocation5 + $0x240] sm:$0xff]
    %v857 = vld [vmem:[#allocation5 + $0x248] sm:$0xf]
    %v858 = vld [vmem:[#allocation5 + $0x24c] sm:$0xff]
    %v859 = vld [vmem:[#allocation5 + $0x254] sm:$0xf]
    %v860 = vld [vmem:[#allocation5 + $0x258] sm:$0xff]
    %v861 = vld [vmem:[#allocation5 + $0x260] sm:$0xf]
    %v862 = vld [vmem:[#allocation5 + $0x264] sm:$0xff]
    %v863 = vld [vmem:[#allocation5 + $0x26c] sm:$0xf]
    %v864 = vld [vmem:[#allocation5 + $0x270] sm:$0xff]
    %v865 = vld [vmem:[#allocation5 + $0x278] sm:$0xf]
    %v866 = vld [vmem:[#allocation5 + $0x27c] sm:$0xff]
    %v867 = vld [vmem:[#allocation5 + $0x284] sm:$0xf]
    %v868 = vld [vmem:[#allocation5 + $0x288] sm:$0xff]
    %v869 = vld [vmem:[#allocation5 + $0x290] sm:$0xf]
    %v902 = vunpack.c.l.b16 %v838
    %v903 = vunpack.c.h.b16 %v838
    %v904 = vunpack.c.l.b16 %v839
    %v905 = vunpack.c.l.b16 %v840
    %v906 = vunpack.c.h.b16 %v840
    %v907 = vunpack.c.l.b16 %v841
    %v908 = vunpack.c.l.b16 %v842
    %v909 = vunpack.c.h.b16 %v842
    %v910 = vunpack.c.l.b16 %v843
    %v911 = vunpack.c.l.b16 %v844
    %v912 = vunpack.c.h.b16 %v844
    %v913 = vunpack.c.l.b16 %v845
    %v914 = vunpack.c.l.b16 %v846
    %v915 = vunpack.c.h.b16 %v846
    %v916 = vunpack.c.l.b16 %v847
    %v917 = vunpack.c.l.b16 %v848
    %v918 = vunpack.c.h.b16 %v848
    %v919 = vunpack.c.l.b16 %v849
    %v920 = vunpack.c.l.b16 %v850
    %v921 = vunpack.c.h.b16 %v850
    %v922 = vunpack.c.l.b16 %v851
    %v923 = vunpack.c.l.b16 %v852
    %v924 = vunpack.c.h.b16 %v852
    %v925 = vunpack.c.l.b16 %v853
    %v926 = vunpack.c.l.b16 %v854
    %v927 = vunpack.c.h.b16 %v854
    %v928 = vunpack.c.l.b16 %v855
    %v929 = vunpack.c.l.b16 %v856
    %v930 = vunpack.c.h.b16 %v856
    %v931 = vunpack.c.l.b16 %v857
    %v932 = vunpack.c.l.b16 %v858
    %v933 = vunpack.c.h.b16 %v858
    %v934 = vunpack.c.l.b16 %v859
    %v935 = vunpack.c.l.b16 %v860
    %v936 = vunpack.c.h.b16 %v860
    %v937 = vunpack.c.l.b16 %v861
    %v938 = vunpack.c.l.b16 %v862
    %v939 = vunpack.c.h.b16 %v862
    %v940 = vunpack.c.l.b16 %v863
    %v941 = vunpack.c.l.b16 %v864
    %v942 = vunpack.c.h.b16 %v864
    %v943 = vunpack.c.l.b16 %v865
    %v944 = vunpack.c.l.b16 %v866
    %v945 = vunpack.c.h.b16 %v866
    %v946 = vunpack.c.l.b16 %v867
    %v947 = vunpack.c.l.b16 %v868
    %v948 = vunpack.c.h.b16 %v868
    %v949 = vunpack.c.l.b16 %v869
    %v950 = vpack.c.b16 %v905, %v902
    %v951 = vpack.c.b16 %v906, %v903
    %v952 = vpack.c.b16 %v907, %v904
    %v953 = vpack.c.b16 %v911, %v908
    %v954 = vpack.c.b16 %v912, %v909
    %v955 = vpack.c.b16 %v913, %v910
    %v956 = vpack.c.b16 %v917, %v914
    %v957 = vpack.c.b16 %v918, %v915
    %v958 = vpack.c.b16 %v919, %v916
    %v959 = vpack.c.b16 %v923, %v920
    %v960 = vpack.c.b16 %v924, %v921
    %v961 = vpack.c.b16 %v925, %v922
    %v962 = vpack.c.b16 %v929, %v926
    %v963 = vpack.c.b16 %v930, %v927
    %v964 = vpack.c.b16 %v931, %v928
    %v965 = vpack.c.b16 %v935, %v932
    %v966 = vpack.c.b16 %v936, %v933
    %v967 = vpack.c.b16 %v937, %v934
    %v968 = vpack.c.b16 %v941, %v938
    %v969 = vpack.c.b16 %v942, %v939
    %v970 = vpack.c.b16 %v943, %v940
    %v971 = vpack.c.b16 %v947, %v944
    %v972 = vpack.c.b16 %v948, %v945
    %v973 = vpack.c.b16 %v949, %v946
    %998 = vmatprep.subr.bf16.mxu0 %v951
    %999 = vmatpush1.bf16.msra.mxu0 %v950
    %1000 = vmatprep.subr.bf16.mxu0 %v954
    %1001 = vmatpush1.bf16.msra.mxu0 %v953
    %1002 = vmatprep.subr.bf16.mxu0 %v957
    %1003 = vmatpush1.bf16.msra.mxu0 %v956
    %1004 = vmatprep.subr.bf16.mxu0 %v960
    %1005 = vmatpush1.bf16.msra.mxu0 %v959
    %1006 = vmatprep.subr.bf16.mxu0 %v963
    %1007 = vmatpush1.bf16.msra.mxu0 %v962
    %1008 = vmatprep.subr.bf16.mxu0 %v966
    %1009 = vmatpush1.bf16.msra.mxu0 %v965
    %1010 = vmatprep.subr.bf16.mxu0 %v969
    %1011 = vmatpush1.bf16.msra.mxu0 %v968
    %1012 = vmatprep.subr.bf16.mxu0 %v972
    %1013 = vmatpush1.bf16.msra.mxu0 %v971
    %1014 = vmatprep.subr.bf16.mxu0 0
    %1015 = vmatpush1.bf16.msra.mxu0 0
    %1016 = vmatprep.subr.bf16.mxu0 0
    %1017 = vmatpush1.bf16.msra.mxu0 0
    %1018 = vmatprep.subr.bf16.mxu0 0
    %1019 = vmatpush1.bf16.msra.mxu0 0
    %1020 = vmatprep.subr.bf16.mxu0 0
    %1021 = vmatpush1.bf16.msra.mxu0 0
    %1022 = vmatprep.subr.bf16.mxu0 0
    %1023 = vmatpush1.bf16.msra.mxu0 0
    %1024 = vmatprep.subr.bf16.mxu0 0
    %1025 = vmatpush1.bf16.msra.mxu0 0
    %1026 = vmatprep.subr.bf16.mxu0 0
    %1027 = vmatpush1.bf16.msra.mxu0 0
    %1028 = vmatprep.subr.bf16.mxu0 0
    %1029 = vmatpush1.bf16.msra.mxu0 0
    %1030 = vmatprep.mubr.bf16.mxu0 0
    %1031 = vmatmul.mubr.bf16.gmra.mrb[0].mxu0 %v837
    %v1032 = vpop.f32.mrb[0].mxu0
    %v1033 = vadd.f32 0.0, %v1032
    %v1034 = vpop.f32.mrb[0].mxu0
    %v1035 = vadd.f32 0.0, %v1034
    %v1036 = vpop.f32.mrb[0].mxu0
    %v1037 = vadd.f32 0.0, %v1036
    %v1038 = vpop.f32.mrb[0].mxu0
    %v1039 = vadd.f32 0.0, %v1038
    %1040 = vdwg.mxu0
    %1041 = vmatprep.subr.bf16.mxu0 0
    %1042 = vmatpush1.bf16.msra.mxu0 %v952
    %1043 = vmatprep.subr.bf16.mxu0 0
    %1044 = vmatpush1.bf16.msra.mxu0 %v955
    %1045 = vmatprep.subr.bf16.mxu0 0
    %1046 = vmatpush1.bf16.msra.mxu0 %v958
    %1047 = vmatprep.subr.bf16.mxu0 0
    %1048 = vmatpush1.bf16.msra.mxu0 %v961
    %1049 = vmatprep.subr.bf16.mxu0 0
    %1050 = vmatpush1.bf16.msra.mxu0 %v964
    %1051 = vmatprep.subr.bf16.mxu0 0
    %1052 = vmatpush1.bf16.msra.mxu0 %v967
    %1053 = vmatprep.subr.bf16.mxu0 0
    %1054 = vmatpush1.bf16.msra.mxu0 %v970
    %1055 = vmatprep.subr.bf16.mxu0 0
    %1056 = vmatpush1.bf16.msra.mxu0 %v973
    %1057 = vmatprep.subr.bf16.mxu0 0
    %1058 = vmatpush1.bf16.msra.mxu0 0
    %1059 = vmatprep.subr.bf16.mxu0 0
    %1060 = vmatpush1.bf16.msra.mxu0 0
    %1061 = vmatprep.subr.bf16.mxu0 0
    %1062 = vmatpush1.bf16.msra.mxu0 0
    %1063 = vmatprep.subr.bf16.mxu0 0
    %1064 = vmatpush1.bf16.msra.mxu0 0
    %1065 = vmatprep.subr.bf16.mxu0 0
    %1066 = vmatpush1.bf16.msra.mxu0 0
    %1067 = vmatprep.subr.bf16.mxu0 0
    %1068 = vmatpush1.bf16.msra.mxu0 0
    %1069 = vmatprep.subr.bf16.mxu0 0
    %1070 = vmatpush1.bf16.msra.mxu0 0
    %1071 = vmatprep.subr.bf16.mxu0 0
    %1072 = vmatpush1.bf16.msra.mxu0 0
    %1073 = vmatprep.mubr.bf16.mxu0 0
    %1074 = vmatmul.mubr.bf16.gmra.mrb[0].mxu0 %v837
    %v1075 = vpop.f32.mrb[0].mxu0
    %v1076 = vadd.f32 0.0, %v1075
    %v1077 = vpop.f32.mrb[0].mxu0
    %v1078 = vpop.f32.mrb[0].mxu0
    %v1079 = vadd.f32 0.0, %v1078
    %v1080 = vpop.f32.mrb[0].mxu0
    %1081 = vdwg.mxu0
    %v1082 = vld [vmem:[#allocation7 + $0x68] sm:$0x1]
    %v1083 = vld [vmem:[#allocation7 + $0x70] sm:$0xff]
    %v1084 = vld [vmem:[#allocation7 + $0x78] sm:$0xff]
    %v1085 = vld [vmem:[#allocation7 + $0x80] sm:$0xff]
    %v1086 = vld [vmem:[#allocation7 + $0x88] sm:$0xf]
    %v1088 = vsel %vm657, %v1083, 0
    %v1091 = vsel %vm657, %v1084, 0
    %v1094 = vsel %vm657, %v1085, 0
    %v1097 = vsel %vm657, %v1086, 0
    %v1100 = vsel %vm664, %v1037, 0
    %1102 = vmatprep.subr.mxu0 0.0
    %1103 = vmatpush1.msra.mxu0 %v1033
    %1104 = vmatprep.subr.mxu0 0.0
    %1105 = vmatpush1.msra.mxu0 %v1100
    %1106 = vmatprep.subr.mxu0 0.0
    %1107 = vmatpush1.msra.mxu0 0.0
    %1108 = vmatprep.subr.mxu0 0.0
    %1109 = vmatpush1.msra.mxu0 0.0
    %1110 = vmatprep.subr.mxu0 0.0
    %1111 = vmatpush1.msra.mxu0 0.0
    %1112 = vmatprep.subr.mxu0 0.0
    %1113 = vmatpush1.msra.mxu0 0.0
    %1114 = vmatprep.subr.mxu0 0.0
    %1115 = vmatpush1.msra.mxu0 0.0
    %1116 = vmatprep.subr.mxu0 0.0
    %1117 = vmatpush1.msra.mxu0 0.0
    %1118 = vmatprep.subr.mxu0 0.0
    %1119 = vmatpush1.msra.mxu0 0.0
    %1120 = vmatprep.subr.mxu0 0.0
    %1121 = vmatpush1.msra.mxu0 0.0
    %1122 = vmatprep.subr.mxu0 0.0
    %1123 = vmatpush1.msra.mxu0 0.0
    %1124 = vmatprep.subr.mxu0 0.0
    %1125 = vmatpush1.msra.mxu0 0.0
    %1126 = vmatprep.subr.mxu0 0.0
    %1127 = vmatpush1.msra.mxu0 0.0
    %1128 = vmatprep.subr.mxu0 0.0
    %1129 = vmatpush1.msra.mxu0 0.0
    %1130 = vmatprep.subr.mxu0 0.0
    %1131 = vmatpush1.msra.mxu0 0.0
    %1132 = vmatprep.subr.mxu0 0.0
    %1133 = vmatpush1.msra.mxu0 0.0
    %1134 = vmatprep.subr.mxu0 0.0
    %1135 = vmatpush1.msra.mxu0 0.0
    %1136 = vmatprep.subr.mxu0 0.0
    %1137 = vmatpush1.msra.mxu0 0.0
    %1138 = vmatprep.subr.mxu0 0.0
    %1139 = vmatpush1.msra.mxu0 0.0
    %1140 = vmatprep.subr.mxu0 0.0
    %1141 = vmatpush1.msra.mxu0 0.0
    %1142 = vmatprep.subr.mxu0 0.0
    %1143 = vmatpush1.msra.mxu0 0.0
    %1144 = vmatprep.subr.mxu0 0.0
    %1145 = vmatpush1.msra.mxu0 0.0
    %1146 = vmatprep.subr.mxu0 0.0
    %1147 = vmatpush1.msra.mxu0 0.0
    %1148 = vmatprep.subr.mxu0 0.0
    %1149 = vmatpush1.msra.mxu0 0.0
    %1150 = vmatprep.subr.mxu0 0.0
    %1151 = vmatpush1.msra.mxu0 0.0
    %1152 = vmatprep.subr.mxu0 0.0
    %1153 = vmatpush1.msra.mxu0 0.0
    %1154 = vmatprep.subr.mxu0 0.0
    %1155 = vmatpush1.msra.mxu0 0.0
    %1156 = vmatprep.subr.mxu0 0.0
    %1157 = vmatpush1.msra.mxu0 0.0
    %1158 = vmatprep.subr.mxu0 0.0
    %1159 = vmatpush1.msra.mxu0 0.0
    %1160 = vmatprep.subr.mxu0 0.0
    %1161 = vmatpush1.msra.mxu0 0.0
    %1162 = vmatprep.subr.mxu0 0.0
    %1163 = vmatpush1.msra.mxu0 0.0
    %1164 = vmatprep.subr.mxu0 0.0
    %1165 = vmatpush1.msra.mxu0 0.0
    %1166 = vmatprep.mubr.f32.mxu0 0.0
    %1167 = vmatmul.mubr.f32.gmra.mrb[0].mxu0 %v1088
    %v1168 = vpop.f32.mrb[0].mxu0
    %v1169 = vadd.f32 0.0, %v1168
    %v1170 = vpop.f32.mrb[0].mxu0
    %1171 = vmatprep.mubr.f32.mxu0 0.0
    %1172 = vmatmul.mubr.f32.gmra.mrb[0].mxu0 %v1091
    %v1173 = vpop.f32.mrb[0].mxu0
    %v1174 = vadd.f32 0.0, %v1173
    %v1175 = vpop.f32.mrb[0].mxu0
    %1176 = vmatprep.mubr.f32.mxu0 0.0
    %1177 = vmatmul.mubr.f32.gmra.mrb[0].mxu0 %v1094
    %v1178 = vpop.f32.mrb[0].mxu0
    %v1179 = vadd.f32 0.0, %v1178
    %v1180 = vpop.f32.mrb[0].mxu0
    %1181 = vmatprep.mubr.f32.mxu0 0.0
    %1182 = vmatmul.mubr.f32.gmra.mrb[0].mxu0 %v1097
    %v1183 = vpop.f32.mrb[0].mxu0
    %v1184 = vadd.f32 0.0, %v1183
    %v1185 = vpop.f32.mrb[0].mxu0
    %1186 = vdwg.mxu0
    %v1187 = vlaneseq
    %v1188 = vshrl.u32 %v1187, 7
    %v1189 = vsub.s32 0, %v1188
    %v1190 = vrot.slane %v1082, %v1189
    %v1191 = vadd.f32 %v1190, %v1169
    %v1192 = vadd.f32 %v1190, %v1174
    %v1193 = vadd.f32 %v1190, %v1179
    %v1194 = vadd.f32 %v1190, %v1184
    %v1195 = vld [vmem:[#allocation7 + $0x90] sm:$0xff]
    %v1196 = vld [vmem:[#allocation7 + $0x98] sm:$0xff]
    %v1197 = vld [vmem:[#allocation7 + $0xa0] sm:$0xff]
    %v1198 = vld [vmem:[#allocation7 + $0xa8] sm:$0xf]
    %v1200 = vsel %vm657, %v1195, 0
    %v1203 = vsel %vm657, %v1196, 0
    %v1206 = vsel %vm657, %v1197, 0
    %v1209 = vsel %vm657, %v1198, 0
    %v1212 = vsel %vm664, %v1039, 0
    %1214 = vmatprep.subr.mxu0 0.0
    %1215 = vmatpush1.msra.mxu0 %v1035
    %1216 = vmatprep.subr.mxu0 0.0
    %1217 = vmatpush1.msra.mxu0 %v1212
    %1218 = vmatprep.subr.mxu0 0.0
    %1219 = vmatpush1.msra.mxu0 0.0
    %1220 = vmatprep.subr.mxu0 0.0
    %1221 = vmatpush1.msra.mxu0 0.0
    %1222 = vmatprep.subr.mxu0 0.0
    %1223 = vmatpush1.msra.mxu0 0.0
    %1224 = vmatprep.subr.mxu0 0.0
    %1225 = vmatpush1.msra.mxu0 0.0
    %1226 = vmatprep.subr.mxu0 0.0
    %1227 = vmatpush1.msra.mxu0 0.0
    %1228 = vmatprep.subr.mxu0 0.0
    %1229 = vmatpush1.msra.mxu0 0.0
    %1230 = vmatprep.subr.mxu0 0.0
    %1231 = vmatpush1.msra.mxu0 0.0
    %1232 = vmatprep.subr.mxu0 0.0
    %1233 = vmatpush1.msra.mxu0 0.0
    %1234 = vmatprep.subr.mxu0 0.0
    %1235 = vmatpush1.msra.mxu0 0.0
    %1236 = vmatprep.subr.mxu0 0.0
    %1237 = vmatpush1.msra.mxu0 0.0
    %1238 = vmatprep.subr.mxu0 0.0
    %1239 = vmatpush1.msra.mxu0 0.0
    %1240 = vmatprep.subr.mxu0 0.0
    %1241 = vmatpush1.msra.mxu0 0.0
    %1242 = vmatprep.subr.mxu0 0.0
    %1243 = vmatpush1.msra.mxu0 0.0
    %1244 = vmatprep.subr.mxu0 0.0
    %1245 = vmatpush1.msra.mxu0 0.0
    %1246 = vmatprep.subr.mxu0 0.0
    %1247 = vmatpush1.msra.mxu0 0.0
    %1248 = vmatprep.subr.mxu0 0.0
    %1249 = vmatpush1.msra.mxu0 0.0
    %1250 = vmatprep.subr.mxu0 0.0
    %1251 = vmatpush1.msra.mxu0 0.0
    %1252 = vmatprep.subr.mxu0 0.0
    %1253 = vmatpush1.msra.mxu0 0.0
    %1254 = vmatprep.subr.mxu0 0.0
    %1255 = vmatpush1.msra.mxu0 0.0
    %1256 = vmatprep.subr.mxu0 0.0
    %1257 = vmatpush1.msra.mxu0 0.0
    %1258 = vmatprep.subr.mxu0 0.0
    %1259 = vmatpush1.msra.mxu0 0.0
    %1260 = vmatprep.subr.mxu0 0.0
    %1261 = vmatpush1.msra.mxu0 0.0
    %1262 = vmatprep.subr.mxu0 0.0
    %1263 = vmatpush1.msra.mxu0 0.0
    %1264 = vmatprep.subr.mxu0 0.0
    %1265 = vmatpush1.msra.mxu0 0.0
    %1266 = vmatprep.subr.mxu0 0.0
    %1267 = vmatpush1.msra.mxu0 0.0
    %1268 = vmatprep.subr.mxu0 0.0
    %1269 = vmatpush1.msra.mxu0 0.0
    %1270 = vmatprep.subr.mxu0 0.0
    %1271 = vmatpush1.msra.mxu0 0.0
    %1272 = vmatprep.subr.mxu0 0.0
    %1273 = vmatpush1.msra.mxu0 0.0
    %1274 = vmatprep.subr.mxu0 0.0
    %1275 = vmatpush1.msra.mxu0 0.0
    %1276 = vmatprep.subr.mxu0 0.0
    %1277 = vmatpush1.msra.mxu0 0.0
    %1278 = vmatprep.mubr.f32.mxu0 0.0
    %1279 = vmatmul.mubr.f32.gmra.mrb[0].mxu0 %v1200
    %v1280 = vpop.f32.mrb[0].mxu0
    %v1281 = vadd.f32 0.0, %v1280
    %v1282 = vpop.f32.mrb[0].mxu0
    %1283 = vmatprep.mubr.f32.mxu0 0.0
    %1284 = vmatmul.mubr.f32.gmra.mrb[0].mxu0 %v1203
    %v1285 = vpop.f32.mrb[0].mxu0
    %v1286 = vadd.f32 0.0, %v1285
    %v1287 = vpop.f32.mrb[0].mxu0
    %1288 = vmatprep.mubr.f32.mxu0 0.0
    %1289 = vmatmul.mubr.f32.gmra.mrb[0].mxu0 %v1206
    %v1290 = vpop.f32.mrb[0].mxu0
    %v1291 = vadd.f32 0.0, %v1290
    %v1292 = vpop.f32.mrb[0].mxu0
    %1293 = vmatprep.mubr.f32.mxu0 0.0
    %1294 = vmatmul.mubr.f32.gmra.mrb[0].mxu0 %v1209
    %v1295 = vpop.f32.mrb[0].mxu0
    %v1296 = vadd.f32 0.0, %v1295
    %v1297 = vpop.f32.mrb[0].mxu0
    %1298 = vdwg.mxu0
    %v1299 = vadd.f32 %v1191, %v1281
    %v1300 = vadd.f32 %v1192, %v1286
    %v1301 = vadd.f32 %v1193, %v1291
    %v1302 = vadd.f32 %v1194, %v1296
    %v1303 = vld [vmem:[#allocation7 + $0xb0] sm:$0xff]
    %v1304 = vld [vmem:[#allocation7 + $0xb8] sm:$0xff]
    %v1305 = vld [vmem:[#allocation7 + $0xc0] sm:$0xff]
    %v1306 = vld [vmem:[#allocation7 + $0xc8] sm:$0xf]
    %v1308 = vsel %vm657, %v1303, 0
    %v1311 = vsel %vm657, %v1304, 0
    %v1314 = vsel %vm657, %v1305, 0
    %v1317 = vsel %vm657, %v1306, 0
    %v1320 = vsel %vm664, %v1079, 0
    %1322 = vmatprep.subr.mxu0 0.0
    %1323 = vmatpush1.msra.mxu0 %v1076
    %1324 = vmatprep.subr.mxu0 0.0
    %1325 = vmatpush1.msra.mxu0 %v1320
    %1326 = vmatprep.subr.mxu0 0.0
    %1327 = vmatpush1.msra.mxu0 0.0
    %1328 = vmatprep.subr.mxu0 0.0
    %1329 = vmatpush1.msra.mxu0 0.0
    %1330 = vmatprep.subr.mxu0 0.0
    %1331 = vmatpush1.msra.mxu0 0.0
    %1332 = vmatprep.subr.mxu0 0.0
    %1333 = vmatpush1.msra.mxu0 0.0
    %1334 = vmatprep.subr.mxu0 0.0
    %1335 = vmatpush1.msra.mxu0 0.0
    %1336 = vmatprep.subr.mxu0 0.0
    %1337 = vmatpush1.msra.mxu0 0.0
    %1338 = vmatprep.subr.mxu0 0.0
    %1339 = vmatpush1.msra.mxu0 0.0
    %1340 = vmatprep.subr.mxu0 0.0
    %1341 = vmatpush1.msra.mxu0 0.0
    %1342 = vmatprep.subr.mxu0 0.0
    %1343 = vmatpush1.msra.mxu0 0.0
    %1344 = vmatprep.subr.mxu0 0.0
    %1345 = vmatpush1.msra.mxu0 0.0
    %1346 = vmatprep.subr.mxu0 0.0
    %1347 = vmatpush1.msra.mxu0 0.0
    %1348 = vmatprep.subr.mxu0 0.0
    %1349 = vmatpush1.msra.mxu0 0.0
    %1350 = vmatprep.subr.mxu0 0.0
    %1351 = vmatpush1.msra.mxu0 0.0
    %1352 = vmatprep.subr.mxu0 0.0
    %1353 = vmatpush1.msra.mxu0 0.0
    %1354 = vmatprep.subr.mxu0 0.0
    %1355 = vmatpush1.msra.mxu0 0.0
    %1356 = vmatprep.subr.mxu0 0.0
    %1357 = vmatpush1.msra.mxu0 0.0
    %1358 = vmatprep.subr.mxu0 0.0
    %1359 = vmatpush1.msra.mxu0 0.0
    %1360 = vmatprep.subr.mxu0 0.0
    %1361 = vmatpush1.msra.mxu0 0.0
    %1362 = vmatprep.subr.mxu0 0.0
    %1363 = vmatpush1.msra.mxu0 0.0
    %1364 = vmatprep.subr.mxu0 0.0
    %1365 = vmatpush1.msra.mxu0 0.0
    %1366 = vmatprep.subr.mxu0 0.0
    %1367 = vmatpush1.msra.mxu0 0.0
    %1368 = vmatprep.subr.mxu0 0.0
    %1369 = vmatpush1.msra.mxu0 0.0
    %1370 = vmatprep.subr.mxu0 0.0
    %1371 = vmatpush1.msra.mxu0 0.0
    %1372 = vmatprep.subr.mxu0 0.0
    %1373 = vmatpush1.msra.mxu0 0.0
    %1374 = vmatprep.subr.mxu0 0.0
    %1375 = vmatpush1.msra.mxu0 0.0
    %1376 = vmatprep.subr.mxu0 0.0
    %1377 = vmatpush1.msra.mxu0 0.0
    %1378 = vmatprep.subr.mxu0 0.0
    %1379 = vmatpush1.msra.mxu0 0.0
    %1380 = vmatprep.subr.mxu0 0.0
    %1381 = vmatpush1.msra.mxu0 0.0
    %1382 = vmatprep.subr.mxu0 0.0
    %1383 = vmatpush1.msra.mxu0 0.0
    %1384 = vmatprep.subr.mxu0 0.0
    %1385 = vmatpush1.msra.mxu0 0.0
    %1386 = vmatprep.mubr.f32.mxu0 0.0
    %1387 = vmatmul.mubr.f32.gmra.mrb[0].mxu0 %v1308
    %v1388 = vpop.f32.mrb[0].mxu0
    %v1389 = vadd.f32 0.0, %v1388
    %v1390 = vpop.f32.mrb[0].mxu0
    %1391 = vmatprep.mubr.f32.mxu0 0.0
    %1392 = vmatmul.mubr.f32.gmra.mrb[0].mxu0 %v1311
    %v1393 = vpop.f32.mrb[0].mxu0
    %v1394 = vadd.f32 0.0, %v1393
    %v1395 = vpop.f32.mrb[0].mxu0
    %1396 = vmatprep.mubr.f32.mxu0 0.0
    %1397 = vmatmul.mubr.f32.gmra.mrb[0].mxu0 %v1314
    %v1398 = vpop.f32.mrb[0].mxu0
    %v1399 = vadd.f32 0.0, %v1398
    %v1400 = vpop.f32.mrb[0].mxu0
    %1401 = vmatprep.mubr.f32.mxu0 0.0
    %1402 = vmatmul.mubr.f32.gmra.mrb[0].mxu0 %v1317
    %v1403 = vpop.f32.mrb[0].mxu0
    %v1404 = vadd.f32 0.0, %v1403
    %v1405 = vpop.f32.mrb[0].mxu0
    %1406 = vdwg.mxu0
    %v1407 = vadd.f32 %v1299, %v1389
    %v1408 = vadd.f32 %v1300, %v1394
    %v1409 = vadd.f32 %v1301, %v1399
    %v1410 = vadd.f32 %v1302, %v1404
    %v1411 = vmul.f32 %v1407, 0.2
    %v1412 = vmul.f32 %v1408, 0.2
    %v1413 = vmul.f32 %v1409, 0.2
    %v1414 = vmul.f32 %v1410, 0.2
    %v1415 = vmax.f32 %v1407, %v1411
    %v1416 = vmax.f32 %v1408, %v1412
    %v1417 = vmax.f32 %v1409, %v1413
    %v1418 = vmax.f32 %v1410, %v1414
    %v1419 = vpack.c.bf16 %v1416, %v1415
    %v1420 = vpack.c.bf16 %v1418, %v1417
    %v1421 = vld [vmem:[#allocation5 + $0x294] sm:$0xff]
    %v1422 = vld [vmem:[#allocation5 + $0x29c] sm:$0xf]
    %v1423 = vld [vmem:[#allocation5 + $0x2a0] sm:$0xff]
    %v1424 = vld [vmem:[#allocation5 + $0x2a8] sm:$0xf]
    %v1425 = vld [vmem:[#allocation5 + $0x2ac] sm:$0xff]
    %v1426 = vld [vmem:[#allocation5 + $0x2b4] sm:$0xf]
    %v1427 = vld [vmem:[#allocation5 + $0x2b8] sm:$0xff]
    %v1428 = vld [vmem:[#allocation5 + $0x2c0] sm:$0xf]
    %v1429 = vld [vmem:[#allocation5 + $0x2c4] sm:$0xff]
    %v1430 = vld [vmem:[#allocation5 + $0x2cc] sm:$0xf]
    %v1431 = vld [vmem:[#allocation5 + $0x2d0] sm:$0xff]
    %v1432 = vld [vmem:[#allocation5 + $0x2d8] sm:$0xf]
    %v1433 = vld [vmem:[#allocation5 + $0x2dc] sm:$0xff]
    %v1434 = vld [vmem:[#allocation5 + $0x2e4] sm:$0xf]
    %v1435 = vld [vmem:[#allocation5 + $0x2e8] sm:$0xff]
    %v1436 = vld [vmem:[#allocation5 + $0x2f0] sm:$0xf]
    %v1437 = vld [vmem:[#allocation5 + $0x2f4] sm:$0xff]
    %v1438 = vld [vmem:[#allocation5 + $0x2fc] sm:$0xf]
    %v1439 = vld [vmem:[#allocation5 + $0x300] sm:$0xff]
    %v1440 = vld [vmem:[#allocation5 + $0x308] sm:$0xf]
    %v1441 = vld [vmem:[#allocation5 + $0x30c] sm:$0xff]
    %v1442 = vld [vmem:[#allocation5 + $0x314] sm:$0xf]
    %v1443 = vld [vmem:[#allocation5 + $0x318] sm:$0xff]
    %v1444 = vld [vmem:[#allocation5 + $0x320] sm:$0xf]
    %v1445 = vld [vmem:[#allocation5 + $0x324] sm:$0xff]
    %v1446 = vld [vmem:[#allocation5 + $0x32c] sm:$0xf]
    %v1447 = vld [vmem:[#allocation5 + $0x330] sm:$0xff]
    %v1448 = vld [vmem:[#allocation5 + $0x338] sm:$0xf]
    %v1449 = vld [vmem:[#allocation5 + $0x33c] sm:$0xff]
    %v1450 = vld [vmem:[#allocation5 + $0x344] sm:$0xf]
    %v1451 = vld [vmem:[#allocation5 + $0x348] sm:$0xff]
    %v1452 = vld [vmem:[#allocation5 + $0x350] sm:$0xf]
    %v1485 = vunpack.c.l.b16 %v1421
    %v1486 = vunpack.c.h.b16 %v1421
    %v1487 = vunpack.c.l.b16 %v1422
    %v1488 = vunpack.c.l.b16 %v1423
    %v1489 = vunpack.c.h.b16 %v1423
    %v1490 = vunpack.c.l.b16 %v1424
    %v1491 = vunpack.c.l.b16 %v1425
    %v1492 = vunpack.c.h.b16 %v1425
    %v1493 = vunpack.c.l.b16 %v1426
    %v1494 = vunpack.c.l.b16 %v1427
    %v1495 = vunpack.c.h.b16 %v1427
    %v1496 = vunpack.c.l.b16 %v1428
    %v1497 = vunpack.c.l.b16 %v1429
    %v1498 = vunpack.c.h.b16 %v1429
    %v1499 = vunpack.c.l.b16 %v1430
    %v1500 = vunpack.c.l.b16 %v1431
    %v1501 = vunpack.c.h.b16 %v1431
    %v1502 = vunpack.c.l.b16 %v1432
    %v1503 = vunpack.c.l.b16 %v1433
    %v1504 = vunpack.c.h.b16 %v1433
    %v1505 = vunpack.c.l.b16 %v1434
    %v1506 = vunpack.c.l.b16 %v1435
    %v1507 = vunpack.c.h.b16 %v1435
    %v1508 = vunpack.c.l.b16 %v1436
    %v1509 = vunpack.c.l.b16 %v1437
    %v1510 = vunpack.c.h.b16 %v1437
    %v1511 = vunpack.c.l.b16 %v1438
    %v1512 = vunpack.c.l.b16 %v1439
    %v1513 = vunpack.c.h.b16 %v1439
    %v1514 = vunpack.c.l.b16 %v1440
    %v1515 = vunpack.c.l.b16 %v1441
    %v1516 = vunpack.c.h.b16 %v1441
    %v1517 = vunpack.c.l.b16 %v1442
    %v1518 = vunpack.c.l.b16 %v1443
    %v1519 = vunpack.c.h.b16 %v1443
    %v1520 = vunpack.c.l.b16 %v1444
    %v1521 = vunpack.c.l.b16 %v1445
    %v1522 = vunpack.c.h.b16 %v1445
    %v1523 = vunpack.c.l.b16 %v1446
    %v1524 = vunpack.c.l.b16 %v1447
    %v1525 = vunpack.c.h.b16 %v1447
    %v1526 = vunpack.c.l.b16 %v1448
    %v1527 = vunpack.c.l.b16 %v1449
    %v1528 = vunpack.c.h.b16 %v1449
    %v1529 = vunpack.c.l.b16 %v1450
    %v1530 = vunpack.c.l.b16 %v1451
    %v1531 = vunpack.c.h.b16 %v1451
    %v1532 = vunpack.c.l.b16 %v1452
    %v1533 = vpack.c.b16 %v1488, %v1485
    %v1534 = vpack.c.b16 %v1489, %v1486
    %v1535 = vpack.c.b16 %v1490, %v1487
    %v1536 = vpack.c.b16 %v1494, %v1491
    %v1537 = vpack.c.b16 %v1495, %v1492
    %v1538 = vpack.c.b16 %v1496, %v1493
    %v1539 = vpack.c.b16 %v1500, %v1497
    %v1540 = vpack.c.b16 %v1501, %v1498
    %v1541 = vpack.c.b16 %v1502, %v1499
    %v1542 = vpack.c.b16 %v1506, %v1503
    %v1543 = vpack.c.b16 %v1507, %v1504
    %v1544 = vpack.c.b16 %v1508, %v1505
    %v1545 = vpack.c.b16 %v1512, %v1509
    %v1546 = vpack.c.b16 %v1513, %v1510
    %v1547 = vpack.c.b16 %v1514, %v1511
    %v1548 = vpack.c.b16 %v1518, %v1515
    %v1549 = vpack.c.b16 %v1519, %v1516
    %v1550 = vpack.c.b16 %v1520, %v1517
    %v1551 = vpack.c.b16 %v1524, %v1521
    %v1552 = vpack.c.b16 %v1525, %v1522
    %v1553 = vpack.c.b16 %v1526, %v1523
    %v1554 = vpack.c.b16 %v1530, %v1527
    %v1555 = vpack.c.b16 %v1531, %v1528
    %v1556 = vpack.c.b16 %v1532, %v1529
    %1581 = vmatprep.subr.bf16.mxu0 %v1534
    %1582 = vmatpush1.bf16.msra.mxu0 %v1533
    %1583 = vmatprep.subr.bf16.mxu0 %v1537
    %1584 = vmatpush1.bf16.msra.mxu0 %v1536
    %1585 = vmatprep.subr.bf16.mxu0 %v1540
    %1586 = vmatpush1.bf16.msra.mxu0 %v1539
    %1587 = vmatprep.subr.bf16.mxu0 %v1543
    %1588 = vmatpush1.bf16.msra.mxu0 %v1542
    %1589 = vmatprep.subr.bf16.mxu0 %v1546
    %1590 = vmatpush1.bf16.msra.mxu0 %v1545
    %1591 = vmatprep.subr.bf16.mxu0 %v1549
    %1592 = vmatpush1.bf16.msra.mxu0 %v1548
    %1593 = vmatprep.subr.bf16.mxu0 %v1552
    %1594 = vmatpush1.bf16.msra.mxu0 %v1551
    %1595 = vmatprep.subr.bf16.mxu0 %v1555
    %1596 = vmatpush1.bf16.msra.mxu0 %v1554
    %1597 = vmatprep.subr.bf16.mxu0 0
    %1598 = vmatpush1.bf16.msra.mxu0 0
    %1599 = vmatprep.subr.bf16.mxu0 0
    %1600 = vmatpush1.bf16.msra.mxu0 0
    %1601 = vmatprep.subr.bf16.mxu0 0
    %1602 = vmatpush1.bf16.msra.mxu0 0
    %1603 = vmatprep.subr.bf16.mxu0 0
    %1604 = vmatpush1.bf16.msra.mxu0 0
    %1605 = vmatprep.subr.bf16.mxu0 0
    %1606 = vmatpush1.bf16.msra.mxu0 0
    %1607 = vmatprep.subr.bf16.mxu0 0
    %1608 = vmatpush1.bf16.msra.mxu0 0
    %1609 = vmatprep.subr.bf16.mxu0 0
    %1610 = vmatpush1.bf16.msra.mxu0 0
    %1611 = vmatprep.subr.bf16.mxu0 0
    %1612 = vmatpush1.bf16.msra.mxu0 0
    %1613 = vmatprep.mubr.bf16.mxu0 0
    %1614 = vmatmul.mubr.bf16.gmra.mrb[0].mxu0 %v1419
    %v1615 = vpop.f32.mrb[0].mxu0
    %v1616 = vadd.f32 0.0, %v1615
    %v1617 = vpop.f32.mrb[0].mxu0
    %v1618 = vadd.f32 0.0, %v1617
    %v1619 = vpop.f32.mrb[0].mxu0
    %v1620 = vadd.f32 0.0, %v1619
    %v1621 = vpop.f32.mrb[0].mxu0
    %v1622 = vadd.f32 0.0, %v1621
    %1623 = vmatprep.mubr.bf16.mxu0 0
    %1624 = vmatmul.mubr.bf16.gmra.mrb[0].mxu0 %v1420
    %v1625 = vpop.f32.mrb[0].mxu0
    %v1626 = vadd.f32 0.0, %v1625
    %v1627 = vpop.f32.mrb[0].mxu0
    %v1628 = vadd.f32 0.0, %v1627
    %v1629 = vpop.f32.mrb[0].mxu0
    %v1630 = vadd.f32 0.0, %v1629
    %v1631 = vpop.f32.mrb[0].mxu0
    %v1632 = vadd.f32 0.0, %v1631
    %1633 = vdwg.mxu0
    %1634 = vmatprep.subr.bf16.mxu0 0
    %1635 = vmatpush1.bf16.msra.mxu0 %v1535
    %1636 = vmatprep.subr.bf16.mxu0 0
    %1637 = vmatpush1.bf16.msra.mxu0 %v1538
    %1638 = vmatprep.subr.bf16.mxu0 0
    %1639 = vmatpush1.bf16.msra.mxu0 %v1541
    %1640 = vmatprep.subr.bf16.mxu0 0
    %1641 = vmatpush1.bf16.msra.mxu0 %v1544
    %1642 = vmatprep.subr.bf16.mxu0 0
    %1643 = vmatpush1.bf16.msra.mxu0 %v1547
    %1644 = vmatprep.subr.bf16.mxu0 0
    %1645 = vmatpush1.bf16.msra.mxu0 %v1550
    %1646 = vmatprep.subr.bf16.mxu0 0
    %1647 = vmatpush1.bf16.msra.mxu0 %v1553
    %1648 = vmatprep.subr.bf16.mxu0 0
    %1649 = vmatpush1.bf16.msra.mxu0 %v1556
    %1650 = vmatprep.subr.bf16.mxu0 0
    %1651 = vmatpush1.bf16.msra.mxu0 0
    %1652 = vmatprep.subr.bf16.mxu0 0
    %1653 = vmatpush1.bf16.msra.mxu0 0
    %1654 = vmatprep.subr.bf16.mxu0 0
    %1655 = vmatpush1.bf16.msra.mxu0 0
    %1656 = vmatprep.subr.bf16.mxu0 0
    %1657 = vmatpush1.bf16.msra.mxu0 0
    %1658 = vmatprep.subr.bf16.mxu0 0
    %1659 = vmatpush1.bf16.msra.mxu0 0
    %1660 = vmatprep.subr.bf16.mxu0 0
    %1661 = vmatpush1.bf16.msra.mxu0 0
    %1662 = vmatprep.subr.bf16.mxu0 0
    %1663 = vmatpush1.bf16.msra.mxu0 0
    %1664 = vmatprep.subr.bf16.mxu0 0
    %1665 = vmatpush1.bf16.msra.mxu0 0
    %1666 = vmatprep.mubr.bf16.mxu0 0
    %1667 = vmatmul.mubr.bf16.gmra.mrb[0].mxu0 %v1419
    %v1668 = vpop.f32.mrb[0].mxu0
    %v1669 = vadd.f32 0.0, %v1668
    %v1670 = vpop.f32.mrb[0].mxu0
    %v1671 = vpop.f32.mrb[0].mxu0
    %v1672 = vadd.f32 0.0, %v1671
    %v1673 = vpop.f32.mrb[0].mxu0
    %1674 = vmatprep.mubr.bf16.mxu0 0
    %1675 = vmatmul.mubr.bf16.gmra.mrb[0].mxu0 %v1420
    %v1676 = vpop.f32.mrb[0].mxu0
    %v1677 = vadd.f32 0.0, %v1676
    %v1678 = vpop.f32.mrb[0].mxu0
    %v1679 = vpop.f32.mrb[0].mxu0
    %v1680 = vadd.f32 0.0, %v1679
    %v1681 = vpop.f32.mrb[0].mxu0
    %1682 = vdwg.mxu0
    %v1683 = vld [vmem:[#allocation7 + $0xd0] sm:$0x1]
    %v1684 = vlaneseq
    %v1685 = vshrl.u32 %v1684, 7
    %v1686 = vsub.s32 0, %v1685
    %v1687 = vrot.slane %v1683, %v1686
    %v1688 = vadd.f32 %v1687, %v1618
    %v1689 = vadd.f32 %v1687, %v1622
    %v1690 = vadd.f32 %v1687, %v1628
    %v1691 = vadd.f32 %v1687, %v1632
    %v1692 = vld [vmem:[#allocation7 + $0xd8] sm:$0xff]
    %v1693 = vld [vmem:[#allocation7 + $0xe0] sm:$0xff]
    %v1694 = vld [vmem:[#allocation7 + $0xe8] sm:$0xff]
    %v1695 = vld [vmem:[#allocation7 + $0xf0] sm:$0xf]
    %vm1696 = vcmask 228352
    %v1698 = vsel %vm1696, %v1692, 0
    %v1701 = vsel %vm1696, %v1693, 0
    %v1704 = vsel %vm1696, %v1694, 0
    %v1707 = vsel %vm1696, %v1695, 0
    %v1710 = vsel %vm155, %v1630, 0
    %1712 = vmatprep.subr.mxu0 0.0
    %1713 = vmatpush1.msra.mxu0 %v1616
    %1714 = vmatprep.subr.mxu0 0.0
    %1715 = vmatpush1.msra.mxu0 %v1620
    %1716 = vmatprep.subr.mxu0 0.0
    %1717 = vmatpush1.msra.mxu0 %v1626
    %1718 = vmatprep.subr.mxu0 0.0
    %1719 = vmatpush1.msra.mxu0 %v1710
    %1720 = vmatprep.subr.mxu0 0.0
    %1721 = vmatpush1.msra.mxu0 0.0
    %1722 = vmatprep.subr.mxu0 0.0
    %1723 = vmatpush1.msra.mxu0 0.0
    %1724 = vmatprep.subr.mxu0 0.0
    %1725 = vmatpush1.msra.mxu0 0.0
    %1726 = vmatprep.subr.mxu0 0.0
    %1727 = vmatpush1.msra.mxu0 0.0
    %1728 = vmatprep.subr.mxu0 0.0
    %1729 = vmatpush1.msra.mxu0 0.0
    %1730 = vmatprep.subr.mxu0 0.0
    %1731 = vmatpush1.msra.mxu0 0.0
    %1732 = vmatprep.subr.mxu0 0.0
    %1733 = vmatpush1.msra.mxu0 0.0
    %1734 = vmatprep.subr.mxu0 0.0
    %1735 = vmatpush1.msra.mxu0 0.0
    %1736 = vmatprep.subr.mxu0 0.0
    %1737 = vmatpush1.msra.mxu0 0.0
    %1738 = vmatprep.subr.mxu0 0.0
    %1739 = vmatpush1.msra.mxu0 0.0
    %1740 = vmatprep.subr.mxu0 0.0
    %1741 = vmatpush1.msra.mxu0 0.0
    %1742 = vmatprep.subr.mxu0 0.0
    %1743 = vmatpush1.msra.mxu0 0.0
    %1744 = vmatprep.subr.mxu0 0.0
    %1745 = vmatpush1.msra.mxu0 0.0
    %1746 = vmatprep.subr.mxu0 0.0
    %1747 = vmatpush1.msra.mxu0 0.0
    %1748 = vmatprep.subr.mxu0 0.0
    %1749 = vmatpush1.msra.mxu0 0.0
    %1750 = vmatprep.subr.mxu0 0.0
    %1751 = vmatpush1.msra.mxu0 0.0
    %1752 = vmatprep.subr.mxu0 0.0
    %1753 = vmatpush1.msra.mxu0 0.0
    %1754 = vmatprep.subr.mxu0 0.0
    %1755 = vmatpush1.msra.mxu0 0.0
    %1756 = vmatprep.subr.mxu0 0.0
    %1757 = vmatpush1.msra.mxu0 0.0
    %1758 = vmatprep.subr.mxu0 0.0
    %1759 = vmatpush1.msra.mxu0 0.0
    %1760 = vmatprep.subr.mxu0 0.0
    %1761 = vmatpush1.msra.mxu0 0.0
    %1762 = vmatprep.subr.mxu0 0.0
    %1763 = vmatpush1.msra.mxu0 0.0
    %1764 = vmatprep.subr.mxu0 0.0
    %1765 = vmatpush1.msra.mxu0 0.0
    %1766 = vmatprep.subr.mxu0 0.0
    %1767 = vmatpush1.msra.mxu0 0.0
    %1768 = vmatprep.subr.mxu0 0.0
    %1769 = vmatpush1.msra.mxu0 0.0
    %1770 = vmatprep.subr.mxu0 0.0
    %1771 = vmatpush1.msra.mxu0 0.0
    %1772 = vmatprep.subr.mxu0 0.0
    %1773 = vmatpush1.msra.mxu0 0.0
    %1774 = vmatprep.subr.mxu0 0.0
    %1775 = vmatpush1.msra.mxu0 0.0
    %1776 = vmatprep.mubr.f32.mxu0 0.0
    %1777 = vmatmul.mubr.f32.gmra.mrb[0].mxu0 %v1698
    %v1778 = vpop.f32.mrb[0].mxu0
    %v1779 = vadd.f32 0.0, %v1778
    %v1780 = vpop.f32.mrb[0].mxu0
    %1781 = vmatprep.mubr.f32.mxu0 0.0
    %1782 = vmatmul.mubr.f32.gmra.mrb[0].mxu0 %v1701
    %v1783 = vpop.f32.mrb[0].mxu0
    %v1784 = vadd.f32 0.0, %v1783
    %v1785 = vpop.f32.mrb[0].mxu0
    %1786 = vmatprep.mubr.f32.mxu0 0.0
    %1787 = vmatmul.mubr.f32.gmra.mrb[0].mxu0 %v1704
    %v1788 = vpop.f32.mrb[0].mxu0
    %v1789 = vadd.f32 0.0, %v1788
    %v1790 = vpop.f32.mrb[0].mxu0
    %1791 = vmatprep.mubr.f32.mxu0 0.0
    %1792 = vmatmul.mubr.f32.gmra.mrb[0].mxu0 %v1707
    %v1793 = vpop.f32.mrb[0].mxu0
    %v1794 = vadd.f32 0.0, %v1793
    %v1795 = vpop.f32.mrb[0].mxu0
    %1796 = vdwg.mxu0
    %v1797 = vadd.f32 %v1688, %v1779
    %v1798 = vadd.f32 %v1689, %v1784
    %v1799 = vadd.f32 %v1690, %v1789
    %v1800 = vadd.f32 %v1691, %v1794
    %v1801 = vld [vmem:[#allocation7 + $0xf8] sm:$0xff]
    %v1802 = vld [vmem:[#allocation7 + $0x100] sm:$0xff]
    %v1803 = vld [vmem:[#allocation7 + $0x108] sm:$0xff]
    %v1804 = vld [vmem:[#allocation7 + $0x110] sm:$0xf]
    %v1806 = vsel %vm1696, %v1801, 0
    %v1809 = vsel %vm1696, %v1802, 0
    %v1812 = vsel %vm1696, %v1803, 0
    %v1815 = vsel %vm1696, %v1804, 0
    %v1818 = vsel %vm155, %v1680, 0
    %1820 = vmatprep.subr.mxu0 0.0
    %1821 = vmatpush1.msra.mxu0 %v1669
    %1822 = vmatprep.subr.mxu0 0.0
    %1823 = vmatpush1.msra.mxu0 %v1672
    %1824 = vmatprep.subr.mxu0 0.0
    %1825 = vmatpush1.msra.mxu0 %v1677
    %1826 = vmatprep.subr.mxu0 0.0
    %1827 = vmatpush1.msra.mxu0 %v1818
    %1828 = vmatprep.subr.mxu0 0.0
    %1829 = vmatpush1.msra.mxu0 0.0
    %1830 = vmatprep.subr.mxu0 0.0
    %1831 = vmatpush1.msra.mxu0 0.0
    %1832 = vmatprep.subr.mxu0 0.0
    %1833 = vmatpush1.msra.mxu0 0.0
    %1834 = vmatprep.subr.mxu0 0.0
    %1835 = vmatpush1.msra.mxu0 0.0
    %1836 = vmatprep.subr.mxu0 0.0
    %1837 = vmatpush1.msra.mxu0 0.0
    %1838 = vmatprep.subr.mxu0 0.0
    %1839 = vmatpush1.msra.mxu0 0.0
    %1840 = vmatprep.subr.mxu0 0.0
    %1841 = vmatpush1.msra.mxu0 0.0
    %1842 = vmatprep.subr.mxu0 0.0
    %1843 = vmatpush1.msra.mxu0 0.0
    %1844 = vmatprep.subr.mxu0 0.0
    %1845 = vmatpush1.msra.mxu0 0.0
    %1846 = vmatprep.subr.mxu0 0.0
    %1847 = vmatpush1.msra.mxu0 0.0
    %1848 = vmatprep.subr.mxu0 0.0
    %1849 = vmatpush1.msra.mxu0 0.0
    %1850 = vmatprep.subr.mxu0 0.0
    %1851 = vmatpush1.msra.mxu0 0.0
    %1852 = vmatprep.subr.mxu0 0.0
    %1853 = vmatpush1.msra.mxu0 0.0
    %1854 = vmatprep.subr.mxu0 0.0
    %1855 = vmatpush1.msra.mxu0 0.0
    %1856 = vmatprep.subr.mxu0 0.0
    %1857 = vmatpush1.msra.mxu0 0.0
    %1858 = vmatprep.subr.mxu0 0.0
    %1859 = vmatpush1.msra.mxu0 0.0
    %1860 = vmatprep.subr.mxu0 0.0
    %1861 = vmatpush1.msra.mxu0 0.0
    %1862 = vmatprep.subr.mxu0 0.0
    %1863 = vmatpush1.msra.mxu0 0.0
    %1864 = vmatprep.subr.mxu0 0.0
    %1865 = vmatpush1.msra.mxu0 0.0
    %1866 = vmatprep.subr.mxu0 0.0
    %1867 = vmatpush1.msra.mxu0 0.0
    %1868 = vmatprep.subr.mxu0 0.0
    %1869 = vmatpush1.msra.mxu0 0.0
    %1870 = vmatprep.subr.mxu0 0.0
    %1871 = vmatpush1.msra.mxu0 0.0
    %1872 = vmatprep.subr.mxu0 0.0
    %1873 = vmatpush1.msra.mxu0 0.0
    %1874 = vmatprep.subr.mxu0 0.0
    %1875 = vmatpush1.msra.mxu0 0.0
    %1876 = vmatprep.subr.mxu0 0.0
    %1877 = vmatpush1.msra.mxu0 0.0
    %1878 = vmatprep.subr.mxu0 0.0
    %1879 = vmatpush1.msra.mxu0 0.0
    %1880 = vmatprep.subr.mxu0 0.0
    %1881 = vmatpush1.msra.mxu0 0.0
    %1882 = vmatprep.subr.mxu0 0.0
    %1883 = vmatpush1.msra.mxu0 0.0
    %1884 = vmatprep.mubr.f32.mxu0 0.0
    %1885 = vmatmul.mubr.f32.gmra.mrb[0].mxu0 %v1806
    %v1886 = vpop.f32.mrb[0].mxu0
    %v1887 = vadd.f32 0.0, %v1886
    %v1888 = vpop.f32.mrb[0].mxu0
    %1889 = vmatprep.mubr.f32.mxu0 0.0
    %1890 = vmatmul.mubr.f32.gmra.mrb[0].mxu0 %v1809
    %v1891 = vpop.f32.mrb[0].mxu0
    %v1892 = vadd.f32 0.0, %v1891
    %v1893 = vpop.f32.mrb[0].mxu0
    %1894 = vmatprep.mubr.f32.mxu0 0.0
    %1895 = vmatmul.mubr.f32.gmra.mrb[0].mxu0 %v1812
    %v1896 = vpop.f32.mrb[0].mxu0
    %v1897 = vadd.f32 0.0, %v1896
    %v1898 = vpop.f32.mrb[0].mxu0
    %1899 = vmatprep.mubr.f32.mxu0 0.0
    %1900 = vmatmul.mubr.f32.gmra.mrb[0].mxu0 %v1815
    %v1901 = vpop.f32.mrb[0].mxu0
    %v1902 = vadd.f32 0.0, %v1901
    %v1903 = vpop.f32.mrb[0].mxu0
    %1904 = vdwg.mxu0
    %v1905 = vadd.f32 %v1797, %v1887
    %v1906 = vadd.f32 %v1798, %v1892
    %v1907 = vadd.f32 %v1799, %v1897
    %v1908 = vadd.f32 %v1800, %v1902
    %v1909 = vmul.f32 %v1905, 0.2
    %v1910 = vmul.f32 %v1906, 0.2
    %v1911 = vmul.f32 %v1907, 0.2
    %v1912 = vmul.f32 %v1908, 0.2
    %v1913 = vmax.f32 %v1905, %v1909
    %v1914 = vmax.f32 %v1906, %v1910
    %v1915 = vmax.f32 %v1907, %v1911
    %v1916 = vmax.f32 %v1908, %v1912
    %v1917 = vpack.c.bf16 %v1914, %v1913
    %v1918 = vpack.c.bf16 %v1916, %v1915
    %v1919 = vld [vmem:[#allocation5 + $0x354] sm:$0xff]
    %v1920 = vld [vmem:[#allocation5 + $0x35c] sm:$0xf]
    %v1921 = vld [vmem:[#allocation5 + $0x360] sm:$0xff]
    %v1922 = vld [vmem:[#allocation5 + $0x368] sm:$0xf]
    %v1923 = vld [vmem:[#allocation5 + $0x36c] sm:$0xff]
    %v1924 = vld [vmem:[#allocation5 + $0x374] sm:$0xf]
    %v1925 = vld [vmem:[#allocation5 + $0x378] sm:$0xff]
    %v1926 = vld [vmem:[#allocation5 + $0x380] sm:$0xf]
    %v1927 = vld [vmem:[#allocation5 + $0x384] sm:$0xff]
    %v1928 = vld [vmem:[#allocation5 + $0x38c] sm:$0xf]
    %v1929 = vld [vmem:[#allocation5 + $0x390] sm:$0xff]
    %v1930 = vld [vmem:[#allocation5 + $0x398] sm:$0xf]
    %v1931 = vld [vmem:[#allocation5 + $0x39c] sm:$0xff]
    %v1932 = vld [vmem:[#allocation5 + $0x3a4] sm:$0xf]
    %v1933 = vld [vmem:[#allocation5 + $0x3a8] sm:$0xff]
    %v1934 = vld [vmem:[#allocation5 + $0x3b0] sm:$0xf]
    %v1935 = vld [vmem:[#allocation5 + $0x3b4] sm:$0xff]
    %v1936 = vld [vmem:[#allocation5 + $0x3bc] sm:$0xf]
    %v1937 = vld [vmem:[#allocation5 + $0x3c0] sm:$0xff]
    %v1938 = vld [vmem:[#allocation5 + $0x3c8] sm:$0xf]
    %v1939 = vld [vmem:[#allocation5 + $0x3cc] sm:$0xff]
    %v1940 = vld [vmem:[#allocation5 + $0x3d4] sm:$0xf]
    %v1941 = vld [vmem:[#allocation5 + $0x3d8] sm:$0xff]
    %v1942 = vld [vmem:[#allocation5 + $0x3e0] sm:$0xf]
    %v1943 = vld [vmem:[#allocation5 + $0x3e4] sm:$0xff]
    %v1944 = vld [vmem:[#allocation5 + $0x3ec] sm:$0xf]
    %v1945 = vld [vmem:[#allocation5 + $0x3f0] sm:$0xff]
    %v1946 = vld [vmem:[#allocation5 + $0x3f8] sm:$0xf]
    %v1947 = vld [vmem:[#allocation5 + $0x3fc] sm:$0xff]
    %v1948 = vld [vmem:[#allocation5 + $0x404] sm:$0xf]
    %v1949 = vld [vmem:[#allocation5 + $0x408] sm:$0xff]
    %v1950 = vld [vmem:[#allocation5 + $0x410] sm:$0xf]
    %v1983 = vunpack.c.l.b16 %v1919
    %v1984 = vunpack.c.h.b16 %v1919
    %v1985 = vunpack.c.l.b16 %v1920
    %v1986 = vunpack.c.l.b16 %v1921
    %v1987 = vunpack.c.h.b16 %v1921
    %v1988 = vunpack.c.l.b16 %v1922
    %v1989 = vunpack.c.l.b16 %v1923
    %v1990 = vunpack.c.h.b16 %v1923
    %v1991 = vunpack.c.l.b16 %v1924
    %v1992 = vunpack.c.l.b16 %v1925
    %v1993 = vunpack.c.h.b16 %v1925
    %v1994 = vunpack.c.l.b16 %v1926
    %v1995 = vunpack.c.l.b16 %v1927
    %v1996 = vunpack.c.h.b16 %v1927
    %v1997 = vunpack.c.l.b16 %v1928
    %v1998 = vunpack.c.l.b16 %v1929
    %v1999 = vunpack.c.h.b16 %v1929
    %v2000 = vunpack.c.l.b16 %v1930
    %v2001 = vunpack.c.l.b16 %v1931
    %v2002 = vunpack.c.h.b16 %v1931
    %v2003 = vunpack.c.l.b16 %v1932
    %v2004 = vunpack.c.l.b16 %v1933
    %v2005 = vunpack.c.h.b16 %v1933
    %v2006 = vunpack.c.l.b16 %v1934
    %v2007 = vunpack.c.l.b16 %v1935
    %v2008 = vunpack.c.h.b16 %v1935
    %v2009 = vunpack.c.l.b16 %v1936
    %v2010 = vunpack.c.l.b16 %v1937
    %v2011 = vunpack.c.h.b16 %v1937
    %v2012 = vunpack.c.l.b16 %v1938
    %v2013 = vunpack.c.l.b16 %v1939
    %v2014 = vunpack.c.h.b16 %v1939
    %v2015 = vunpack.c.l.b16 %v1940
    %v2016 = vunpack.c.l.b16 %v1941
    %v2017 = vunpack.c.h.b16 %v1941
    %v2018 = vunpack.c.l.b16 %v1942
    %v2019 = vunpack.c.l.b16 %v1943
    %v2020 = vunpack.c.h.b16 %v1943
    %v2021 = vunpack.c.l.b16 %v1944
    %v2022 = vunpack.c.l.b16 %v1945
    %v2023 = vunpack.c.h.b16 %v1945
    %v2024 = vunpack.c.l.b16 %v1946
    %v2025 = vunpack.c.l.b16 %v1947
    %v2026 = vunpack.c.h.b16 %v1947
    %v2027 = vunpack.c.l.b16 %v1948
    %v2028 = vunpack.c.l.b16 %v1949
    %v2029 = vunpack.c.h.b16 %v1949
    %v2030 = vunpack.c.l.b16 %v1950
    %v2031 = vpack.c.b16 %v1986, %v1983
    %v2032 = vpack.c.b16 %v1987, %v1984
    %v2033 = vpack.c.b16 %v1988, %v1985
    %v2034 = vpack.c.b16 %v1992, %v1989
    %v2035 = vpack.c.b16 %v1993, %v1990
    %v2036 = vpack.c.b16 %v1994, %v1991
    %v2037 = vpack.c.b16 %v1998, %v1995
    %v2038 = vpack.c.b16 %v1999, %v1996
    %v2039 = vpack.c.b16 %v2000, %v1997
    %v2040 = vpack.c.b16 %v2004, %v2001
    %v2041 = vpack.c.b16 %v2005, %v2002
    %v2042 = vpack.c.b16 %v2006, %v2003
    %v2043 = vpack.c.b16 %v2010, %v2007
    %v2044 = vpack.c.b16 %v2011, %v2008
    %v2045 = vpack.c.b16 %v2012, %v2009
    %v2046 = vpack.c.b16 %v2016, %v2013
    %v2047 = vpack.c.b16 %v2017, %v2014
    %v2048 = vpack.c.b16 %v2018, %v2015
    %v2049 = vpack.c.b16 %v2022, %v2019
    %v2050 = vpack.c.b16 %v2023, %v2020
    %v2051 = vpack.c.b16 %v2024, %v2021
    %v2052 = vpack.c.b16 %v2028, %v2025
    %v2053 = vpack.c.b16 %v2029, %v2026
    %v2054 = vpack.c.b16 %v2030, %v2027
    %2079 = vmatprep.subr.bf16.mxu0 %v2032
    %2080 = vmatpush1.bf16.msra.mxu0 %v2031
    %2081 = vmatprep.subr.bf16.mxu0 %v2035
    %2082 = vmatpush1.bf16.msra.mxu0 %v2034
    %2083 = vmatprep.subr.bf16.mxu0 %v2038
    %2084 = vmatpush1.bf16.msra.mxu0 %v2037
    %2085 = vmatprep.subr.bf16.mxu0 %v2041
    %2086 = vmatpush1.bf16.msra.mxu0 %v2040
    %2087 = vmatprep.subr.bf16.mxu0 %v2044
    %2088 = vmatpush1.bf16.msra.mxu0 %v2043
    %2089 = vmatprep.subr.bf16.mxu0 %v2047
    %2090 = vmatpush1.bf16.msra.mxu0 %v2046
    %2091 = vmatprep.subr.bf16.mxu0 %v2050
    %2092 = vmatpush1.bf16.msra.mxu0 %v2049
    %2093 = vmatprep.subr.bf16.mxu0 %v2053
    %2094 = vmatpush1.bf16.msra.mxu0 %v2052
    %2095 = vmatprep.subr.bf16.mxu0 0
    %2096 = vmatpush1.bf16.msra.mxu0 0
    %2097 = vmatprep.subr.bf16.mxu0 0
    %2098 = vmatpush1.bf16.msra.mxu0 0
    %2099 = vmatprep.subr.bf16.mxu0 0
    %2100 = vmatpush1.bf16.msra.mxu0 0
    %2101 = vmatprep.subr.bf16.mxu0 0
    %2102 = vmatpush1.bf16.msra.mxu0 0
    %2103 = vmatprep.subr.bf16.mxu0 0
    %2104 = vmatpush1.bf16.msra.mxu0 0
    %2105 = vmatprep.subr.bf16.mxu0 0
    %2106 = vmatpush1.bf16.msra.mxu0 0
    %2107 = vmatprep.subr.bf16.mxu0 0
    %2108 = vmatpush1.bf16.msra.mxu0 0
    %2109 = vmatprep.subr.bf16.mxu0 0
    %2110 = vmatpush1.bf16.msra.mxu0 0
    %2111 = vmatprep.mubr.bf16.mxu0 0
    %2112 = vmatmul.mubr.bf16.gmra.mrb[0].mxu0 %v1917
    %v2113 = vpop.f32.mrb[0].mxu0
    %v2114 = vadd.f32 0.0, %v2113
    %v2115 = vpop.f32.mrb[0].mxu0
    %v2116 = vadd.f32 0.0, %v2115
    %v2117 = vpop.f32.mrb[0].mxu0
    %v2118 = vadd.f32 0.0, %v2117
    %v2119 = vpop.f32.mrb[0].mxu0
    %v2120 = vadd.f32 0.0, %v2119
    %2121 = vmatprep.mubr.bf16.mxu0 0
    %2122 = vmatmul.mubr.bf16.gmra.mrb[0].mxu0 %v1918
    %v2123 = vpop.f32.mrb[0].mxu0
    %v2124 = vadd.f32 0.0, %v2123
    %v2125 = vpop.f32.mrb[0].mxu0
    %v2126 = vadd.f32 0.0, %v2125
    %v2127 = vpop.f32.mrb[0].mxu0
    %v2128 = vadd.f32 0.0, %v2127
    %v2129 = vpop.f32.mrb[0].mxu0
    %v2130 = vadd.f32 0.0, %v2129
    %2131 = vdwg.mxu0
    %2132 = vmatprep.subr.bf16.mxu0 0
    %2133 = vmatpush1.bf16.msra.mxu0 %v2033
    %2134 = vmatprep.subr.bf16.mxu0 0
    %2135 = vmatpush1.bf16.msra.mxu0 %v2036
    %2136 = vmatprep.subr.bf16.mxu0 0
    %2137 = vmatpush1.bf16.msra.mxu0 %v2039
    %2138 = vmatprep.subr.bf16.mxu0 0
    %2139 = vmatpush1.bf16.msra.mxu0 %v2042
    %2140 = vmatprep.subr.bf16.mxu0 0
    %2141 = vmatpush1.bf16.msra.mxu0 %v2045
    %2142 = vmatprep.subr.bf16.mxu0 0
    %2143 = vmatpush1.bf16.msra.mxu0 %v2048
    %2144 = vmatprep.subr.bf16.mxu0 0
    %2145 = vmatpush1.bf16.msra.mxu0 %v2051
    %2146 = vmatprep.subr.bf16.mxu0 0
    %2147 = vmatpush1.bf16.msra.mxu0 %v2054
    %2148 = vmatprep.subr.bf16.mxu0 0
    %2149 = vmatpush1.bf16.msra.mxu0 0
    %2150 = vmatprep.subr.bf16.mxu0 0
    %2151 = vmatpush1.bf16.msra.mxu0 0
    %2152 = vmatprep.subr.bf16.mxu0 0
    %2153 = vmatpush1.bf16.msra.mxu0 0
    %2154 = vmatprep.subr.bf16.mxu0 0
    %2155 = vmatpush1.bf16.msra.mxu0 0
    %2156 = vmatprep.subr.bf16.mxu0 0
    %2157 = vmatpush1.bf16.msra.mxu0 0
    %2158 = vmatprep.subr.bf16.mxu0 0
    %2159 = vmatpush1.bf16.msra.mxu0 0
    %2160 = vmatprep.subr.bf16.mxu0 0
    %2161 = vmatpush1.bf16.msra.mxu0 0
    %2162 = vmatprep.subr.bf16.mxu0 0
    %2163 = vmatpush1.bf16.msra.mxu0 0
    %2164 = vmatprep.mubr.bf16.mxu0 0
    %2165 = vmatmul.mubr.bf16.gmra.mrb[0].mxu0 %v1917
    %v2166 = vpop.f32.mrb[0].mxu0
    %v2167 = vadd.f32 0.0, %v2166
    %v2168 = vpop.f32.mrb[0].mxu0
    %v2169 = vpop.f32.mrb[0].mxu0
    %v2170 = vadd.f32 0.0, %v2169
    %v2171 = vpop.f32.mrb[0].mxu0
    %2172 = vmatprep.mubr.bf16.mxu0 0
    %2173 = vmatmul.mubr.bf16.gmra.mrb[0].mxu0 %v1918
    %v2174 = vpop.f32.mrb[0].mxu0
    %v2175 = vadd.f32 0.0, %v2174
    %v2176 = vpop.f32.mrb[0].mxu0
    %v2177 = vpop.f32.mrb[0].mxu0
    %v2178 = vadd.f32 0.0, %v2177
    %v2179 = vpop.f32.mrb[0].mxu0
    %2180 = vdwg.mxu0
    %v2181 = vld [vmem:[#allocation7 + $0x118] sm:$0x1]
    %v2182 = vld [vmem:[#allocation7 + $0x120] sm:$0xff]
    %v2183 = vld [vmem:[#allocation7 + $0x128] sm:$0xff]
    %v2184 = vld [vmem:[#allocation7 + $0x130] sm:$0xff]
    %v2185 = vld [vmem:[#allocation7 + $0x138] sm:$0xff]
    %v2186 = vld [vmem:[#allocation7 + $0x140] sm:$0xff]
    %v2187 = vld [vmem:[#allocation7 + $0x148] sm:$0xff]
    %v2188 = vld [vmem:[#allocation7 + $0x150] sm:$0xff]
    %v2190 = vsel %vm1696, %v2182, 0
    %v2193 = vsel %vm1696, %v2183, 0
    %v2196 = vsel %vm1696, %v2184, 0
    %v2199 = vsel %vm1696, %v2185, 0
    %v2202 = vsel %vm1696, %v2186, 0
    %v2205 = vsel %vm1696, %v2187, 0
    %v2208 = vsel %vm1696, %v2188, 0
    %v2211 = vsel %vm155, %v2128, 0
    %2213 = vmatprep.subr.mxu0 0.0
    %2214 = vmatpush1.msra.mxu0 %v2114
    %2215 = vmatprep.subr.mxu0 0.0
    %2216 = vmatpush1.msra.mxu0 %v2118
    %2217 = vmatprep.subr.mxu0 0.0
    %2218 = vmatpush1.msra.mxu0 %v2124
    %2219 = vmatprep.subr.mxu0 0.0
    %2220 = vmatpush1.msra.mxu0 %v2211
    %2221 = vmatprep.subr.mxu0 0.0
    %2222 = vmatpush1.msra.mxu0 0.0
    %2223 = vmatprep.subr.mxu0 0.0
    %2224 = vmatpush1.msra.mxu0 0.0
    %2225 = vmatprep.subr.mxu0 0.0
    %2226 = vmatpush1.msra.mxu0 0.0
    %2227 = vmatprep.subr.mxu0 0.0
    %2228 = vmatpush1.msra.mxu0 0.0
    %2229 = vmatprep.subr.mxu0 0.0
    %2230 = vmatpush1.msra.mxu0 0.0
    %2231 = vmatprep.subr.mxu0 0.0
    %2232 = vmatpush1.msra.mxu0 0.0
    %2233 = vmatprep.subr.mxu0 0.0
    %2234 = vmatpush1.msra.mxu0 0.0
    %2235 = vmatprep.subr.mxu0 0.0
    %2236 = vmatpush1.msra.mxu0 0.0
    %2237 = vmatprep.subr.mxu0 0.0
    %2238 = vmatpush1.msra.mxu0 0.0
    %2239 = vmatprep.subr.mxu0 0.0
    %2240 = vmatpush1.msra.mxu0 0.0
    %2241 = vmatprep.subr.mxu0 0.0
    %2242 = vmatpush1.msra.mxu0 0.0
    %2243 = vmatprep.subr.mxu0 0.0
    %2244 = vmatpush1.msra.mxu0 0.0
    %2245 = vmatprep.subr.mxu0 0.0
    %2246 = vmatpush1.msra.mxu0 0.0
    %2247 = vmatprep.subr.mxu0 0.0
    %2248 = vmatpush1.msra.mxu0 0.0
    %2249 = vmatprep.subr.mxu0 0.0
    %2250 = vmatpush1.msra.mxu0 0.0
    %2251 = vmatprep.subr.mxu0 0.0
    %2252 = vmatpush1.msra.mxu0 0.0
    %2253 = vmatprep.subr.mxu0 0.0
    %2254 = vmatpush1.msra.mxu0 0.0
    %2255 = vmatprep.subr.mxu0 0.0
    %2256 = vmatpush1.msra.mxu0 0.0
    %2257 = vmatprep.subr.mxu0 0.0
    %2258 = vmatpush1.msra.mxu0 0.0
    %2259 = vmatprep.subr.mxu0 0.0
    %2260 = vmatpush1.msra.mxu0 0.0
    %2261 = vmatprep.subr.mxu0 0.0
    %2262 = vmatpush1.msra.mxu0 0.0
    %2263 = vmatprep.subr.mxu0 0.0
    %2264 = vmatpush1.msra.mxu0 0.0
    %2265 = vmatprep.subr.mxu0 0.0
    %2266 = vmatpush1.msra.mxu0 0.0
    %2267 = vmatprep.subr.mxu0 0.0
    %2268 = vmatpush1.msra.mxu0 0.0
    %2269 = vmatprep.subr.mxu0 0.0
    %2270 = vmatpush1.msra.mxu0 0.0
    %2271 = vmatprep.subr.mxu0 0.0
    %2272 = vmatpush1.msra.mxu0 0.0
    %2273 = vmatprep.subr.mxu0 0.0
    %2274 = vmatpush1.msra.mxu0 0.0
    %2275 = vmatprep.subr.mxu0 0.0
    %2276 = vmatpush1.msra.mxu0 0.0
    %2277 = vmatprep.mubr.f32.mxu0 0.0
    %2278 = vmatmul.mubr.f32.gmra.mrb[0].mxu0 %v2190
    %v2279 = vpop.f32.mrb[0].mxu0
    %v2280 = vadd.f32 0.0, %v2279
    %v2281 = vpop.f32.mrb[0].mxu0
    %2282 = vmatprep.mubr.f32.mxu0 0.0
    %2283 = vmatmul.mubr.f32.gmra.mrb[0].mxu0 %v2193
    %v2284 = vpop.f32.mrb[0].mxu0
    %v2285 = vadd.f32 0.0, %v2284
    %v2286 = vpop.f32.mrb[0].mxu0
    %2287 = vmatprep.mubr.f32.mxu0 0.0
    %2288 = vmatmul.mubr.f32.gmra.mrb[0].mxu0 %v2196
    %v2289 = vpop.f32.mrb[0].mxu0
    %v2290 = vadd.f32 0.0, %v2289
    %v2291 = vpop.f32.mrb[0].mxu0
    %2292 = vmatprep.mubr.f32.mxu0 0.0
    %2293 = vmatmul.mubr.f32.gmra.mrb[0].mxu0 %v2199
    %v2294 = vpop.f32.mrb[0].mxu0
    %v2295 = vadd.f32 0.0, %v2294
    %v2296 = vpop.f32.mrb[0].mxu0
    %2297 = vmatprep.mubr.f32.mxu0 0.0
    %2298 = vmatmul.mubr.f32.gmra.mrb[0].mxu0 %v2202
    %v2299 = vpop.f32.mrb[0].mxu0
    %v2300 = vadd.f32 0.0, %v2299
    %v2301 = vpop.f32.mrb[0].mxu0
    %2302 = vmatprep.mubr.f32.mxu0 0.0
    %2303 = vmatmul.mubr.f32.gmra.mrb[0].mxu0 %v2205
    %v2304 = vpop.f32.mrb[0].mxu0
    %v2305 = vadd.f32 0.0, %v2304
    %v2306 = vpop.f32.mrb[0].mxu0
    %2307 = vmatprep.mubr.f32.mxu0 0.0
    %2308 = vmatmul.mubr.f32.gmra.mrb[0].mxu0 %v2208
    %v2309 = vpop.f32.mrb[0].mxu0
    %v2310 = vadd.f32 0.0, %v2309
    %v2311 = vpop.f32.mrb[0].mxu0
    %2312 = vdwg.mxu0
    %v2313 = vlaneseq
    %v2314 = vshrl.u32 %v2313, 7
    %v2315 = vsub.s32 0, %v2314
    %v2316 = vrot.slane %v2181, %v2315
    %v2317 = vadd.f32 %v2316, %v2280
    %v2318 = vadd.f32 %v2316, %v2285
    %v2319 = vadd.f32 %v2316, %v2290
    %v2320 = vadd.f32 %v2316, %v2295
    %v2321 = vadd.f32 %v2316, %v2300
    %v2322 = vadd.f32 %v2316, %v2305
    %v2323 = vadd.f32 %v2316, %v2310
    %v2324 = vld [vmem:[#allocation7 + $0x158] sm:$0xff]
    %v2325 = vld [vmem:[#allocation7 + $0x160] sm:$0xff]
    %v2326 = vld [vmem:[#allocation7 + $0x168] sm:$0xff]
    %v2327 = vld [vmem:[#allocation7 + $0x170] sm:$0xff]
    %v2328 = vld [vmem:[#allocation7 + $0x178] sm:$0xff]
    %v2329 = vld [vmem:[#allocation7 + $0x180] sm:$0xff]
    %v2330 = vld [vmem:[#allocation7 + $0x188] sm:$0xff]
    %v2332 = vsel %vm1696, %v2324, 0
    %v2335 = vsel %vm1696, %v2325, 0
    %v2338 = vsel %vm1696, %v2326, 0
    %v2341 = vsel %vm1696, %v2327, 0
    %v2344 = vsel %vm1696, %v2328, 0
    %v2347 = vsel %vm1696, %v2329, 0
    %v2350 = vsel %vm1696, %v2330, 0
    %v2353 = vsel %vm155, %v2130, 0
    %2355 = vmatprep.subr.mxu0 0.0
    %2356 = vmatpush1.msra.mxu0 %v2116
    %2357 = vmatprep.subr.mxu0 0.0
    %2358 = vmatpush1.msra.mxu0 %v2120
    %2359 = vmatprep.subr.mxu0 0.0
    %2360 = vmatpush1.msra.mxu0 %v2126
    %2361 = vmatprep.subr.mxu0 0.0
    %2362 = vmatpush1.msra.mxu0 %v2353
    %2363 = vmatprep.subr.mxu0 0.0
    %2364 = vmatpush1.msra.mxu0 0.0
    %2365 = vmatprep.subr.mxu0 0.0
    %2366 = vmatpush1.msra.mxu0 0.0
    %2367 = vmatprep.subr.mxu0 0.0
    %2368 = vmatpush1.msra.mxu0 0.0
    %2369 = vmatprep.subr.mxu0 0.0
    %2370 = vmatpush1.msra.mxu0 0.0
    %2371 = vmatprep.subr.mxu0 0.0
    %2372 = vmatpush1.msra.mxu0 0.0
    %2373 = vmatprep.subr.mxu0 0.0
    %2374 = vmatpush1.msra.mxu0 0.0
    %2375 = vmatprep.subr.mxu0 0.0
    %2376 = vmatpush1.msra.mxu0 0.0
    %2377 = vmatprep.subr.mxu0 0.0
    %2378 = vmatpush1.msra.mxu0 0.0
    %2379 = vmatprep.subr.mxu0 0.0
    %2380 = vmatpush1.msra.mxu0 0.0
    %2381 = vmatprep.subr.mxu0 0.0
    %2382 = vmatpush1.msra.mxu0 0.0
    %2383 = vmatprep.subr.mxu0 0.0
    %2384 = vmatpush1.msra.mxu0 0.0
    %2385 = vmatprep.subr.mxu0 0.0
    %2386 = vmatpush1.msra.mxu0 0.0
    %2387 = vmatprep.subr.mxu0 0.0
    %2388 = vmatpush1.msra.mxu0 0.0
    %2389 = vmatprep.subr.mxu0 0.0
    %2390 = vmatpush1.msra.mxu0 0.0
    %2391 = vmatprep.subr.mxu0 0.0
    %2392 = vmatpush1.msra.mxu0 0.0
    %2393 = vmatprep.subr.mxu0 0.0
    %2394 = vmatpush1.msra.mxu0 0.0
    %2395 = vmatprep.subr.mxu0 0.0
    %2396 = vmatpush1.msra.mxu0 0.0
    %2397 = vmatprep.subr.mxu0 0.0
    %2398 = vmatpush1.msra.mxu0 0.0
    %2399 = vmatprep.subr.mxu0 0.0
    %2400 = vmatpush1.msra.mxu0 0.0
    %2401 = vmatprep.subr.mxu0 0.0
    %2402 = vmatpush1.msra.mxu0 0.0
    %2403 = vmatprep.subr.mxu0 0.0
    %2404 = vmatpush1.msra.mxu0 0.0
    %2405 = vmatprep.subr.mxu0 0.0
    %2406 = vmatpush1.msra.mxu0 0.0
    %2407 = vmatprep.subr.mxu0 0.0
    %2408 = vmatpush1.msra.mxu0 0.0
    %2409 = vmatprep.subr.mxu0 0.0
    %2410 = vmatpush1.msra.mxu0 0.0
    %2411 = vmatprep.subr.mxu0 0.0
    %2412 = vmatpush1.msra.mxu0 0.0
    %2413 = vmatprep.subr.mxu0 0.0
    %2414 = vmatpush1.msra.mxu0 0.0
    %2415 = vmatprep.subr.mxu0 0.0
    %2416 = vmatpush1.msra.mxu0 0.0
    %2417 = vmatprep.subr.mxu0 0.0
    %2418 = vmatpush1.msra.mxu0 0.0
    %2419 = vmatprep.mubr.f32.mxu0 0.0
    %2420 = vmatmul.mubr.f32.gmra.mrb[0].mxu0 %v2332
    %v2421 = vpop.f32.mrb[0].mxu0
    %v2422 = vadd.f32 0.0, %v2421
    %v2423 = vpop.f32.mrb[0].mxu0
    %2424 = vmatprep.mubr.f32.mxu0 0.0
    %2425 = vmatmul.mubr.f32.gmra.mrb[0].mxu0 %v2335
    %v2426 = vpop.f32.mrb[0].mxu0
    %v2427 = vadd.f32 0.0, %v2426
    %v2428 = vpop.f32.mrb[0].mxu0
    %2429 = vmatprep.mubr.f32.mxu0 0.0
    %2430 = vmatmul.mubr.f32.gmra.mrb[0].mxu0 %v2338
    %v2431 = vpop.f32.mrb[0].mxu0
    %v2432 = vadd.f32 0.0, %v2431
    %v2433 = vpop.f32.mrb[0].mxu0
    %2434 = vmatprep.mubr.f32.mxu0 0.0
    %2435 = vmatmul.mubr.f32.gmra.mrb[0].mxu0 %v2341
    %v2436 = vpop.f32.mrb[0].mxu0
    %v2437 = vadd.f32 0.0, %v2436
    %v2438 = vpop.f32.mrb[0].mxu0
    %2439 = vmatprep.mubr.f32.mxu0 0.0
    %2440 = vmatmul.mubr.f32.gmra.mrb[0].mxu0 %v2344
    %v2441 = vpop.f32.mrb[0].mxu0
    %v2442 = vadd.f32 0.0, %v2441
    %v2443 = vpop.f32.mrb[0].mxu0
    %2444 = vmatprep.mubr.f32.mxu0 0.0
    %2445 = vmatmul.mubr.f32.gmra.mrb[0].mxu0 %v2347
    %v2446 = vpop.f32.mrb[0].mxu0
    %v2447 = vadd.f32 0.0, %v2446
    %v2448 = vpop.f32.mrb[0].mxu0
    %2449 = vmatprep.mubr.f32.mxu0 0.0
    %2450 = vmatmul.mubr.f32.gmra.mrb[0].mxu0 %v2350
    %v2451 = vpop.f32.mrb[0].mxu0
    %v2452 = vadd.f32 0.0, %v2451
    %v2453 = vpop.f32.mrb[0].mxu0
    %2454 = vdwg.mxu0
    %v2455 = vadd.f32 %v2317, %v2422
    %v2456 = vadd.f32 %v2318, %v2427
    %v2457 = vadd.f32 %v2319, %v2432
    %v2458 = vadd.f32 %v2320, %v2437
    %v2459 = vadd.f32 %v2321, %v2442
    %v2460 = vadd.f32 %v2322, %v2447
    %v2461 = vadd.f32 %v2323, %v2452
    %v2462 = vld [vmem:[#allocation7 + $0x190] sm:$0xff]
    %v2463 = vld [vmem:[#allocation7 + $0x198] sm:$0xff]
    %v2464 = vld [vmem:[#allocation7 + $0x1a0] sm:$0xff]
    %v2465 = vld [vmem:[#allocation7 + $0x1a8] sm:$0xff]
    %v2466 = vld [vmem:[#allocation7 + $0x1b0] sm:$0xff]
    %v2467 = vld [vmem:[#allocation7 + $0x1b8] sm:$0xff]
    %v2468 = vld [vmem:[#allocation7 + $0x1c0] sm:$0xff]
    %v2470 = vsel %vm1696, %v2462, 0
    %v2473 = vsel %vm1696, %v2463, 0
    %v2476 = vsel %vm1696, %v2464, 0
    %v2479 = vsel %vm1696, %v2465, 0
    %v2482 = vsel %vm1696, %v2466, 0
    %v2485 = vsel %vm1696, %v2467, 0
    %v2488 = vsel %vm1696, %v2468, 0
    %v2491 = vsel %vm155, %v2178, 0
    %2493 = vmatprep.subr.mxu0 0.0
    %2494 = vmatpush1.msra.mxu0 %v2167
    %2495 = vmatprep.subr.mxu0 0.0
    %2496 = vmatpush1.msra.mxu0 %v2170
    %2497 = vmatprep.subr.mxu0 0.0
    %2498 = vmatpush1.msra.mxu0 %v2175
    %2499 = vmatprep.subr.mxu0 0.0
    %2500 = vmatpush1.msra.mxu0 %v2491
    %2501 = vmatprep.subr.mxu0 0.0
    %2502 = vmatpush1.msra.mxu0 0.0
    %2503 = vmatprep.subr.mxu0 0.0
    %2504 = vmatpush1.msra.mxu0 0.0
    %2505 = vmatprep.subr.mxu0 0.0
    %2506 = vmatpush1.msra.mxu0 0.0
    %2507 = vmatprep.subr.mxu0 0.0
    %2508 = vmatpush1.msra.mxu0 0.0
    %2509 = vmatprep.subr.mxu0 0.0
    %2510 = vmatpush1.msra.mxu0 0.0
    %2511 = vmatprep.subr.mxu0 0.0
    %2512 = vmatpush1.msra.mxu0 0.0
    %2513 = vmatprep.subr.mxu0 0.0
    %2514 = vmatpush1.msra.mxu0 0.0
    %2515 = vmatprep.subr.mxu0 0.0
    %2516 = vmatpush1.msra.mxu0 0.0
    %2517 = vmatprep.subr.mxu0 0.0
    %2518 = vmatpush1.msra.mxu0 0.0
    %2519 = vmatprep.subr.mxu0 0.0
    %2520 = vmatpush1.msra.mxu0 0.0
    %2521 = vmatprep.subr.mxu0 0.0
    %2522 = vmatpush1.msra.mxu0 0.0
    %2523 = vmatprep.subr.mxu0 0.0
    %2524 = vmatpush1.msra.mxu0 0.0
    %2525 = vmatprep.subr.mxu0 0.0
    %2526 = vmatpush1.msra.mxu0 0.0
    %2527 = vmatprep.subr.mxu0 0.0
    %2528 = vmatpush1.msra.mxu0 0.0
    %2529 = vmatprep.subr.mxu0 0.0
    %2530 = vmatpush1.msra.mxu0 0.0
    %2531 = vmatprep.subr.mxu0 0.0
    %2532 = vmatpush1.msra.mxu0 0.0
    %2533 = vmatprep.subr.mxu0 0.0
    %2534 = vmatpush1.msra.mxu0 0.0
    %2535 = vmatprep.subr.mxu0 0.0
    %2536 = vmatpush1.msra.mxu0 0.0
    %2537 = vmatprep.subr.mxu0 0.0
    %2538 = vmatpush1.msra.mxu0 0.0
    %2539 = vmatprep.subr.mxu0 0.0
    %2540 = vmatpush1.msra.mxu0 0.0
    %2541 = vmatprep.subr.mxu0 0.0
    %2542 = vmatpush1.msra.mxu0 0.0
    %2543 = vmatprep.subr.mxu0 0.0
    %2544 = vmatpush1.msra.mxu0 0.0
    %2545 = vmatprep.subr.mxu0 0.0
    %2546 = vmatpush1.msra.mxu0 0.0
    %2547 = vmatprep.subr.mxu0 0.0
    %2548 = vmatpush1.msra.mxu0 0.0
    %2549 = vmatprep.subr.mxu0 0.0
    %2550 = vmatpush1.msra.mxu0 0.0
    %2551 = vmatprep.subr.mxu0 0.0
    %2552 = vmatpush1.msra.mxu0 0.0
    %2553 = vmatprep.subr.mxu0 0.0
    %2554 = vmatpush1.msra.mxu0 0.0
    %2555 = vmatprep.subr.mxu0 0.0
    %2556 = vmatpush1.msra.mxu0 0.0
    %2557 = vmatprep.mubr.f32.mxu0 0.0
    %2558 = vmatmul.mubr.f32.gmra.mrb[0].mxu0 %v2470
    %v2559 = vpop.f32.mrb[0].mxu0
    %v2560 = vadd.f32 0.0, %v2559
    %v2561 = vpop.f32.mrb[0].mxu0
    %2562 = vmatprep.mubr.f32.mxu0 0.0
    %2563 = vmatmul.mubr.f32.gmra.mrb[0].mxu0 %v2473
    %v2564 = vpop.f32.mrb[0].mxu0
    %v2565 = vadd.f32 0.0, %v2564
    %v2566 = vpop.f32.mrb[0].mxu0
    %2567 = vmatprep.mubr.f32.mxu0 0.0
    %2568 = vmatmul.mubr.f32.gmra.mrb[0].mxu0 %v2476
    %v2569 = vpop.f32.mrb[0].mxu0
    %v2570 = vadd.f32 0.0, %v2569
    %v2571 = vpop.f32.mrb[0].mxu0
    %2572 = vmatprep.mubr.f32.mxu0 0.0
    %2573 = vmatmul.mubr.f32.gmra.mrb[0].mxu0 %v2479
    %v2574 = vpop.f32.mrb[0].mxu0
    %v2575 = vadd.f32 0.0, %v2574
    %v2576 = vpop.f32.mrb[0].mxu0
    %2577 = vmatprep.mubr.f32.mxu0 0.0
    %2578 = vmatmul.mubr.f32.gmra.mrb[0].mxu0 %v2482
    %v2579 = vpop.f32.mrb[0].mxu0
    %v2580 = vadd.f32 0.0, %v2579
    %v2581 = vpop.f32.mrb[0].mxu0
    %2582 = vmatprep.mubr.f32.mxu0 0.0
    %2583 = vmatmul.mubr.f32.gmra.mrb[0].mxu0 %v2485
    %v2584 = vpop.f32.mrb[0].mxu0
    %v2585 = vadd.f32 0.0, %v2584
    %v2586 = vpop.f32.mrb[0].mxu0
    %2587 = vmatprep.mubr.f32.mxu0 0.0
    %2588 = vmatmul.mubr.f32.gmra.mrb[0].mxu0 %v2488
    %v2589 = vpop.f32.mrb[0].mxu0
    %v2590 = vadd.f32 0.0, %v2589
    %v2591 = vpop.f32.mrb[0].mxu0
    %2592 = vdwg.mxu0
    %v2593 = vadd.f32 %v2455, %v2560
    %v2594 = vadd.f32 %v2456, %v2565
    %v2595 = vadd.f32 %v2457, %v2570
    %v2596 = vadd.f32 %v2458, %v2575
    %v2597 = vadd.f32 %v2459, %v2580
    %v2598 = vadd.f32 %v2460, %v2585
    %v2599 = vadd.f32 %v2461, %v2590
    %v2600 = vmul.f32 %v2593, 0.2
    %v2601 = vmul.f32 %v2594, 0.2
    %v2602 = vmul.f32 %v2595, 0.2
    %v2603 = vmul.f32 %v2596, 0.2
    %v2604 = vmul.f32 %v2597, 0.2
    %v2605 = vmul.f32 %v2598, 0.2
    %v2606 = vmul.f32 %v2599, 0.2
    %v2607 = vmax.f32 %v2593, %v2600
    %v2608 = vmax.f32 %v2594, %v2601
    %v2609 = vmax.f32 %v2595, %v2602
    %v2610 = vmax.f32 %v2596, %v2603
    %v2611 = vmax.f32 %v2597, %v2604
    %v2612 = vmax.f32 %v2598, %v2605
    %v2613 = vmax.f32 %v2599, %v2606
    %v2614 = vpack.c.bf16 %v2608, %v2607
    %v2615 = vpack.c.bf16 %v2610, %v2609
    %v2616 = vpack.c.bf16 %v2612, %v2611
    %v2617 = vpack.c.bf16 %v2613, %v2613
    %v2618 = vld [vmem:[#allocation5 + $0x414] sm:$0xff]
    %v2619 = vld [vmem:[#allocation5 + $0x41c] sm:$0xf]
    %v2620 = vld [vmem:[#allocation5 + $0x420] sm:$0xff]
    %v2621 = vld [vmem:[#allocation5 + $0x428] sm:$0xf]
    %v2622 = vld [vmem:[#allocation5 + $0x42c] sm:$0xff]
    %v2623 = vld [vmem:[#allocation5 + $0x434] sm:$0xf]
    %v2624 = vld [vmem:[#allocation5 + $0x438] sm:$0xff]
    %v2625 = vld [vmem:[#allocation5 + $0x440] sm:$0xf]
    %v2626 = vld [vmem:[#allocation5 + $0x444] sm:$0xff]
    %v2627 = vld [vmem:[#allocation5 + $0x44c] sm:$0xf]
    %v2628 = vld [vmem:[#allocation5 + $0x450] sm:$0xff]
    %v2629 = vld [vmem:[#allocation5 + $0x458] sm:$0xf]
    %v2630 = vld [vmem:[#allocation5 + $0x45c] sm:$0xff]
    %v2631 = vld [vmem:[#allocation5 + $0x464] sm:$0xf]
    %v2632 = vld [vmem:[#allocation5 + $0x468] sm:$0xff]
    %v2633 = vld [vmem:[#allocation5 + $0x470] sm:$0xf]
    %v2634 = vld [vmem:[#allocation5 + $0x474] sm:$0xff]
    %v2635 = vld [vmem:[#allocation5 + $0x47c] sm:$0xf]
    %v2636 = vld [vmem:[#allocation5 + $0x480] sm:$0xff]
    %v2637 = vld [vmem:[#allocation5 + $0x488] sm:$0xf]
    %v2638 = vld [vmem:[#allocation5 + $0x48c] sm:$0xff]
    %v2639 = vld [vmem:[#allocation5 + $0x494] sm:$0xf]
    %v2640 = vld [vmem:[#allocation5 + $0x498] sm:$0xff]
    %v2641 = vld [vmem:[#allocation5 + $0x4a0] sm:$0xf]
    %v2642 = vld [vmem:[#allocation5 + $0x4a4] sm:$0xff]
    %v2643 = vld [vmem:[#allocation5 + $0x4ac] sm:$0xf]
    %v2644 = vld [vmem:[#allocation5 + $0x4b0] sm:$0xff]
    %v2645 = vld [vmem:[#allocation5 + $0x4b8] sm:$0xf]
    %v2646 = vld [vmem:[#allocation5 + $0x4bc] sm:$0xff]
    %v2647 = vld [vmem:[#allocation5 + $0x4c4] sm:$0xf]
    %v2648 = vld [vmem:[#allocation5 + $0x4c8] sm:$0xff]
    %v2649 = vld [vmem:[#allocation5 + $0x4d0] sm:$0xf]
    %v2682 = vunpack.c.l.b16 %v2618
    %v2683 = vunpack.c.h.b16 %v2618
    %v2684 = vunpack.c.l.b16 %v2619
    %v2685 = vunpack.c.l.b16 %v2620
    %v2686 = vunpack.c.h.b16 %v2620
    %v2687 = vunpack.c.l.b16 %v2621
    %v2688 = vunpack.c.l.b16 %v2622
    %v2689 = vunpack.c.h.b16 %v2622
    %v2690 = vunpack.c.l.b16 %v2623
    %v2691 = vunpack.c.l.b16 %v2624
    %v2692 = vunpack.c.h.b16 %v2624
    %v2693 = vunpack.c.l.b16 %v2625
    %v2694 = vunpack.c.l.b16 %v2626
    %v2695 = vunpack.c.h.b16 %v2626
    %v2696 = vunpack.c.l.b16 %v2627
    %v2697 = vunpack.c.l.b16 %v2628
    %v2698 = vunpack.c.h.b16 %v2628
    %v2699 = vunpack.c.l.b16 %v2629
    %v2700 = vunpack.c.l.b16 %v2630
    %v2701 = vunpack.c.h.b16 %v2630
    %v2702 = vunpack.c.l.b16 %v2631
    %v2703 = vunpack.c.l.b16 %v2632
    %v2704 = vunpack.c.h.b16 %v2632
    %v2705 = vunpack.c.l.b16 %v2633
    %v2706 = vunpack.c.l.b16 %v2634
    %v2707 = vunpack.c.h.b16 %v2634
    %v2708 = vunpack.c.l.b16 %v2635
    %v2709 = vunpack.c.l.b16 %v2636
    %v2710 = vunpack.c.h.b16 %v2636
    %v2711 = vunpack.c.l.b16 %v2637
    %v2712 = vunpack.c.l.b16 %v2638
    %v2713 = vunpack.c.h.b16 %v2638
    %v2714 = vunpack.c.l.b16 %v2639
    %v2715 = vunpack.c.l.b16 %v2640
    %v2716 = vunpack.c.h.b16 %v2640
    %v2717 = vunpack.c.l.b16 %v2641
    %v2718 = vunpack.c.l.b16 %v2642
    %v2719 = vunpack.c.h.b16 %v2642
    %v2720 = vunpack.c.l.b16 %v2643
    %v2721 = vunpack.c.l.b16 %v2644
    %v2722 = vunpack.c.h.b16 %v2644
    %v2723 = vunpack.c.l.b16 %v2645
    %v2724 = vunpack.c.l.b16 %v2646
    %v2725 = vunpack.c.h.b16 %v2646
    %v2726 = vunpack.c.l.b16 %v2647
    %v2727 = vunpack.c.l.b16 %v2648
    %v2728 = vunpack.c.h.b16 %v2648
    %v2729 = vunpack.c.l.b16 %v2649
    %v2730 = vpack.c.b16 %v2685, %v2682
    %v2731 = vpack.c.b16 %v2686, %v2683
    %v2732 = vpack.c.b16 %v2687, %v2684
    %v2733 = vpack.c.b16 %v2691, %v2688
    %v2734 = vpack.c.b16 %v2692, %v2689
    %v2735 = vpack.c.b16 %v2693, %v2690
    %v2736 = vpack.c.b16 %v2697, %v2694
    %v2737 = vpack.c.b16 %v2698, %v2695
    %v2738 = vpack.c.b16 %v2699, %v2696
    %v2739 = vpack.c.b16 %v2703, %v2700
    %v2740 = vpack.c.b16 %v2704, %v2701
    %v2741 = vpack.c.b16 %v2705, %v2702
    %v2742 = vpack.c.b16 %v2709, %v2706
    %v2743 = vpack.c.b16 %v2710, %v2707
    %v2744 = vpack.c.b16 %v2711, %v2708
    %v2745 = vpack.c.b16 %v2715, %v2712
    %v2746 = vpack.c.b16 %v2716, %v2713
    %v2747 = vpack.c.b16 %v2717, %v2714
    %v2748 = vpack.c.b16 %v2721, %v2718
    %v2749 = vpack.c.b16 %v2722, %v2719
    %v2750 = vpack.c.b16 %v2723, %v2720
    %v2751 = vpack.c.b16 %v2727, %v2724
    %v2752 = vpack.c.b16 %v2728, %v2725
    %v2753 = vpack.c.b16 %v2729, %v2726
    %2778 = vmatprep.subr.bf16.mxu0 %v2731
    %2779 = vmatpush1.bf16.msra.mxu0 %v2730
    %2780 = vmatprep.subr.bf16.mxu0 %v2734
    %2781 = vmatpush1.bf16.msra.mxu0 %v2733
    %2782 = vmatprep.subr.bf16.mxu0 %v2737
    %2783 = vmatpush1.bf16.msra.mxu0 %v2736
    %2784 = vmatprep.subr.bf16.mxu0 %v2740
    %2785 = vmatpush1.bf16.msra.mxu0 %v2739
    %2786 = vmatprep.subr.bf16.mxu0 %v2743
    %2787 = vmatpush1.bf16.msra.mxu0 %v2742
    %2788 = vmatprep.subr.bf16.mxu0 %v2746
    %2789 = vmatpush1.bf16.msra.mxu0 %v2745
    %2790 = vmatprep.subr.bf16.mxu0 %v2749
    %2791 = vmatpush1.bf16.msra.mxu0 %v2748
    %2792 = vmatprep.subr.bf16.mxu0 %v2752
    %2793 = vmatpush1.bf16.msra.mxu0 %v2751
    %2794 = vmatprep.subr.bf16.mxu0 0
    %2795 = vmatpush1.bf16.msra.mxu0 0
    %2796 = vmatprep.subr.bf16.mxu0 0
    %2797 = vmatpush1.bf16.msra.mxu0 0
    %2798 = vmatprep.subr.bf16.mxu0 0
    %2799 = vmatpush1.bf16.msra.mxu0 0
    %2800 = vmatprep.subr.bf16.mxu0 0
    %2801 = vmatpush1.bf16.msra.mxu0 0
    %2802 = vmatprep.subr.bf16.mxu0 0
    %2803 = vmatpush1.bf16.msra.mxu0 0
    %2804 = vmatprep.subr.bf16.mxu0 0
    %2805 = vmatpush1.bf16.msra.mxu0 0
    %2806 = vmatprep.subr.bf16.mxu0 0
    %2807 = vmatpush1.bf16.msra.mxu0 0
    %2808 = vmatprep.subr.bf16.mxu0 0
    %2809 = vmatpush1.bf16.msra.mxu0 0
    %2810 = vmatprep.mubr.bf16.mxu0 0
    %2811 = vmatmul.mubr.bf16.gmra.mrb[0].mxu0 %v2614
    %v2812 = vpop.f32.mrb[0].mxu0
    %v2813 = vadd.f32 0.0, %v2812
    %v2814 = vpop.f32.mrb[0].mxu0
    %v2815 = vadd.f32 0.0, %v2814
    %v2816 = vpop.f32.mrb[0].mxu0
    %v2817 = vadd.f32 0.0, %v2816
    %v2818 = vpop.f32.mrb[0].mxu0
    %v2819 = vadd.f32 0.0, %v2818
    %2820 = vmatprep.mubr.bf16.mxu0 0
    %2821 = vmatmul.mubr.bf16.gmra.mrb[0].mxu0 %v2615
    %v2822 = vpop.f32.mrb[0].mxu0
    %v2823 = vadd.f32 0.0, %v2822
    %v2824 = vpop.f32.mrb[0].mxu0
    %v2825 = vadd.f32 0.0, %v2824
    %v2826 = vpop.f32.mrb[0].mxu0
    %v2827 = vadd.f32 0.0, %v2826
    %v2828 = vpop.f32.mrb[0].mxu0
    %v2829 = vadd.f32 0.0, %v2828
    %2830 = vmatprep.mubr.bf16.mxu0 0
    %2831 = vmatmul.mubr.bf16.gmra.mrb[0].mxu0 %v2616
    %v2832 = vpop.f32.mrb[0].mxu0
    %v2833 = vadd.f32 0.0, %v2832
    %v2834 = vpop.f32.mrb[0].mxu0
    %v2835 = vadd.f32 0.0, %v2834
    %v2836 = vpop.f32.mrb[0].mxu0
    %v2837 = vadd.f32 0.0, %v2836
    %v2838 = vpop.f32.mrb[0].mxu0
    %v2839 = vadd.f32 0.0, %v2838
    %2840 = vmatprep.mubr.bf16.mxu0 0
    %2841 = vmatmul.mubr.bf16.gmra.mrb[0].mxu0 %v2617
    %v2842 = vpop.f32.mrb[0].mxu0
    %v2843 = vadd.f32 0.0, %v2842
    %v2844 = vpop.f32.mrb[0].mxu0
    %v2845 = vadd.f32 0.0, %v2844
    %v2846 = vpop.f32.mrb[0].mxu0
    %v2847 = vpop.f32.mrb[0].mxu0
    %2848 = vdwg.mxu0
    %2849 = vmatprep.subr.bf16.mxu0 0
    %2850 = vmatpush1.bf16.msra.mxu0 %v2732
    %2851 = vmatprep.subr.bf16.mxu0 0
    %2852 = vmatpush1.bf16.msra.mxu0 %v2735
    %2853 = vmatprep.subr.bf16.mxu0 0
    %2854 = vmatpush1.bf16.msra.mxu0 %v2738
    %2855 = vmatprep.subr.bf16.mxu0 0
    %2856 = vmatpush1.bf16.msra.mxu0 %v2741
    %2857 = vmatprep.subr.bf16.mxu0 0
    %2858 = vmatpush1.bf16.msra.mxu0 %v2744
    %2859 = vmatprep.subr.bf16.mxu0 0
    %2860 = vmatpush1.bf16.msra.mxu0 %v2747
    %2861 = vmatprep.subr.bf16.mxu0 0
    %2862 = vmatpush1.bf16.msra.mxu0 %v2750
    %2863 = vmatprep.subr.bf16.mxu0 0
    %2864 = vmatpush1.bf16.msra.mxu0 %v2753
    %2865 = vmatprep.subr.bf16.mxu0 0
    %2866 = vmatpush1.bf16.msra.mxu0 0
    %2867 = vmatprep.subr.bf16.mxu0 0
    %2868 = vmatpush1.bf16.msra.mxu0 0
    %2869 = vmatprep.subr.bf16.mxu0 0
    %2870 = vmatpush1.bf16.msra.mxu0 0
    %2871 = vmatprep.subr.bf16.mxu0 0
    %2872 = vmatpush1.bf16.msra.mxu0 0
    %2873 = vmatprep.subr.bf16.mxu0 0
    %2874 = vmatpush1.bf16.msra.mxu0 0
    %2875 = vmatprep.subr.bf16.mxu0 0
    %2876 = vmatpush1.bf16.msra.mxu0 0
    %2877 = vmatprep.subr.bf16.mxu0 0
    %2878 = vmatpush1.bf16.msra.mxu0 0
    %2879 = vmatprep.subr.bf16.mxu0 0
    %2880 = vmatpush1.bf16.msra.mxu0 0
    %2881 = vmatprep.mubr.bf16.mxu0 0
    %2882 = vmatmul.mubr.bf16.gmra.mrb[0].mxu0 %v2614
    %v2883 = vpop.f32.mrb[0].mxu0
    %v2884 = vadd.f32 0.0, %v2883
    %v2885 = vpop.f32.mrb[0].mxu0
    %v2886 = vpop.f32.mrb[0].mxu0
    %v2887 = vadd.f32 0.0, %v2886
    %v2888 = vpop.f32.mrb[0].mxu0
    %2889 = vmatprep.mubr.bf16.mxu0 0
    %2890 = vmatmul.mubr.bf16.gmra.mrb[0].mxu0 %v2615
    %v2891 = vpop.f32.mrb[0].mxu0
    %v2892 = vadd.f32 0.0, %v2891
    %v2893 = vpop.f32.mrb[0].mxu0
    %v2894 = vpop.f32.mrb[0].mxu0
    %v2895 = vadd.f32 0.0, %v2894
    %v2896 = vpop.f32.mrb[0].mxu0
    %2897 = vmatprep.mubr.bf16.mxu0 0
    %2898 = vmatmul.mubr.bf16.gmra.mrb[0].mxu0 %v2616
    %v2899 = vpop.f32.mrb[0].mxu0
    %v2900 = vadd.f32 0.0, %v2899
    %v2901 = vpop.f32.mrb[0].mxu0
    %v2902 = vpop.f32.mrb[0].mxu0
    %v2903 = vadd.f32 0.0, %v2902
    %v2904 = vpop.f32.mrb[0].mxu0
    %2905 = vmatprep.mubr.bf16.mxu0 0
    %2906 = vmatmul.mubr.bf16.gmra.mrb[0].mxu0 %v2617
    %v2907 = vpop.f32.mrb[0].mxu0
    %v2908 = vadd.f32 0.0, %v2907
    %v2909 = vpop.f32.mrb[0].mxu0
    %v2910 = vpop.f32.mrb[0].mxu0
    %v2911 = vpop.f32.mrb[0].mxu0
    %2912 = vdwg.mxu0
    %v2913 = vld [vmem:[#allocation7 + $0x1c8] sm:$0x1]
    %v2914 = vlaneseq
    %v2915 = vshrl.u32 %v2914, 7
    %v2916 = vsub.s32 0, %v2915
    %v2917 = vrot.slane %v2913, %v2916
    %v2918 = vadd.f32 %v2917, %v2815
    %v2919 = vadd.f32 %v2917, %v2819
    %v2920 = vadd.f32 %v2917, %v2825
    %v2921 = vadd.f32 %v2917, %v2829
    %v2922 = vadd.f32 %v2917, %v2835
    %v2923 = vadd.f32 %v2917, %v2839
    %v2924 = vadd.f32 %v2917, %v2845
    %v2925 = vld [vmem:[#allocation7 + $0x1d0] sm:$0xff]
    %v2926 = vld [vmem:[#allocation7 + $0x1d8] sm:$0xff]
    %v2927 = vld [vmem:[#allocation7 + $0x1e0] sm:$0xff]
    %v2928 = vld [vmem:[#allocation7 + $0x1e8] sm:$0xff]
    %v2929 = vld [vmem:[#allocation7 + $0x1f0] sm:$0xff]
    %v2930 = vld [vmem:[#allocation7 + $0x1f8] sm:$0xff]
    %v2931 = vld [vmem:[#allocation7 + $0x200] sm:$0xff]
    %vm2932 = vcmask 457728
    %v2934 = vsel %vm2932, %v2925, 0
    %v2937 = vsel %vm2932, %v2926, 0
    %v2940 = vsel %vm2932, %v2927, 0
    %v2943 = vsel %vm2932, %v2928, 0
    %v2946 = vsel %vm2932, %v2929, 0
    %v2949 = vsel %vm2932, %v2930, 0
    %v2952 = vsel %vm2932, %v2931, 0
    %2954 = vmatprep.subr.mxu0 0.0
    %2955 = vmatpush1.msra.mxu0 %v2813
    %2956 = vmatprep.subr.mxu0 0.0
    %2957 = vmatpush1.msra.mxu0 %v2817
    %2958 = vmatprep.subr.mxu0 0.0
    %2959 = vmatpush1.msra.mxu0 %v2823
    %2960 = vmatprep.subr.mxu0 0.0
    %2961 = vmatpush1.msra.mxu0 %v2827
    %2962 = vmatprep.subr.mxu0 0.0
    %2963 = vmatpush1.msra.mxu0 %v2833
    %2964 = vmatprep.subr.mxu0 0.0
    %2965 = vmatpush1.msra.mxu0 %v2837
    %2966 = vmatprep.subr.mxu0 0.0
    %2967 = vmatpush1.msra.mxu0 %v2843
    %2968 = vmatprep.subr.mxu0 0.0
    %2969 = vmatpush1.msra.mxu0 0.0
    %2970 = vmatprep.subr.mxu0 0.0
    %2971 = vmatpush1.msra.mxu0 0.0
    %2972 = vmatprep.subr.mxu0 0.0
    %2973 = vmatpush1.msra.mxu0 0.0
    %2974 = vmatprep.subr.mxu0 0.0
    %2975 = vmatpush1.msra.mxu0 0.0
    %2976 = vmatprep.subr.mxu0 0.0
    %2977 = vmatpush1.msra.mxu0 0.0
    %2978 = vmatprep.subr.mxu0 0.0
    %2979 = vmatpush1.msra.mxu0 0.0
    %2980 = vmatprep.subr.mxu0 0.0
    %2981 = vmatpush1.msra.mxu0 0.0
    %2982 = vmatprep.subr.mxu0 0.0
    %2983 = vmatpush1.msra.mxu0 0.0
    %2984 = vmatprep.subr.mxu0 0.0
    %2985 = vmatpush1.msra.mxu0 0.0
    %2986 = vmatprep.subr.mxu0 0.0
    %2987 = vmatpush1.msra.mxu0 0.0
    %2988 = vmatprep.subr.mxu0 0.0
    %2989 = vmatpush1.msra.mxu0 0.0
    %2990 = vmatprep.subr.mxu0 0.0
    %2991 = vmatpush1.msra.mxu0 0.0
    %2992 = vmatprep.subr.mxu0 0.0
    %2993 = vmatpush1.msra.mxu0 0.0
    %2994 = vmatprep.subr.mxu0 0.0
    %2995 = vmatpush1.msra.mxu0 0.0
    %2996 = vmatprep.subr.mxu0 0.0
    %2997 = vmatpush1.msra.mxu0 0.0
    %2998 = vmatprep.subr.mxu0 0.0
    %2999 = vmatpush1.msra.mxu0 0.0
    %3000 = vmatprep.subr.mxu0 0.0
    %3001 = vmatpush1.msra.mxu0 0.0
    %3002 = vmatprep.subr.mxu0 0.0
    %3003 = vmatpush1.msra.mxu0 0.0
    %3004 = vmatprep.subr.mxu0 0.0
    %3005 = vmatpush1.msra.mxu0 0.0
    %3006 = vmatprep.subr.mxu0 0.0
    %3007 = vmatpush1.msra.mxu0 0.0
    %3008 = vmatprep.subr.mxu0 0.0
    %3009 = vmatpush1.msra.mxu0 0.0
    %3010 = vmatprep.subr.mxu0 0.0
    %3011 = vmatpush1.msra.mxu0 0.0
    %3012 = vmatprep.subr.mxu0 0.0
    %3013 = vmatpush1.msra.mxu0 0.0
    %3014 = vmatprep.subr.mxu0 0.0
    %3015 = vmatpush1.msra.mxu0 0.0
    %3016 = vmatprep.subr.mxu0 0.0
    %3017 = vmatpush1.msra.mxu0 0.0
    %3018 = vmatprep.mubr.f32.mxu0 0.0
    %3019 = vmatmul.mubr.f32.gmra.mrb[0].mxu0 %v2934
    %v3020 = vpop.f32.mrb[0].mxu0
    %v3021 = vadd.f32 0.0, %v3020
    %v3022 = vpop.f32.mrb[0].mxu0
    %3023 = vmatprep.mubr.f32.mxu0 0.0
    %3024 = vmatmul.mubr.f32.gmra.mrb[0].mxu0 %v2937
    %v3025 = vpop.f32.mrb[0].mxu0
    %v3026 = vadd.f32 0.0, %v3025
    %v3027 = vpop.f32.mrb[0].mxu0
    %3028 = vmatprep.mubr.f32.mxu0 0.0
    %3029 = vmatmul.mubr.f32.gmra.mrb[0].mxu0 %v2940
    %v3030 = vpop.f32.mrb[0].mxu0
    %v3031 = vadd.f32 0.0, %v3030
    %v3032 = vpop.f32.mrb[0].mxu0
    %3033 = vmatprep.mubr.f32.mxu0 0.0
    %3034 = vmatmul.mubr.f32.gmra.mrb[0].mxu0 %v2943
    %v3035 = vpop.f32.mrb[0].mxu0
    %v3036 = vadd.f32 0.0, %v3035
    %v3037 = vpop.f32.mrb[0].mxu0
    %3038 = vmatprep.mubr.f32.mxu0 0.0
    %3039 = vmatmul.mubr.f32.gmra.mrb[0].mxu0 %v2946
    %v3040 = vpop.f32.mrb[0].mxu0
    %v3041 = vadd.f32 0.0, %v3040
    %v3042 = vpop.f32.mrb[0].mxu0
    %3043 = vmatprep.mubr.f32.mxu0 0.0
    %3044 = vmatmul.mubr.f32.gmra.mrb[0].mxu0 %v2949
    %v3045 = vpop.f32.mrb[0].mxu0
    %v3046 = vadd.f32 0.0, %v3045
    %v3047 = vpop.f32.mrb[0].mxu0
    %3048 = vmatprep.mubr.f32.mxu0 0.0
    %3049 = vmatmul.mubr.f32.gmra.mrb[0].mxu0 %v2952
    %v3050 = vpop.f32.mrb[0].mxu0
    %v3051 = vadd.f32 0.0, %v3050
    %v3052 = vpop.f32.mrb[0].mxu0
    %3053 = vdwg.mxu0
    %v3054 = vadd.f32 %v2918, %v3021
    %v3055 = vadd.f32 %v2919, %v3026
    %v3056 = vadd.f32 %v2920, %v3031
    %v3057 = vadd.f32 %v2921, %v3036
    %v3058 = vadd.f32 %v2922, %v3041
    %v3059 = vadd.f32 %v2923, %v3046
    %v3060 = vadd.f32 %v2924, %v3051
    %v3061 = vld [vmem:[#allocation7 + $0x208] sm:$0xff]
    %v3062 = vld [vmem:[#allocation7 + $0x210] sm:$0xff]
    %v3063 = vld [vmem:[#allocation7 + $0x218] sm:$0xff]
    %v3064 = vld [vmem:[#allocation7 + $0x220] sm:$0xff]
    %v3065 = vld [vmem:[#allocation7 + $0x228] sm:$0xff]
    %v3066 = vld [vmem:[#allocation7 + $0x230] sm:$0xff]
    %v3067 = vld [vmem:[#allocation7 + $0x238] sm:$0xff]
    %v3069 = vsel %vm2932, %v3061, 0
    %v3072 = vsel %vm2932, %v3062, 0
    %v3075 = vsel %vm2932, %v3063, 0
    %v3078 = vsel %vm2932, %v3064, 0
    %v3081 = vsel %vm2932, %v3065, 0
    %v3084 = vsel %vm2932, %v3066, 0
    %v3087 = vsel %vm2932, %v3067, 0
    %3089 = vmatprep.subr.mxu0 0.0
    %3090 = vmatpush1.msra.mxu0 %v2884
    %3091 = vmatprep.subr.mxu0 0.0
    %3092 = vmatpush1.msra.mxu0 %v2887
    %3093 = vmatprep.subr.mxu0 0.0
    %3094 = vmatpush1.msra.mxu0 %v2892
    %3095 = vmatprep.subr.mxu0 0.0
    %3096 = vmatpush1.msra.mxu0 %v2895
    %3097 = vmatprep.subr.mxu0 0.0
    %3098 = vmatpush1.msra.mxu0 %v2900
    %3099 = vmatprep.subr.mxu0 0.0
    %3100 = vmatpush1.msra.mxu0 %v2903
    %3101 = vmatprep.subr.mxu0 0.0
    %3102 = vmatpush1.msra.mxu0 %v2908
    %3103 = vmatprep.subr.mxu0 0.0
    %3104 = vmatpush1.msra.mxu0 0.0
    %3105 = vmatprep.subr.mxu0 0.0
    %3106 = vmatpush1.msra.mxu0 0.0
    %3107 = vmatprep.subr.mxu0 0.0
    %3108 = vmatpush1.msra.mxu0 0.0
    %3109 = vmatprep.subr.mxu0 0.0
    %3110 = vmatpush1.msra.mxu0 0.0
    %3111 = vmatprep.subr.mxu0 0.0
    %3112 = vmatpush1.msra.mxu0 0.0
    %3113 = vmatprep.subr.mxu0 0.0
    %3114 = vmatpush1.msra.mxu0 0.0
    %3115 = vmatprep.subr.mxu0 0.0
    %3116 = vmatpush1.msra.mxu0 0.0
    %3117 = vmatprep.subr.mxu0 0.0
    %3118 = vmatpush1.msra.mxu0 0.0
    %3119 = vmatprep.subr.mxu0 0.0
    %3120 = vmatpush1.msra.mxu0 0.0
    %3121 = vmatprep.subr.mxu0 0.0
    %3122 = vmatpush1.msra.mxu0 0.0
    %3123 = vmatprep.subr.mxu0 0.0
    %3124 = vmatpush1.msra.mxu0 0.0
    %3125 = vmatprep.subr.mxu0 0.0
    %3126 = vmatpush1.msra.mxu0 0.0
    %3127 = vmatprep.subr.mxu0 0.0
    %3128 = vmatpush1.msra.mxu0 0.0
    %3129 = vmatprep.subr.mxu0 0.0
    %3130 = vmatpush1.msra.mxu0 0.0
    %3131 = vmatprep.subr.mxu0 0.0
    %3132 = vmatpush1.msra.mxu0 0.0
    %3133 = vmatprep.subr.mxu0 0.0
    %3134 = vmatpush1.msra.mxu0 0.0
    %3135 = vmatprep.subr.mxu0 0.0
    %3136 = vmatpush1.msra.mxu0 0.0
    %3137 = vmatprep.subr.mxu0 0.0
    %3138 = vmatpush1.msra.mxu0 0.0
    %3139 = vmatprep.subr.mxu0 0.0
    %3140 = vmatpush1.msra.mxu0 0.0
    %3141 = vmatprep.subr.mxu0 0.0
    %3142 = vmatpush1.msra.mxu0 0.0
    %3143 = vmatprep.subr.mxu0 0.0
    %3144 = vmatpush1.msra.mxu0 0.0
    %3145 = vmatprep.subr.mxu0 0.0
    %3146 = vmatpush1.msra.mxu0 0.0
    %3147 = vmatprep.subr.mxu0 0.0
    %3148 = vmatpush1.msra.mxu0 0.0
    %3149 = vmatprep.subr.mxu0 0.0
    %3150 = vmatpush1.msra.mxu0 0.0
    %3151 = vmatprep.subr.mxu0 0.0
    %3152 = vmatpush1.msra.mxu0 0.0
    %3153 = vmatprep.mubr.f32.mxu0 0.0
    %3154 = vmatmul.mubr.f32.gmra.mrb[0].mxu0 %v3069
    %v3155 = vpop.f32.mrb[0].mxu0
    %v3156 = vadd.f32 0.0, %v3155
    %v3157 = vpop.f32.mrb[0].mxu0
    %3158 = vmatprep.mubr.f32.mxu0 0.0
    %3159 = vmatmul.mubr.f32.gmra.mrb[0].mxu0 %v3072
    %v3160 = vpop.f32.mrb[0].mxu0
    %v3161 = vadd.f32 0.0, %v3160
    %v3162 = vpop.f32.mrb[0].mxu0
    %3163 = vmatprep.mubr.f32.mxu0 0.0
    %3164 = vmatmul.mubr.f32.gmra.mrb[0].mxu0 %v3075
    %v3165 = vpop.f32.mrb[0].mxu0
    %v3166 = vadd.f32 0.0, %v3165
    %v3167 = vpop.f32.mrb[0].mxu0
    %3168 = vmatprep.mubr.f32.mxu0 0.0
    %3169 = vmatmul.mubr.f32.gmra.mrb[0].mxu0 %v3078
    %v3170 = vpop.f32.mrb[0].mxu0
    %v3171 = vadd.f32 0.0, %v3170
    %v3172 = vpop.f32.mrb[0].mxu0
    %3173 = vmatprep.mubr.f32.mxu0 0.0
    %3174 = vmatmul.mubr.f32.gmra.mrb[0].mxu0 %v3081
    %v3175 = vpop.f32.mrb[0].mxu0
    %v3176 = vadd.f32 0.0, %v3175
    %v3177 = vpop.f32.mrb[0].mxu0
    %3178 = vmatprep.mubr.f32.mxu0 0.0
    %3179 = vmatmul.mubr.f32.gmra.mrb[0].mxu0 %v3084
    %v3180 = vpop.f32.mrb[0].mxu0
    %v3181 = vadd.f32 0.0, %v3180
    %v3182 = vpop.f32.mrb[0].mxu0
    %3183 = vmatprep.mubr.f32.mxu0 0.0
    %3184 = vmatmul.mubr.f32.gmra.mrb[0].mxu0 %v3087
    %v3185 = vpop.f32.mrb[0].mxu0
    %v3186 = vadd.f32 0.0, %v3185
    %v3187 = vpop.f32.mrb[0].mxu0
    %3188 = vdwg.mxu0
    %v3189 = vadd.f32 %v3054, %v3156
    %v3190 = vadd.f32 %v3055, %v3161
    %v3191 = vadd.f32 %v3056, %v3166
    %v3192 = vadd.f32 %v3057, %v3171
    %v3193 = vadd.f32 %v3058, %v3176
    %v3194 = vadd.f32 %v3059, %v3181
    %v3195 = vadd.f32 %v3060, %v3186
    %3196 = vst.msk [vmem:[#allocation8] sm:$0xff] %vm1696, %v3189
    %3197 = vst.msk [vmem:[#allocation8 + $0x8] sm:$0xff] %vm1696, %v3190
    %3198 = vst.msk [vmem:[#allocation8 + $0x10] sm:$0xff] %vm1696, %v3191
    %3199 = vst.msk [vmem:[#allocation8 + $0x18] sm:$0xff] %vm1696, %v3192
    %3200 = vst.msk [vmem:[#allocation8 + $0x20] sm:$0xff] %vm1696, %v3193
    %3201 = vst.msk [vmem:[#allocation8 + $0x28] sm:$0xff] %vm1696, %v3194
    %3202 = vst.msk [vmem:[#allocation8 + $0x30] sm:$0xff] %vm1696, %v3195
    // Predicated region
    $region26: #{forward.1} parent=1 // pred_check
      _
    $region27: #{forward.1} parent=1 // pred_check_branch
      %3204 = sbr.rel (0) target = $region29
    $region28: #{forward.1} parent=1 // pred_region
      %s3206 = ssub.s32 896, 896
      %3207 = vsyncadd [#allocation4], %s3206
      %s3208 = sshll.u32 [#allocation8], 4
      %s3209 = int_to_ptr.vmem [resolvable:$true] %s3208
      %3214 = dma.vmem_to_hbm [thread:$0]  %s3209, 896, %s3, [#allocation4], 128, 128, 8
    $region29: #{forward.1} parent=1 // pred_fallthru
      _
    // Predicated region
    $region30: #{forward.1} parent=1 // pred_check
      _
    $region31: #{forward.1} parent=1 // pred_check_branch
      %3216 = sbr.rel (0) target = $region33
    $region32: #{forward.1} parent=1 // pred_region
      %3217 = dma.done [#allocation4], 896
    $region33: #{forward.1} parent=1 // pred_fallthru
      _
    %3218 = vsyncpa [#allocation3], 1
    %3219 = vsyncpa [#allocation6], 1
    %3220 = vsyncpa [#allocation4], 1

</llo_original>
